<compile_context>
chip_gen: v7x
topology: tpu7x:2x2x1
jax: 0.10.0
libtpu: 0.0.40
codegen_flags: <defaults>
</compile_context>

<pallas_src>
from typing import NamedTuple

import jax
import jax.numpy as jnp
from jax.experimental import pallas as pl
from jax.experimental.pallas import tpu as pltpu

LN_EPS = 1e-5          # torch.nn.LayerNorm default eps
_LANE = 128
_SUBLANE = 8


def _round_up(x, m):
    return (x + m - 1) // m * m


# ---------------------------------------------------------------------------
# Kernel
# ---------------------------------------------------------------------------
def _make_fused_mlp_kernel(dims, dims_pad, param_dtype):
    """Kernel for the full (Linear -> LayerNorm -> ReLU)*n chain.

    refs = (x, [w, aff] * n_layers, out) where aff = [bias; gamma; beta]
    stacked as a (3, d_out_pad) array.  Feature outputs are zero-padded to
    multiples of 128; padded weight cols / aff entries are zero, so padded
    activation columns stay exactly zero layer to layer.
    """
    n_layers = len(dims) - 1
    use_bf16 = jnp.dtype(param_dtype) == jnp.dtype(jnp.bfloat16)

    def kernel(*refs):
        x_ref, o_ref = refs[0], refs[-1]
        h = x_ref[...]
        h = h.astype(jnp.bfloat16) if use_bf16 else h.astype(jnp.float32)

        for li in range(n_layers):
            w_ref = refs[1 + 2 * li]
            aff_ref = refs[2 + 2 * li]
            d_out, d_out_pad = dims[li + 1], dims_pad[li + 1]

            aff = aff_ref[...]                       # (3, d_out_pad) f32
            b, g, be = aff[0:1, :], aff[1:2, :], aff[2:3, :]

            y = jnp.dot(h, w_ref[...], preferred_element_type=jnp.float32)
            y = y + b

            # LayerNorm over the TRUE width d_out.  Padded cols of y are
            # exactly 0, so their contribution to sum((y-mean)^2) is mean^2
            # each -> correct algebraically instead of masking (saves 2
            # full-tile VALU ops per layer).
            inv_n = 1.0 / d_out
            mean = jnp.sum(y, axis=-1, keepdims=True) * inv_n
            c = y - mean
            ss = jnp.sum(c * c, axis=-1, keepdims=True)
            if d_out_pad != d_out:
                ss = ss - (d_out_pad - d_out) * (mean * mean)
            norm = c * jax.lax.rsqrt(ss * inv_n + LN_EPS)

            if use_bf16:
                # affine + ReLU in bf16 (stats stayed f32); padded gamma/beta
                # are 0 so padded cols of h are exactly 0 again.
                z = (norm.astype(jnp.bfloat16) * g.astype(jnp.bfloat16)
                     + be.astype(jnp.bfloat16))
                h = jnp.maximum(z, 0.0)
            else:
                h = jnp.maximum(norm * g + be, 0.0)

        o_ref[...] = h.astype(o_ref.dtype)           # lane-dense store

    return kernel


# ---------------------------------------------------------------------------
# One-time parameter preparation (hoisted out of the call path)
# ---------------------------------------------------------------------------
class FusedMLPParams(NamedTuple):
    dims: tuple          # true layer widths, including input width
    dims_pad: tuple      # dims_pad[0] == dims[0] (true K); rest padded to 128
    param_dtype: object
    flat: tuple          # (w0, aff0, w1, aff1, ...)


def prepare_fused_mlp_params(params, *, param_dtype=jnp.bfloat16):
    """Pad/cast parameters ONCE.  params: list of (w, b, gamma, beta)."""
    dims = [params[0][0].shape[0]] + [w.shape[1] for (w, _, _, _) in params]
    # First-layer K keeps its true width (MXU pads K internally, and a block
    # dim equal to the full array dim is exempt from the (8,128) rule).
    dims_pad = [dims[0]] + [_round_up(d, _LANE) for d in dims[1:]]

    flat = []
    for li, (w, b, g, be) in enumerate(params):
        d_in, d_out = dims[li], dims[li + 1]
        dip, dop = dims_pad[li], dims_pad[li + 1]
        assert w.shape == (d_in, d_out), "inconsistent layer widths"
        wp = (jnp.zeros((dip, dop), jnp.float32)
              .at[:d_in, :d_out].set(w.astype(jnp.float32))
              .astype(param_dtype))
        aff = (jnp.zeros((3, dop), jnp.float32)
               .at[0, :d_out].set(b.astype(jnp.float32))
               .at[1, :d_out].set(g.astype(jnp.float32))
               .at[2, :d_out].set(be.astype(jnp.float32)))
        flat += [wp, aff]
    return FusedMLPParams(tuple(dims), tuple(dims_pad), param_dtype, tuple(flat))


# ---------------------------------------------------------------------------
# Wrapper
# ---------------------------------------------------------------------------
def fused_mlp_n(x, prepared: FusedMLPParams, *, tile_b=None, vmem_frac=0.8):
    """Apply the whole MLP_N chain with one Pallas kernel.

    x: (B, dims[0]) float32.  Returns (B, dims[-1]) float32.
    """
    dims, dims_pad, param_dtype, flat = prepared
    B, d0 = x.shape
    assert d0 == dims[0], "input width mismatch"
    n_layers = len(dims) - 1
    d_last, d_last_pad = dims[-1], dims_pad[-1]

    # ---- batch tile: bigger for large B, >=2 grid tiles when possible -----
    if tile_b is None:
        if B >= 2048:
            tile_b = 512
        elif B >= 512:
            tile_b = 256
        else:
            tile_b = 128
    tile_b = max(_SUBLANE, _round_up(tile_b, _SUBLANE))
    # Guarantee >= 2 grid tiles so dimension_semantics=("parallel",) can shard
    # across v7x's two TensorCores (when the batch allows it).
    while tile_b > _SUBLANE and pl.cdiv(B, tile_b) < 2:
        tile_b = max(_SUBLANE, _round_up(tile_b // 2, _SUBLANE))
    grid = (pl.cdiv(B, tile_b),)

    # ---- generation-aware VMEM limit ---------------------------------------
    w_itemsize = jnp.dtype(param_dtype).itemsize
    w_bytes = sum(dims_pad[i] * dims_pad[i + 1] * w_itemsize
                  for i in range(n_layers))
    aff_bytes = sum(3 * dims_pad[i + 1] * 4 for i in range(n_layers))
    io_bytes = 2 * tile_b * (dims_pad[0] + d_last_pad) * 4   # x/out dbl-buffered
    act_bytes = 5 * tile_b * max(dims_pad) * 4               # live f32 temps
    # conservative: account for params possibly being double-buffered (fallback)
    est = io_bytes + 2 * (w_bytes + aff_bytes) + act_bytes
    try:
        vmem_cap = int(pltpu.get_tpu_info().vmem_capacity_bytes)
    except Exception:
        vmem_cap = 64 * 2 ** 20                              # v7x-safe default
    cap = max(32 * 2 ** 20, int(vmem_cap * vmem_frac))
    vmem_limit = int(min(max(int(1.5 * est), 32 * 2 ** 20), cap))

    kernel = _make_fused_mlp_kernel(dims, dims_pad, param_dtype)

    def build_call(single_buffer_params):
        param_kwargs = ({"pipeline_mode": pl.Buffered(1)}
                        if single_buffer_params else {})
        in_specs = [pl.BlockSpec((tile_b, dims_pad[0]), lambda i: (i, 0))]
        for li in range(n_layers):
            dip, dop = dims_pad[li], dims_pad[li + 1]
            # Constant index_maps: parameters stay VMEM-resident across all
            # grid steps; single-buffered since their block never changes.
            in_specs.append(pl.BlockSpec((dip, dop), lambda i: (0, 0),
                                         **param_kwargs))
            in_specs.append(pl.BlockSpec((3, dop), lambda i: (0, 0),
                                         **param_kwargs))
        out_spec = pl.BlockSpec((tile_b, d_last_pad), lambda i: (i, 0))
        return pl.pallas_call(
            kernel,
            out_shape=jax.ShapeDtypeStruct((B, d_last_pad), jnp.float32),
            grid_spec=pltpu.PrefetchScalarGridSpec(
                num_scalar_prefetch=0,
                grid=grid,
                in_specs=in_specs,
                out_specs=out_spec,
            ),
            compiler_params=pltpu.CompilerParams(
                dimension_semantics=("parallel",),   # batch tiles over cores
                vmem_limit_bytes=vmem_limit,
            ),
        )

    inputs = (x.astype(jnp.float32),) + tuple(flat)
    try:
        out = build_call(True)(*inputs)
    except Exception:
        # Fallback if this jax build rejects pipeline_mode=pl.Buffered(1).
        out = build_call(False)(*inputs)
    return out[:, :d_last]


# ---------------------------------------------------------------------------
# Parameter init + pure-JAX reference (mirrors torch Linear/LayerNorm math)
# ---------------------------------------------------------------------------
def init_mlp_n_params(key, fcn_dim):
    params = []
    for i in range(len(fcn_dim) - 1):
        d_in, d_out = fcn_dim[i], fcn_dim[i + 1]
        key, kw, kb, kg, kbe = jax.random.split(key, 5)
        bound = 1.0 / jnp.sqrt(jnp.float32(d_in))
        w = jax.random.uniform(kw, (d_in, d_out), jnp.float32, -bound, bound)
        b = jax.random.uniform(kb, (d_out,), jnp.float32, -bound, bound)
        gamma = 1.0 + 0.01 * jax.random.normal(kg, (d_out,), jnp.float32)
        beta = 0.01 * jax.random.normal(kbe, (d_out,), jnp.float32)
        params.append((w, b, gamma, beta))
    return params


def mlp_n_reference(x, params, *, emulate_bf16=False):
    """Pure-JAX reference.  emulate_bf16=True mirrors the kernel's bf16 path
    (bf16 matmul operands and bf16 affine+ReLU epilogue, f32 LN statistics)."""
    out = x.astype(jnp.float32)
    for (w, b, g, be) in params:
        if emulate_bf16:
            y = jnp.dot(out.astype(jnp.bfloat16), w.astype(jnp.bfloat16),
                        preferred_element_type=jnp.float32) + b
        else:
            y = out @ w + b
        mean = jnp.mean(y, axis=-1, keepdims=True)
        var = jnp.mean((y - mean) ** 2, axis=-1, keepdims=True)
        norm = (y - mean) * jax.lax.rsqrt(var + LN_EPS)
        if emulate_bf16:
            z = (norm.astype(jnp.bfloat16) * g.astype(jnp.bfloat16)
                 + be.astype(jnp.bfloat16))
            out = jnp.maximum(z, 0.0).astype(jnp.float32)
        else:
            out = jnp.maximum(norm * g + be, 0.0)
    return out


if __name__ == "__main__":
    key = jax.random.PRNGKey(0)
    kx, kp = jax.random.split(key)

    # Small shapes consistent with one MLP_N expert branch of the module.
    # Widths deliberately not multiples of 128 (exercises lane padding and the
    # padded-variance correction) and batch not a multiple of the tile
    # (exercises the partial last block + >=2-tile grid).
    fcn_dim = [48, 256, 256, 96]
    batch = 200

    x = jax.random.normal(kx, (batch, fcn_dim[0]), jnp.float32)
    params = init_mlp_n_params(kp, fcn_dim)

    # f32 weights (portable path).
    prep_f32 = prepare_fused_mlp_params(params, param_dtype=jnp.float32)
    out_f32 = jax.block_until_ready(fused_mlp_n(x, prep_f32))
    ref_f32 = mlp_n_reference(x, params)
    assert out_f32.shape == (batch, fcn_dim[-1])
    assert bool(jnp.all(jnp.isfinite(out_f32)))
    max_err = float(jnp.max(jnp.abs(out_f32 - ref_f32)))
    assert jnp.allclose(out_f32, ref_f32, atol=2e-3, rtol=2e-3), max_err

    # bf16 weight / MXU-operand path (default; MXU-native on v5e/v6e/v7x).
    prep_bf16 = prepare_fused_mlp_params(params, param_dtype=jnp.bfloat16)
    out_bf16 = jax.block_until_ready(fused_mlp_n(x, prep_bf16))
    ref_bf16 = mlp_n_reference(x, params, emulate_bf16=True)
    max_err_bf16 = float(jnp.max(jnp.abs(out_bf16 - ref_bf16)))
    assert jnp.allclose(out_bf16, ref_bf16, atol=3e-2, rtol=3e-2), max_err_bf16

    print("KERNEL_OK")
</pallas_src>

<mosaic_0001>
module attributes {stable_mosaic.version = 11 : i64} {
  func.func @kernel(%arg0: i32, %arg1: memref<128x48xf32, #tpu.memory_space<vmem>>, %arg2: memref<48x256xf32, #tpu.memory_space<vmem>>, %arg3: memref<3x256xf32, #tpu.memory_space<vmem>>, %arg4: memref<256x256xf32, #tpu.memory_space<vmem>>, %arg5: memref<3x256xf32, #tpu.memory_space<vmem>>, %arg6: memref<256x128xf32, #tpu.memory_space<vmem>>, %arg7: memref<3x128xf32, #tpu.memory_space<vmem>>, %arg8: memref<128x128xf32, #tpu.memory_space<vmem>>) attributes {dimension_semantics = [#tpu.dimension_semantics<parallel>], iteration_bounds = array<i64: 2>, scalar_prefetch = 0 : i64, scratch_operands = 0 : i64, tpu.core_type = #tpu.core_type<tc>, window_params = [{transform_indices = @transform_0, window_bounds = array<i64: 128, 48>}, {pipeline_mode = #tpu.pipeline_mode<synchronous>, transform_indices = @transform_1, window_bounds = array<i64: 48, 256>}, {pipeline_mode = #tpu.pipeline_mode<synchronous>, transform_indices = @transform_2, window_bounds = array<i64: 3, 256>}, {pipeline_mode = #tpu.pipeline_mode<synchronous>, transform_indices = @transform_3, window_bounds = array<i64: 256, 256>}, {pipeline_mode = #tpu.pipeline_mode<synchronous>, transform_indices = @transform_4, window_bounds = array<i64: 3, 256>}, {pipeline_mode = #tpu.pipeline_mode<synchronous>, transform_indices = @transform_5, window_bounds = array<i64: 256, 128>}, {pipeline_mode = #tpu.pipeline_mode<synchronous>, transform_indices = @transform_6, window_bounds = array<i64: 3, 128>}, {transform_indices = @transform_7, window_bounds = array<i64: 128, 128>}]} {
    %c0 = arith.constant 0 : index
    %c0_0 = arith.constant 0 : index
    %0 = vector.load %arg1[%c0, %c0_0] : memref<128x48xf32, #tpu.memory_space<vmem>>, vector<128x48xf32>
    %c0_1 = arith.constant 0 : index
    %c0_2 = arith.constant 0 : index
    %1 = vector.load %arg3[%c0_1, %c0_2] : memref<3x256xf32, #tpu.memory_space<vmem>>, vector<3x256xf32>
    %2 = vector.extract_strided_slice %1 {offsets = [0, 0], sizes = [1, 256], strides = [1, 1]} : vector<3x256xf32> to vector<1x256xf32>
    %3 = vector.extract_strided_slice %1 {offsets = [1, 0], sizes = [1, 256], strides = [1, 1]} : vector<3x256xf32> to vector<1x256xf32>
    %4 = vector.extract_strided_slice %1 {offsets = [2, 0], sizes = [1, 256], strides = [1, 1]} : vector<3x256xf32> to vector<1x256xf32>
    %c0_3 = arith.constant 0 : index
    %c0_4 = arith.constant 0 : index
    %5 = vector.load %arg2[%c0_3, %c0_4] : memref<48x256xf32, #tpu.memory_space<vmem>>, vector<48x256xf32>
    %cst = arith.constant dense<0.000000e+00> : vector<128x256xf32>
    %6 = tpu.matmul %0, %5, %cst {dimension_numbers = #tpu.dot_dimension_numbers<[1], [0], [0], [1], [0, 0, 1, 1], [], []>} : vector<128x48xf32>, vector<48x256xf32>, vector<128x256xf32> -> vector<128x256xf32>
    %7 = vector.broadcast %2 : vector<1x256xf32> to vector<128x256xf32>
    %8 = arith.addf %6, %7 : vector<128x256xf32>
    %cst_5 = arith.constant dense<0.000000e+00> : vector<128xf32>
    %9 = vector.multi_reduction <add>, %8, %cst_5 [1] : vector<128x256xf32> to vector<128xf32>
    %10 = vector.shape_cast %9 : vector<128xf32> to vector<128x1xf32>
    %cst_6 = arith.constant 3.906250e-03 : f32
    %11 = vector.broadcast %cst_6 : f32 to vector<128x1xf32>
    %12 = arith.mulf %10, %11 : vector<128x1xf32>
    %13 = vector.broadcast %12 : vector<128x1xf32> to vector<128x256xf32>
    %14 = arith.subf %8, %13 : vector<128x256xf32>
    %15 = arith.mulf %14, %14 : vector<128x256xf32>
    %cst_7 = arith.constant dense<0.000000e+00> : vector<128xf32>
    %16 = vector.multi_reduction <add>, %15, %cst_7 [1] : vector<128x256xf32> to vector<128xf32>
    %17 = vector.shape_cast %16 : vector<128xf32> to vector<128x1xf32>
    %cst_8 = arith.constant 3.906250e-03 : f32
    %18 = vector.broadcast %cst_8 : f32 to vector<128x1xf32>
    %19 = arith.mulf %17, %18 : vector<128x1xf32>
    %cst_9 = arith.constant 9.99999974E-6 : f32
    %20 = vector.broadcast %cst_9 : f32 to vector<128x1xf32>
    %21 = arith.addf %19, %20 : vector<128x1xf32>
    %22 = math.rsqrt %21 : vector<128x1xf32>
    %23 = vector.broadcast %22 : vector<128x1xf32> to vector<128x256xf32>
    %24 = arith.mulf %14, %23 : vector<128x256xf32>
    %25 = vector.broadcast %3 : vector<1x256xf32> to vector<128x256xf32>
    %26 = arith.mulf %24, %25 : vector<128x256xf32>
    %27 = vector.broadcast %4 : vector<1x256xf32> to vector<128x256xf32>
    %28 = arith.addf %26, %27 : vector<128x256xf32>
    %cst_10 = arith.constant 0.000000e+00 : f32
    %29 = vector.broadcast %cst_10 : f32 to vector<128x256xf32>
    %30 = arith.maximumf %28, %29 : vector<128x256xf32>
    %c0_11 = arith.constant 0 : index
    %c0_12 = arith.constant 0 : index
    %31 = vector.load %arg5[%c0_11, %c0_12] : memref<3x256xf32, #tpu.memory_space<vmem>>, vector<3x256xf32>
    %32 = vector.extract_strided_slice %31 {offsets = [0, 0], sizes = [1, 256], strides = [1, 1]} : vector<3x256xf32> to vector<1x256xf32>
    %33 = vector.extract_strided_slice %31 {offsets = [1, 0], sizes = [1, 256], strides = [1, 1]} : vector<3x256xf32> to vector<1x256xf32>
    %34 = vector.extract_strided_slice %31 {offsets = [2, 0], sizes = [1, 256], strides = [1, 1]} : vector<3x256xf32> to vector<1x256xf32>
    %c0_13 = arith.constant 0 : index
    %c0_14 = arith.constant 0 : index
    %35 = vector.load %arg4[%c0_13, %c0_14] : memref<256x256xf32, #tpu.memory_space<vmem>>, vector<256x256xf32>
    %cst_15 = arith.constant dense<0.000000e+00> : vector<128x256xf32>
    %36 = tpu.matmul %30, %35, %cst_15 {dimension_numbers = #tpu.dot_dimension_numbers<[1], [0], [0], [1], [0, 0, 1, 1], [], []>} : vector<128x256xf32>, vector<256x256xf32>, vector<128x256xf32> -> vector<128x256xf32>
    %37 = vector.broadcast %32 : vector<1x256xf32> to vector<128x256xf32>
    %38 = arith.addf %36, %37 : vector<128x256xf32>
    %cst_16 = arith.constant dense<0.000000e+00> : vector<128xf32>
    %39 = vector.multi_reduction <add>, %38, %cst_16 [1] : vector<128x256xf32> to vector<128xf32>
    %40 = vector.shape_cast %39 : vector<128xf32> to vector<128x1xf32>
    %cst_17 = arith.constant 3.906250e-03 : f32
    %41 = vector.broadcast %cst_17 : f32 to vector<128x1xf32>
    %42 = arith.mulf %40, %41 : vector<128x1xf32>
    %43 = vector.broadcast %42 : vector<128x1xf32> to vector<128x256xf32>
    %44 = arith.subf %38, %43 : vector<128x256xf32>
    %45 = arith.mulf %44, %44 : vector<128x256xf32>
    %cst_18 = arith.constant dense<0.000000e+00> : vector<128xf32>
    %46 = vector.multi_reduction <add>, %45, %cst_18 [1] : vector<128x256xf32> to vector<128xf32>
    %47 = vector.shape_cast %46 : vector<128xf32> to vector<128x1xf32>
    %cst_19 = arith.constant 3.906250e-03 : f32
    %48 = vector.broadcast %cst_19 : f32 to vector<128x1xf32>
    %49 = arith.mulf %47, %48 : vector<128x1xf32>
    %cst_20 = arith.constant 9.99999974E-6 : f32
    %50 = vector.broadcast %cst_20 : f32 to vector<128x1xf32>
    %51 = arith.addf %49, %50 : vector<128x1xf32>
    %52 = math.rsqrt %51 : vector<128x1xf32>
    %53 = vector.broadcast %52 : vector<128x1xf32> to vector<128x256xf32>
    %54 = arith.mulf %44, %53 : vector<128x256xf32>
    %55 = vector.broadcast %33 : vector<1x256xf32> to vector<128x256xf32>
    %56 = arith.mulf %54, %55 : vector<128x256xf32>
    %57 = vector.broadcast %34 : vector<1x256xf32> to vector<128x256xf32>
    %58 = arith.addf %56, %57 : vector<128x256xf32>
    %cst_21 = arith.constant 0.000000e+00 : f32
    %59 = vector.broadcast %cst_21 : f32 to vector<128x256xf32>
    %60 = arith.maximumf %58, %59 : vector<128x256xf32>
    %c0_22 = arith.constant 0 : index
    %c0_23 = arith.constant 0 : index
    %61 = vector.load %arg7[%c0_22, %c0_23] : memref<3x128xf32, #tpu.memory_space<vmem>>, vector<3x128xf32>
    %62 = vector.extract_strided_slice %61 {offsets = [0, 0], sizes = [1, 128], strides = [1, 1]} : vector<3x128xf32> to vector<1x128xf32>
    %63 = vector.extract_strided_slice %61 {offsets = [1, 0], sizes = [1, 128], strides = [1, 1]} : vector<3x128xf32> to vector<1x128xf32>
    %64 = vector.extract_strided_slice %61 {offsets = [2, 0], sizes = [1, 128], strides = [1, 1]} : vector<3x128xf32> to vector<1x128xf32>
    %c0_24 = arith.constant 0 : index
    %c0_25 = arith.constant 0 : index
    %65 = vector.load %arg6[%c0_24, %c0_25] : memref<256x128xf32, #tpu.memory_space<vmem>>, vector<256x128xf32>
    %cst_26 = arith.constant dense<0.000000e+00> : vector<128x128xf32>
    %66 = tpu.matmul %60, %65, %cst_26 {dimension_numbers = #tpu.dot_dimension_numbers<[1], [0], [0], [1], [0, 0, 1, 1], [], []>} : vector<128x256xf32>, vector<256x128xf32>, vector<128x128xf32> -> vector<128x128xf32>
    %67 = vector.broadcast %62 : vector<1x128xf32> to vector<128x128xf32>
    %68 = arith.addf %66, %67 : vector<128x128xf32>
    %cst_27 = arith.constant dense<0.000000e+00> : vector<128xf32>
    %69 = vector.multi_reduction <add>, %68, %cst_27 [1] : vector<128x128xf32> to vector<128xf32>
    %70 = vector.shape_cast %69 : vector<128xf32> to vector<128x1xf32>
    %cst_28 = arith.constant 0.010416667 : f32
    %71 = vector.broadcast %cst_28 : f32 to vector<128x1xf32>
    %72 = arith.mulf %70, %71 : vector<128x1xf32>
    %73 = vector.broadcast %72 : vector<128x1xf32> to vector<128x128xf32>
    %74 = arith.subf %68, %73 : vector<128x128xf32>
    %75 = arith.mulf %74, %74 : vector<128x128xf32>
    %cst_29 = arith.constant dense<0.000000e+00> : vector<128xf32>
    %76 = vector.multi_reduction <add>, %75, %cst_29 [1] : vector<128x128xf32> to vector<128xf32>
    %77 = vector.shape_cast %76 : vector<128xf32> to vector<128x1xf32>
    %78 = arith.mulf %72, %72 : vector<128x1xf32>
    %cst_30 = arith.constant 3.200000e+01 : f32
    %79 = vector.broadcast %cst_30 : f32 to vector<128x1xf32>
    %80 = arith.mulf %79, %78 : vector<128x1xf32>
    %81 = arith.subf %77, %80 : vector<128x1xf32>
    %cst_31 = arith.constant 0.010416667 : f32
    %82 = vector.broadcast %cst_31 : f32 to vector<128x1xf32>
    %83 = arith.mulf %81, %82 : vector<128x1xf32>
    %cst_32 = arith.constant 9.99999974E-6 : f32
    %84 = vector.broadcast %cst_32 : f32 to vector<128x1xf32>
    %85 = arith.addf %83, %84 : vector<128x1xf32>
    %86 = math.rsqrt %85 : vector<128x1xf32>
    %87 = vector.broadcast %86 : vector<128x1xf32> to vector<128x128xf32>
    %88 = arith.mulf %74, %87 : vector<128x128xf32>
    %89 = vector.broadcast %63 : vector<1x128xf32> to vector<128x128xf32>
    %90 = arith.mulf %88, %89 : vector<128x128xf32>
    %91 = vector.broadcast %64 : vector<1x128xf32> to vector<128x128xf32>
    %92 = arith.addf %90, %91 : vector<128x128xf32>
    %cst_33 = arith.constant 0.000000e+00 : f32
    %93 = vector.broadcast %cst_33 : f32 to vector<128x128xf32>
    %94 = arith.maximumf %92, %93 : vector<128x128xf32>
    %c0_34 = arith.constant 0 : index
    %c0_35 = arith.constant 0 : index
    %95 = vector.load %arg8[%c0_34, %c0_35] : memref<128x128xf32, #tpu.memory_space<vmem>>, vector<128x128xf32>
    tpu.vector_store %arg8[%c0_34, %c0_35], %94 {strides = array<i32>} : memref<128x128xf32, #tpu.memory_space<vmem>>, vector<128x128xf32>,
    return
  }
  func.func @transform_0(%arg0: i32) -> (i32, i32) {
    %c0_i32 = arith.constant 0 : i32
    %c0_i32_0 = arith.constant 0 : i32
    return %arg0, %c0_i32 : i32, i32
  }
  func.func @transform_1(%arg0: i32) -> (i32, i32) {
    %c0_i32 = arith.constant 0 : i32
    %c0_i32_0 = arith.constant 0 : i32
    %c0_i32_1 = arith.constant 0 : i32
    return %c0_i32, %c0_i32_0 : i32, i32
  }
  func.func @transform_2(%arg0: i32) -> (i32, i32) {
    %c0_i32 = arith.constant 0 : i32
    %c0_i32_0 = arith.constant 0 : i32
    %c0_i32_1 = arith.constant 0 : i32
    return %c0_i32, %c0_i32_0 : i32, i32
  }
  func.func @transform_3(%arg0: i32) -> (i32, i32) {
    %c0_i32 = arith.constant 0 : i32
    %c0_i32_0 = arith.constant 0 : i32
    %c0_i32_1 = arith.constant 0 : i32
    return %c0_i32, %c0_i32_0 : i32, i32
  }
  func.func @transform_4(%arg0: i32) -> (i32, i32) {
    %c0_i32 = arith.constant 0 : i32
    %c0_i32_0 = arith.constant 0 : i32
    %c0_i32_1 = arith.constant 0 : i32
    return %c0_i32, %c0_i32_0 : i32, i32
  }
  func.func @transform_5(%arg0: i32) -> (i32, i32) {
    %c0_i32 = arith.constant 0 : i32
    %c0_i32_0 = arith.constant 0 : i32
    %c0_i32_1 = arith.constant 0 : i32
    return %c0_i32, %c0_i32_0 : i32, i32
  }
  func.func @transform_6(%arg0: i32) -> (i32, i32) {
    %c0_i32 = arith.constant 0 : i32
    %c0_i32_0 = arith.constant 0 : i32
    %c0_i32_1 = arith.constant 0 : i32
    return %c0_i32, %c0_i32_0 : i32, i32
  }
  func.func @transform_7(%arg0: i32) -> (i32, i32) {
    %c0_i32 = arith.constant 0 : i32
    %c0_i32_0 = arith.constant 0 : i32
    return %arg0, %c0_i32 : i32, i32
  }
}

module attributes {stable_mosaic.version = 11 : i64} {
  func.func @kernel(%arg0: i32, %arg1: memref<128x48xf32, #tpu.memory_space<vmem>>, %arg2: memref<48x256xf32, #tpu.memory_space<vmem>>, %arg3: memref<3x256xf32, #tpu.memory_space<vmem>>, %arg4: memref<256x256xf32, #tpu.memory_space<vmem>>, %arg5: memref<3x256xf32, #tpu.memory_space<vmem>>, %arg6: memref<256x128xf32, #tpu.memory_space<vmem>>, %arg7: memref<3x128xf32, #tpu.memory_space<vmem>>, %arg8: memref<128x128xf32, #tpu.memory_space<vmem>>) attributes {dimension_semantics = [#tpu.dimension_semantics<parallel>], iteration_bounds = array<i64: 2>, scalar_prefetch = 0 : i64, scratch_operands = 0 : i64, tpu.core_type = #tpu.core_type<tc>, window_params = [{transform_indices = @transform_0, window_bounds = array<i64: 128, 48>}, {pipeline_mode = #tpu.pipeline_mode<synchronous>, transform_indices = @transform_1, window_bounds = array<i64: 48, 256>}, {pipeline_mode = #tpu.pipeline_mode<synchronous>, transform_indices = @transform_2, window_bounds = array<i64: 3, 256>}, {pipeline_mode = #tpu.pipeline_mode<synchronous>, transform_indices = @transform_3, window_bounds = array<i64: 256, 256>}, {pipeline_mode = #tpu.pipeline_mode<synchronous>, transform_indices = @transform_4, window_bounds = array<i64: 3, 256>}, {pipeline_mode = #tpu.pipeline_mode<synchronous>, transform_indices = @transform_5, window_bounds = array<i64: 256, 128>}, {pipeline_mode = #tpu.pipeline_mode<synchronous>, transform_indices = @transform_6, window_bounds = array<i64: 3, 128>}, {transform_indices = @transform_7, window_bounds = array<i64: 128, 128>}]} {
    %c0 = arith.constant 0 : index
    %c0_0 = arith.constant 0 : index
    %0 = vector.load %arg1[%c0, %c0_0] : memref<128x48xf32, #tpu.memory_space<vmem>>, vector<128x48xf32>
    %c0_1 = arith.constant 0 : index
    %c0_2 = arith.constant 0 : index
    %1 = vector.load %arg3[%c0_1, %c0_2] : memref<3x256xf32, #tpu.memory_space<vmem>>, vector<3x256xf32>
    %2 = vector.extract_strided_slice %1 {offsets = [0, 0], sizes = [1, 256], strides = [1, 1]} : vector<3x256xf32> to vector<1x256xf32>
    %3 = vector.extract_strided_slice %1 {offsets = [1, 0], sizes = [1, 256], strides = [1, 1]} : vector<3x256xf32> to vector<1x256xf32>
    %4 = vector.extract_strided_slice %1 {offsets = [2, 0], sizes = [1, 256], strides = [1, 1]} : vector<3x256xf32> to vector<1x256xf32>
    %c0_3 = arith.constant 0 : index
    %c0_4 = arith.constant 0 : index
    %5 = vector.load %arg2[%c0_3, %c0_4] : memref<48x256xf32, #tpu.memory_space<vmem>>, vector<48x256xf32>
    %cst = arith.constant dense<0.000000e+00> : vector<128x256xf32>
    %6 = tpu.matmul %0, %5, %cst {dimension_numbers = #tpu.dot_dimension_numbers<[1], [0], [0], [1], [0, 0, 1, 1], [], []>} : vector<128x48xf32>, vector<48x256xf32>, vector<128x256xf32> -> vector<128x256xf32>
    %7 = vector.broadcast %2 : vector<1x256xf32> to vector<128x256xf32>
    %8 = arith.addf %6, %7 : vector<128x256xf32>
    %cst_5 = arith.constant dense<0.000000e+00> : vector<128xf32>
    %9 = vector.multi_reduction <add>, %8, %cst_5 [1] : vector<128x256xf32> to vector<128xf32>
    %10 = vector.shape_cast %9 : vector<128xf32> to vector<128x1xf32>
    %cst_6 = arith.constant 3.906250e-03 : f32
    %11 = vector.broadcast %cst_6 : f32 to vector<128x1xf32>
    %12 = arith.mulf %10, %11 : vector<128x1xf32>
    %13 = vector.broadcast %12 : vector<128x1xf32> to vector<128x256xf32>
    %14 = arith.subf %8, %13 : vector<128x256xf32>
    %15 = arith.mulf %14, %14 : vector<128x256xf32>
    %cst_7 = arith.constant dense<0.000000e+00> : vector<128xf32>
    %16 = vector.multi_reduction <add>, %15, %cst_7 [1] : vector<128x256xf32> to vector<128xf32>
    %17 = vector.shape_cast %16 : vector<128xf32> to vector<128x1xf32>
    %cst_8 = arith.constant 3.906250e-03 : f32
    %18 = vector.broadcast %cst_8 : f32 to vector<128x1xf32>
    %19 = arith.mulf %17, %18 : vector<128x1xf32>
    %cst_9 = arith.constant 9.99999974E-6 : f32
    %20 = vector.broadcast %cst_9 : f32 to vector<128x1xf32>
    %21 = arith.addf %19, %20 : vector<128x1xf32>
    %22 = math.rsqrt %21 : vector<128x1xf32>
    %23 = vector.broadcast %22 : vector<128x1xf32> to vector<128x256xf32>
    %24 = arith.mulf %14, %23 : vector<128x256xf32>
    %25 = vector.broadcast %3 : vector<1x256xf32> to vector<128x256xf32>
    %26 = arith.mulf %24, %25 : vector<128x256xf32>
    %27 = vector.broadcast %4 : vector<1x256xf32> to vector<128x256xf32>
    %28 = arith.addf %26, %27 : vector<128x256xf32>
    %cst_10 = arith.constant 0.000000e+00 : f32
    %29 = vector.broadcast %cst_10 : f32 to vector<128x256xf32>
    %30 = arith.maximumf %28, %29 : vector<128x256xf32>
    %c0_11 = arith.constant 0 : index
    %c0_12 = arith.constant 0 : index
    %31 = vector.load %arg5[%c0_11, %c0_12] : memref<3x256xf32, #tpu.memory_space<vmem>>, vector<3x256xf32>
    %32 = vector.extract_strided_slice %31 {offsets = [0, 0], sizes = [1, 256], strides = [1, 1]} : vector<3x256xf32> to vector<1x256xf32>
    %33 = vector.extract_strided_slice %31 {offsets = [1, 0], sizes = [1, 256], strides = [1, 1]} : vector<3x256xf32> to vector<1x256xf32>
    %34 = vector.extract_strided_slice %31 {offsets = [2, 0], sizes = [1, 256], strides = [1, 1]} : vector<3x256xf32> to vector<1x256xf32>
    %c0_13 = arith.constant 0 : index
    %c0_14 = arith.constant 0 : index
    %35 = vector.load %arg4[%c0_13, %c0_14] : memref<256x256xf32, #tpu.memory_space<vmem>>, vector<256x256xf32>
    %cst_15 = arith.constant dense<0.000000e+00> : vector<128x256xf32>
    %36 = tpu.matmul %30, %35, %cst_15 {dimension_numbers = #tpu.dot_dimension_numbers<[1], [0], [0], [1], [0, 0, 1, 1], [], []>} : vector<128x256xf32>, vector<256x256xf32>, vector<128x256xf32> -> vector<128x256xf32>
    %37 = vector.broadcast %32 : vector<1x256xf32> to vector<128x256xf32>
    %38 = arith.addf %36, %37 : vector<128x256xf32>
    %cst_16 = arith.constant dense<0.000000e+00> : vector<128xf32>
    %39 = vector.multi_reduction <add>, %38, %cst_16 [1] : vector<128x256xf32> to vector<128xf32>
    %40 = vector.shape_cast %39 : vector<128xf32> to vector<128x1xf32>
    %cst_17 = arith.constant 3.906250e-03 : f32
    %41 = vector.broadcast %cst_17 : f32 to vector<128x1xf32>
    %42 = arith.mulf %40, %41 : vector<128x1xf32>
    %43 = vector.broadcast %42 : vector<128x1xf32> to vector<128x256xf32>
    %44 = arith.subf %38, %43 : vector<128x256xf32>
    %45 = arith.mulf %44, %44 : vector<128x256xf32>
    %cst_18 = arith.constant dense<0.000000e+00> : vector<128xf32>
    %46 = vector.multi_reduction <add>, %45, %cst_18 [1] : vector<128x256xf32> to vector<128xf32>
    %47 = vector.shape_cast %46 : vector<128xf32> to vector<128x1xf32>
    %cst_19 = arith.constant 3.906250e-03 : f32
    %48 = vector.broadcast %cst_19 : f32 to vector<128x1xf32>
    %49 = arith.mulf %47, %48 : vector<128x1xf32>
    %cst_20 = arith.constant 9.99999974E-6 : f32
    %50 = vector.broadcast %cst_20 : f32 to vector<128x1xf32>
    %51 = arith.addf %49, %50 : vector<128x1xf32>
    %52 = math.rsqrt %51 : vector<128x1xf32>
    %53 = vector.broadcast %52 : vector<128x1xf32> to vector<128x256xf32>
    %54 = arith.mulf %44, %53 : vector<128x256xf32>
    %55 = vector.broadcast %33 : vector<1x256xf32> to vector<128x256xf32>
    %56 = arith.mulf %54, %55 : vector<128x256xf32>
    %57 = vector.broadcast %34 : vector<1x256xf32> to vector<128x256xf32>
    %58 = arith.addf %56, %57 : vector<128x256xf32>
    %cst_21 = arith.constant 0.000000e+00 : f32
    %59 = vector.broadcast %cst_21 : f32 to vector<128x256xf32>
    %60 = arith.maximumf %58, %59 : vector<128x256xf32>
    %c0_22 = arith.constant 0 : index
    %c0_23 = arith.constant 0 : index
    %61 = vector.load %arg7[%c0_22, %c0_23] : memref<3x128xf32, #tpu.memory_space<vmem>>, vector<3x128xf32>
    %62 = vector.extract_strided_slice %61 {offsets = [0, 0], sizes = [1, 128], strides = [1, 1]} : vector<3x128xf32> to vector<1x128xf32>
    %63 = vector.extract_strided_slice %61 {offsets = [1, 0], sizes = [1, 128], strides = [1, 1]} : vector<3x128xf32> to vector<1x128xf32>
    %64 = vector.extract_strided_slice %61 {offsets = [2, 0], sizes = [1, 128], strides = [1, 1]} : vector<3x128xf32> to vector<1x128xf32>
    %c0_24 = arith.constant 0 : index
    %c0_25 = arith.constant 0 : index
    %65 = vector.load %arg6[%c0_24, %c0_25] : memref<256x128xf32, #tpu.memory_space<vmem>>, vector<256x128xf32>
    %cst_26 = arith.constant dense<0.000000e+00> : vector<128x128xf32>
    %66 = tpu.matmul %60, %65, %cst_26 {dimension_numbers = #tpu.dot_dimension_numbers<[1], [0], [0], [1], [0, 0, 1, 1], [], []>} : vector<128x256xf32>, vector<256x128xf32>, vector<128x128xf32> -> vector<128x128xf32>
    %67 = vector.broadcast %62 : vector<1x128xf32> to vector<128x128xf32>
    %68 = arith.addf %66, %67 : vector<128x128xf32>
    %cst_27 = arith.constant dense<0.000000e+00> : vector<128xf32>
    %69 = vector.multi_reduction <add>, %68, %cst_27 [1] : vector<128x128xf32> to vector<128xf32>
    %70 = vector.shape_cast %69 : vector<128xf32> to vector<128x1xf32>
    %cst_28 = arith.constant 0.010416667 : f32
    %71 = vector.broadcast %cst_28 : f32 to vector<128x1xf32>
    %72 = arith.mulf %70, %71 : vector<128x1xf32>
    %73 = vector.broadcast %72 : vector<128x1xf32> to vector<128x128xf32>
    %74 = arith.subf %68, %73 : vector<128x128xf32>
    %75 = arith.mulf %74, %74 : vector<128x128xf32>
    %cst_29 = arith.constant dense<0.000000e+00> : vector<128xf32>
    %76 = vector.multi_reduction <add>, %75, %cst_29 [1] : vector<128x128xf32> to vector<128xf32>
    %77 = vector.shape_cast %76 : vector<128xf32> to vector<128x1xf32>
    %78 = arith.mulf %72, %72 : vector<128x1xf32>
    %cst_30 = arith.constant 3.200000e+01 : f32
    %79 = vector.broadcast %cst_30 : f32 to vector<128x1xf32>
    %80 = arith.mulf %79, %78 : vector<128x1xf32>
    %81 = arith.subf %77, %80 : vector<128x1xf32>
    %cst_31 = arith.constant 0.010416667 : f32
    %82 = vector.broadcast %cst_31 : f32 to vector<128x1xf32>
    %83 = arith.mulf %81, %82 : vector<128x1xf32>
    %cst_32 = arith.constant 9.99999974E-6 : f32
    %84 = vector.broadcast %cst_32 : f32 to vector<128x1xf32>
    %85 = arith.addf %83, %84 : vector<128x1xf32>
    %86 = math.rsqrt %85 : vector<128x1xf32>
    %87 = vector.broadcast %86 : vector<128x1xf32> to vector<128x128xf32>
    %88 = arith.mulf %74, %87 : vector<128x128xf32>
    %89 = vector.broadcast %63 : vector<1x128xf32> to vector<128x128xf32>
    %90 = arith.mulf %88, %89 : vector<128x128xf32>
    %91 = vector.broadcast %64 : vector<1x128xf32> to vector<128x128xf32>
    %92 = arith.addf %90, %91 : vector<128x128xf32>
    %cst_33 = arith.constant 0.000000e+00 : f32
    %93 = vector.broadcast %cst_33 : f32 to vector<128x128xf32>
    %94 = arith.maximumf %92, %93 : vector<128x128xf32>
    %c0_34 = arith.constant 0 : index
    %c0_35 = arith.constant 0 : index
    %95 = vector.load %arg8[%c0_34, %c0_35] : memref<128x128xf32, #tpu.memory_space<vmem>>, vector<128x128xf32>
    tpu.vector_store %arg8[%c0_34, %c0_35], %94 {strides = array<i32>} : memref<128x128xf32, #tpu.memory_space<vmem>>, vector<128x128xf32>,
    return
  }
  func.func @transform_0(%arg0: i32) -> (i32, i32) {
    %c0_i32 = arith.constant 0 : i32
    %c0_i32_0 = arith.constant 0 : i32
    return %arg0, %c0_i32 : i32, i32
  }
  func.func @transform_1(%arg0: i32) -> (i32, i32) {
    %c0_i32 = arith.constant 0 : i32
    %c0_i32_0 = arith.constant 0 : i32
    %c0_i32_1 = arith.constant 0 : i32
    return %c0_i32, %c0_i32_0 : i32, i32
  }
  func.func @transform_2(%arg0: i32) -> (i32, i32) {
    %c0_i32 = arith.constant 0 : i32
    %c0_i32_0 = arith.constant 0 : i32
    %c0_i32_1 = arith.constant 0 : i32
    return %c0_i32, %c0_i32_0 : i32, i32
  }
  func.func @transform_3(%arg0: i32) -> (i32, i32) {
    %c0_i32 = arith.constant 0 : i32
    %c0_i32_0 = arith.constant 0 : i32
    %c0_i32_1 = arith.constant 0 : i32
    return %c0_i32, %c0_i32_0 : i32, i32
  }
  func.func @transform_4(%arg0: i32) -> (i32, i32) {
    %c0_i32 = arith.constant 0 : i32
    %c0_i32_0 = arith.constant 0 : i32
    %c0_i32_1 = arith.constant 0 : i32
    return %c0_i32, %c0_i32_0 : i32, i32
  }
  func.func @transform_5(%arg0: i32) -> (i32, i32) {
    %c0_i32 = arith.constant 0 : i32
    %c0_i32_0 = arith.constant 0 : i32
    %c0_i32_1 = arith.constant 0 : i32
    return %c0_i32, %c0_i32_0 : i32, i32
  }
  func.func @transform_6(%arg0: i32) -> (i32, i32) {
    %c0_i32 = arith.constant 0 : i32
    %c0_i32_0 = arith.constant 0 : i32
    %c0_i32_1 = arith.constant 0 : i32
    return %c0_i32, %c0_i32_0 : i32, i32
  }
  func.func @transform_7(%arg0: i32) -> (i32, i32) {
    %c0_i32 = arith.constant 0 : i32
    %c0_i32_0 = arith.constant 0 : i32
    return %arg0, %c0_i32 : i32, i32
  }
}

</mosaic_0001>

<llo_original>
// kernel: tpu_custom_call.1
$region0: #{tpu_custom_call.1}
  #allocation0 [shape = 'u32[]', space=smem, size = 0x4, offset = 0x4, fixed_abs, tag = 'smem constant byte address 0x4 - core index']
  #allocation1 [shape = 'u32[144,128]{1,0:T(1,128)}', space=vmem, size = 0x12000, scoped, tag = 'internal scratch']
  %s0 = inlined_call_operand.vmem [shape: f32[200,48], index: 0, kind: input, shape index: {}]
  %s1 = inlined_call_operand.hbm [shape: f32[48,256], index: 1, kind: input, shape index: {}]
  %s2 = inlined_call_operand.vmem [shape: f32[3,256], index: 2, kind: input, shape index: {}]
  %s3 = inlined_call_operand.hbm [shape: f32[256,256], index: 3, kind: input, shape index: {}]
  %s4 = inlined_call_operand.vmem [shape: f32[3,256], index: 4, kind: input, shape index: {}]
  %s5 = inlined_call_operand.vmem [shape: f32[256,128], index: 5, kind: input, shape index: {}]
  %s6 = inlined_call_operand.vmem [shape: f32[3,128], index: 6, kind: input, shape index: {}]
  %s7 = inlined_call_operand.hbm [shape: f32[200,128], index: 7, kind: output, shape index: {}]
  %s8 = sld [smem:[#allocation0]]
  $region69: #{tpu_custom_call.1} parent=0
    _
  %s10 = ssub.s32 1, %s8
  %s11 = scalar_select 0, %s10, %s8
  $region1: #{tpu_custom_call.1} parent=0
    #allocation2 [shape = 'u8[49152]{0}', space=vmem, size = 0xc000, scoped, tag = 'input window, operand 1, single buffered']
    #allocation3 [shape = 's32[2]{0}', space=sflag, size = 0x8, scoped, tag = 'scoped memory for tpu_custom_call.1']
    #allocation4 [shape = 's32[2]{0}', space=sflag, size = 0x8, scoped, tag = 'scoped memory for tpu_custom_call.1']
    #allocation5 [shape = 'u8[262144]{0}', space=vmem, size = 0x40000, scoped, tag = 'input window, operand 3, single buffered']
    #allocation6 [shape = 's32[1]{0}', space=sflag, size = 0x4, scoped, tag = 'scoped memory for tpu_custom_call.1']
    #allocation7 [shape = 'u8[131072]{0}', space=vmem, size = 0x20000, scoped, tag = 'output window, operand 0']
    %12 = vsyncpa [#allocation3], 0
    %13 = vsyncpa [#allocation6], 0
    %14 = vsyncpa [#allocation4], 0
    %s15 = scalar_lea.sflag [#allocation4], 1
    %16 = vsyncpa %s15, 0
    loop: start=0, step=1, limit=4
    $region2: #{tpu_custom_call.1} parent=1 // loop_pre_header
      _
    $region3: #{tpu_custom_call.1} parent=1 // loop_header
      %s18 = sphi 0, %s22
      %p19 = scmp.ge.s32.totalorder %s18, 4
      %s28 = sphi 0, %s30
      %s31 = sphi 0, %s28
      %s32 = sphi 0, %s31
      %s48 = sphi 0, %s32
      %s52 = sphi 0, %s52
      %s54 = sphi 0, %s52
      %s55 = sphi 0, %s54
      %s69 = sphi 0, %s55
      %s73 = sphi 0, %s73
      %s75 = sphi 0, %s73
      %s76 = sphi 0, %s75
      %s90 = sphi 0, %s76
      %s94 = sphi 0, %s94
      %s96 = sphi 0, %s94
      %s97 = sphi 0, %s96
      %s111 = sphi 0, %s97
      %s115 = sphi 0, %s115
      %s117 = sphi 0, %s115
      %s118 = sphi 0, %s117
      %s132 = sphi 0, %s118
      %s136 = sphi 0, %s136
      %s138 = sphi 0, %s136
      %s139 = sphi 0, %s138
      %s153 = sphi 0, %s139
      %s157 = sphi 0, %s157
      %s159 = sphi 0, %s157
      %s160 = sphi 0, %s159
      %s174 = sphi 0, %s160
      %s180 = sphi 0, %s182
      %s183 = sphi 0, %s180
      %s184 = sphi 0, %s183
      %s200 = sphi 0, %s184
    $region4: #{tpu_custom_call.1} parent=1 // loop_header_branch
      %21 = sbr.rel (%p19) target = $region8
    $region5: #{tpu_custom_call.1} parent=1 // loop_body
      %s23 = ssub.s32 %s18, 1
      %s24 = ssub.s32 %s18, 2
      %s25 = sadd.s32 %s18, 1
      %s26 = ssub.s32 %s18, %s25
      %p27 = scmp.eq.s32.totalorder %s26, 0
      %s29 = sadd.s32 %s28, 1
      %s30 = scalar_select %p27, %s28, %s29
      %p33 = pneg %p27
      %p34 = scmp.eq.s32.totalorder %s18, 1
      %p35 = por %p33, %p34
      %p36 = scmp.ne.s32.totalorder %s28, %s31
      %p37 = scmp.eq.s32.totalorder %s18, 0
      %p38 = por %p36, %p37
      %p39 = scmp.ne.s32.totalorder %s28, %s31
      %p40 = scmp.eq.s32.totalorder %s23, 1
      %p41 = por %p39, %p40
      %p42 = scmp.ne.s32.totalorder %s31, %s32
      %p43 = scmp.eq.s32.totalorder %s23, 0
      %p44 = por %p42, %p43
      %p45 = scmp.ne.s32.totalorder %s31, %s32
      %p46 = scmp.eq.s32.totalorder %s24, 1
      %p47 = por %p45, %p46
      %p49 = scmp.ne.s32.totalorder %s32, %s48
      %p50 = scmp.eq.s32.totalorder %s24, 0
      %p51 = por %p49, %p50
      %s53 = sadd.s32 %s52, 1
      %p56 = scmp.eq.s32.totalorder %s18, 1
      %p57 = scmp.ne.s32.totalorder %s52, %s54
      %p58 = scmp.eq.s32.totalorder %s18, 0
      %p59 = por %p57, %p58
      %p60 = scmp.ne.s32.totalorder %s52, %s54
      %p61 = scmp.eq.s32.totalorder %s23, 1
      %p62 = por %p60, %p61
      %p63 = scmp.ne.s32.totalorder %s54, %s55
      %p64 = scmp.eq.s32.totalorder %s23, 0
      %p65 = por %p63, %p64
      %p66 = scmp.ne.s32.totalorder %s54, %s55
      %p67 = scmp.eq.s32.totalorder %s24, 1
      %p68 = por %p66, %p67
      %p70 = scmp.ne.s32.totalorder %s55, %s69
      %p71 = scmp.eq.s32.totalorder %s24, 0
      %p72 = por %p70, %p71
      %s74 = sadd.s32 %s73, 1
      %p77 = scmp.eq.s32.totalorder %s18, 1
      %p78 = scmp.ne.s32.totalorder %s73, %s75
      %p79 = scmp.eq.s32.totalorder %s18, 0
      %p80 = por %p78, %p79
      %p81 = scmp.ne.s32.totalorder %s73, %s75
      %p82 = scmp.eq.s32.totalorder %s23, 1
      %p83 = por %p81, %p82
      %p84 = scmp.ne.s32.totalorder %s75, %s76
      %p85 = scmp.eq.s32.totalorder %s23, 0
      %p86 = por %p84, %p85
      %p87 = scmp.ne.s32.totalorder %s75, %s76
      %p88 = scmp.eq.s32.totalorder %s24, 1
      %p89 = por %p87, %p88
      %p91 = scmp.ne.s32.totalorder %s76, %s90
      %p92 = scmp.eq.s32.totalorder %s24, 0
      %p93 = por %p91, %p92
      %s95 = sadd.s32 %s94, 1
      %p98 = scmp.eq.s32.totalorder %s18, 1
      %p99 = scmp.ne.s32.totalorder %s94, %s96
      %p100 = scmp.eq.s32.totalorder %s18, 0
      %p101 = por %p99, %p100
      %p102 = scmp.ne.s32.totalorder %s94, %s96
      %p103 = scmp.eq.s32.totalorder %s23, 1
      %p104 = por %p102, %p103
      %p105 = scmp.ne.s32.totalorder %s96, %s97
      %p106 = scmp.eq.s32.totalorder %s23, 0
      %p107 = por %p105, %p106
      %p108 = scmp.ne.s32.totalorder %s96, %s97
      %p109 = scmp.eq.s32.totalorder %s24, 1
      %p110 = por %p108, %p109
      %p112 = scmp.ne.s32.totalorder %s97, %s111
      %p113 = scmp.eq.s32.totalorder %s24, 0
      %p114 = por %p112, %p113
      %s116 = sadd.s32 %s115, 1
      %p119 = scmp.eq.s32.totalorder %s18, 1
      %p120 = scmp.ne.s32.totalorder %s115, %s117
      %p121 = scmp.eq.s32.totalorder %s18, 0
      %p122 = por %p120, %p121
      %p123 = scmp.ne.s32.totalorder %s115, %s117
      %p124 = scmp.eq.s32.totalorder %s23, 1
      %p125 = por %p123, %p124
      %p126 = scmp.ne.s32.totalorder %s117, %s118
      %p127 = scmp.eq.s32.totalorder %s23, 0
      %p128 = por %p126, %p127
      %p129 = scmp.ne.s32.totalorder %s117, %s118
      %p130 = scmp.eq.s32.totalorder %s24, 1
      %p131 = por %p129, %p130
      %p133 = scmp.ne.s32.totalorder %s118, %s132
      %p134 = scmp.eq.s32.totalorder %s24, 0
      %p135 = por %p133, %p134
      %s137 = sadd.s32 %s136, 1
      %p140 = scmp.eq.s32.totalorder %s18, 1
      %p141 = scmp.ne.s32.totalorder %s136, %s138
      %p142 = scmp.eq.s32.totalorder %s18, 0
      %p143 = por %p141, %p142
      %p144 = scmp.ne.s32.totalorder %s136, %s138
      %p145 = scmp.eq.s32.totalorder %s23, 1
      %p146 = por %p144, %p145
      %p147 = scmp.ne.s32.totalorder %s138, %s139
      %p148 = scmp.eq.s32.totalorder %s23, 0
      %p149 = por %p147, %p148
      %p150 = scmp.ne.s32.totalorder %s138, %s139
      %p151 = scmp.eq.s32.totalorder %s24, 1
      %p152 = por %p150, %p151
      %p154 = scmp.ne.s32.totalorder %s139, %s153
      %p155 = scmp.eq.s32.totalorder %s24, 0
      %p156 = por %p154, %p155
      %s158 = sadd.s32 %s157, 1
      %p161 = scmp.eq.s32.totalorder %s18, 1
      %p162 = scmp.ne.s32.totalorder %s157, %s159
      %p163 = scmp.eq.s32.totalorder %s18, 0
      %p164 = por %p162, %p163
      %p165 = scmp.ne.s32.totalorder %s157, %s159
      %p166 = scmp.eq.s32.totalorder %s23, 1
      %p167 = por %p165, %p166
      %p168 = scmp.ne.s32.totalorder %s159, %s160
      %p169 = scmp.eq.s32.totalorder %s23, 0
      %p170 = por %p168, %p169
      %p171 = scmp.ne.s32.totalorder %s159, %s160
      %p172 = scmp.eq.s32.totalorder %s24, 1
      %p173 = por %p171, %p172
      %p175 = scmp.ne.s32.totalorder %s160, %s174
      %p176 = scmp.eq.s32.totalorder %s24, 0
      %p177 = por %p175, %p176
      %s178 = ssub.s32 %s18, %s25
      %p179 = scmp.eq.s32.totalorder %s178, 0
      %s181 = sadd.s32 %s180, 1
      %s182 = scalar_select %p179, %s180, %s181
      %p185 = pneg %p179
      %p186 = scmp.eq.s32.totalorder %s18, 1
      %p187 = por %p185, %p186
      %p188 = scmp.ne.s32.totalorder %s180, %s183
      %p189 = scmp.eq.s32.totalorder %s18, 0
      %p190 = por %p188, %p189
      %p191 = scmp.ne.s32.totalorder %s180, %s183
      %p192 = scmp.eq.s32.totalorder %s23, 1
      %p193 = por %p191, %p192
      %p194 = scmp.ne.s32.totalorder %s183, %s184
      %p195 = scmp.eq.s32.totalorder %s23, 0
      %p196 = por %p194, %p195
      %p197 = scmp.ne.s32.totalorder %s183, %s184
      %p198 = scmp.eq.s32.totalorder %s24, 1
      %p199 = por %p197, %p198
      %p201 = scmp.ne.s32.totalorder %s184, %s200
      %p202 = scmp.eq.s32.totalorder %s24, 0
      %p203 = por %p201, %p202
      %p204 = scmp.le.s32.totalorder 1, %s18
      %p205 = scmp.lt.s32.totalorder %s18, 3
      %p206 = pnand %p204, %p205
      %p207 = pneg %p206
      // Predicated region
      $region9: #{tpu_custom_call.1} parent=5 // pred_check
        _
      $region10: #{tpu_custom_call.1} parent=5 // pred_check_branch
        %209 = sbr.rel (%p206) target = $region12
      $region11: #{tpu_custom_call.1} parent=5 // pred_region
        %s210 = ssub.s32 %s18, 1
        // Predicated region
        $region13: #{tpu_custom_call.1} parent=11 // pred_check
          %p211 = pneg %p65
        $region14: #{tpu_custom_call.1} parent=11 // pred_check_branch
          %213 = sbr.rel (%p211) target = $region16
        $region15: #{tpu_custom_call.1} parent=11 // pred_region
          %s215 = ssub.s32 1536, 1536
          %216 = vsyncadd [#allocation3], %s215
          %s217 = sshll.u32 [#allocation2], 4
          %s218 = int_to_ptr.vmem [resolvable:$true] %s217
          %223 = dma.hbm_to_vmem [thread:$0]  %s1, 1536, %s218, [#allocation3], 256, 256, 16
        $region16: #{tpu_custom_call.1} parent=11 // pred_fallthru
          _
        // Predicated region
        $region17: #{tpu_custom_call.1} parent=11 // pred_check
          %p224 = pneg %p86
        $region18: #{tpu_custom_call.1} parent=11 // pred_check_branch
          %226 = sbr.rel (%p224) target = $region20
        $region19: #{tpu_custom_call.1} parent=11 // pred_region
          _
        $region20: #{tpu_custom_call.1} parent=11 // pred_fallthru
          _
        // Predicated region
        $region21: #{tpu_custom_call.1} parent=11 // pred_check
          %p227 = pneg %p107
        $region22: #{tpu_custom_call.1} parent=11 // pred_check_branch
          %229 = sbr.rel (%p227) target = $region24
        $region23: #{tpu_custom_call.1} parent=11 // pred_region
          %s231 = ssub.s32 8192, 8192
          %232 = vsyncadd [#allocation6], %s231
          %s233 = sshll.u32 [#allocation5], 4
          %s234 = int_to_ptr.vmem [resolvable:$true] %s233
          %239 = dma.hbm_to_vmem [thread:$0]  %s3, 8192, %s234, [#allocation6], 256, 256, 16
        $region24: #{tpu_custom_call.1} parent=11 // pred_fallthru
          _
        // Predicated region
        $region25: #{tpu_custom_call.1} parent=11 // pred_check
          %p240 = pneg %p128
        $region26: #{tpu_custom_call.1} parent=11 // pred_check_branch
          %242 = sbr.rel (%p240) target = $region28
        $region27: #{tpu_custom_call.1} parent=11 // pred_region
          _
        $region28: #{tpu_custom_call.1} parent=11 // pred_fallthru
          _
        // Predicated region
        $region29: #{tpu_custom_call.1} parent=11 // pred_check
          %p243 = pneg %p149
        $region30: #{tpu_custom_call.1} parent=11 // pred_check_branch
          %245 = sbr.rel (%p243) target = $region32
        $region31: #{tpu_custom_call.1} parent=11 // pred_region
          _
        $region32: #{tpu_custom_call.1} parent=11 // pred_fallthru
          _
        // Predicated region
        $region33: #{tpu_custom_call.1} parent=11 // pred_check
          %p246 = pneg %p170
        $region34: #{tpu_custom_call.1} parent=11 // pred_check_branch
          %248 = sbr.rel (%p246) target = $region36
        $region35: #{tpu_custom_call.1} parent=11 // pred_region
          _
        $region36: #{tpu_custom_call.1} parent=11 // pred_fallthru
          _
      $region12: #{tpu_custom_call.1} parent=5 // pred_fallthru
        _
      %p249 = scmp.lt.s32.totalorder %s18, 2
      // Predicated region
      $region37: #{tpu_custom_call.1} parent=5 // pred_check
        %p250 = pneg %p249
      $region38: #{tpu_custom_call.1} parent=5 // pred_check_branch
        %252 = sbr.rel (%p250) target = $region40
      $region39: #{tpu_custom_call.1} parent=5 // pred_region
        // Predicated region
        $region41: #{tpu_custom_call.1} parent=39 // pred_check
          %p253 = pneg %p38
        $region42: #{tpu_custom_call.1} parent=39 // pred_check_branch
          %255 = sbr.rel (%p253) target = $region44
        $region43: #{tpu_custom_call.1} parent=39 // pred_region
          %s256 = smul.u32 16, %s18
          %s257 = ssub.s32 25, %s256
          %p258 = scmp.lt.s32.totalorder %s257, 16
          %s259 = scalar_select %p258, %s257, 16
          %s260 = smul.u32 128, %s259
          %p261 = scmp.lt.s32.totalorder %s256, 24
          %s262 = scalar_select %p261, %s256, 24
          %s263 = smul.addr %s262, 8
          %s264 = scalar_lea.vmem %s0, %s263
          %s265 = smul.u32 16, %s18
          %s266 = ssub.s32 25, %s265
          %p267 = scmp.lt.s32.totalorder %s266, 16
          %s268 = scalar_select %p267, %s266, 16
          %s269 = smul.u32 128, %s268
        $region44: #{tpu_custom_call.1} parent=39 // pred_fallthru
          _
      $region40: #{tpu_custom_call.1} parent=5 // pred_fallthru
        _
      %p270 = scmp.le.s32.totalorder 1, %s18
      %p271 = scmp.lt.s32.totalorder %s18, 3
      %p272 = pnand %p270, %p271
      %p273 = pneg %p272
      // Predicated region
      $region45: #{tpu_custom_call.1} parent=5 // pred_check
        _
      $region46: #{tpu_custom_call.1} parent=5 // pred_check_branch
        %275 = sbr.rel (%p272) target = $region48
      $region47: #{tpu_custom_call.1} parent=5 // pred_region
        %s276 = ssub.s32 %s18, 1
        // Predicated region
        $region49: #{tpu_custom_call.1} parent=47 // pred_check
          %p277 = pneg %p65
        $region50: #{tpu_custom_call.1} parent=47 // pred_check_branch
          %279 = sbr.rel (%p277) target = $region52
        $region51: #{tpu_custom_call.1} parent=47 // pred_region
          %280 = dma.done [#allocation3], 1536
        $region52: #{tpu_custom_call.1} parent=47 // pred_fallthru
          _
        // Predicated region
        $region53: #{tpu_custom_call.1} parent=47 // pred_check
          %p281 = pneg %p107
        $region54: #{tpu_custom_call.1} parent=47 // pred_check_branch
          %283 = sbr.rel (%p281) target = $region56
        $region55: #{tpu_custom_call.1} parent=47 // pred_region
          %284 = dma.done [#allocation6], 8192
        $region56: #{tpu_custom_call.1} parent=47 // pred_fallthru
          _
        %s285 = smul.u32 16, %s23
        %s286 = ssub.s32 25, %s285
        %p287 = scmp.lt.s32.totalorder %s286, 16
        %s288 = scalar_select %p287, %s286, 16
        %s289 = smul.u32 128, %s288
        %p290 = scmp.lt.s32.totalorder %s285, 24
        %s291 = scalar_select %p290, %s285, 24
        %s292 = smul.addr %s291, 8
        %s293 = scalar_lea.vmem %s0, %s292
        %p294 = pneg %p44
        %p295 = pneg %p41
        %p296 = pneg %p65
        %p297 = pneg %p62
        %p298 = pneg %p86
        %p299 = pneg %p83
        %p300 = pneg %p107
        %p301 = pneg %p104
        %p302 = pneg %p128
        %p303 = pneg %p125
        %p304 = pneg %p149
        %p305 = pneg %p146
        %p306 = pneg %p170
        %p307 = pneg %p167
        %p308 = pneg %p196
        %p309 = pneg %p193
        %s310 = sand.u32 %s183, 1
        %s311 = scalar_lea.sflag [#allocation4], %s310
        %s312 = sand.u32 %s183, 1
        %s313 = smul.addr %s312, 128
        %s314 = scalar_lea.vmem [#allocation7], %s313
        %s315 = smul.u32 16, %s23
        %s316 = ssub.s32 25, %s315
        %p317 = scmp.lt.s32.totalorder %s316, 16
        %s318 = scalar_select %p317, %s316, 16
        %s319 = smul.u32 128, %s318
        %p320 = scmp.lt.s32.totalorder %s315, 24
        %s321 = scalar_select %p320, %s315, 24
        %s322 = smul.addr %s321, 8
        %s323 = scalar_lea.vmem %s0, %s322
        %s324 = smul.u32 16, %s23
        %s325 = ssub.s32 25, %s324
        %p326 = scmp.lt.s32.totalorder %s325, 16
        %s327 = scalar_select %p326, %s325, 16
        %s328 = smul.u32 128, %s327
        %s329 = smul.u32 16, %s23
        %s330 = ssub.s32 25, %s329
        %p331 = scmp.lt.s32.totalorder %s330, 16
        %s332 = scalar_select %p331, %s330, 16
        %s333 = smul.u32 128, %s332
        %v334 = vld [vmem:[%s323] sm:$0xff]
        %v335 = vld [vmem:[%s323 + $0x8] sm:$0xff]
        %v336 = vld [vmem:[%s323 + $0x10] sm:$0xff]
        %v337 = vld [vmem:[%s323 + $0x18] sm:$0xff]
        %v338 = vld [vmem:[%s323 + $0x20] sm:$0xff]
        %v339 = vld [vmem:[%s323 + $0x28] sm:$0xff]
        %v340 = vld [vmem:[%s323 + $0x30] sm:$0xff]
        %v341 = vld [vmem:[%s323 + $0x38] sm:$0xff]
        %v342 = vld [vmem:[%s323 + $0x40] sm:$0xff]
        %v343 = vld [vmem:[%s323 + $0x48] sm:$0xff]
        %v344 = vld [vmem:[%s323 + $0x50] sm:$0xff]
        %v345 = vld [vmem:[%s323 + $0x58] sm:$0xff]
        %v346 = vld [vmem:[%s323 + $0x60] sm:$0xff]
        %v347 = vld [vmem:[%s323 + $0x68] sm:$0xff]
        %v348 = vld [vmem:[%s323 + $0x70] sm:$0xff]
        %v349 = vld [vmem:[%s323 + $0x78] sm:$0xff]
        %v350 = vld [vmem:[%s2] sm:$0x77]
        %v351 = vld [vmem:[#allocation2] sm:$0xff]
        %v352 = vld [vmem:[#allocation2 + $0x8] sm:$0xff]
        %v353 = vld [vmem:[#allocation2 + $0x10] sm:$0xff]
        %v354 = vld [vmem:[#allocation2 + $0x18] sm:$0xff]
        %v355 = vld [vmem:[#allocation2 + $0x20] sm:$0xff]
        %v356 = vld [vmem:[#allocation2 + $0x28] sm:$0xff]
        %v357 = vld [vmem:[#allocation2 + $0x30] sm:$0xff]
        %v358 = vld [vmem:[#allocation2 + $0x38] sm:$0xff]
        %v359 = vld [vmem:[#allocation2 + $0x40] sm:$0xff]
        %v360 = vld [vmem:[#allocation2 + $0x48] sm:$0xff]
        %v361 = vld [vmem:[#allocation2 + $0x50] sm:$0xff]
        %v362 = vld [vmem:[#allocation2 + $0x58] sm:$0xff]
        %v364 = vlaneseq
        %v365 = vshrl.u32 %v364, 7
        %v366 = vsub.s32 0, %v365
        %v367 = vrot.slane %v350, %v366
        %v368 = vlaneseq
        %v369 = vshrl.u32 %v368, 7
        %v370 = vsub.s32 4, %v369
        %v371 = vrot.slane %v350, %v370
        %v374 = vlaneseq
        %v375 = vshrl.u32 %v374, 7
        %v376 = vsub.s32 0, %v375
        %v377 = vrot.slane %v367, %v376
        %v378 = vlaneseq
        %v379 = vshrl.u32 %v378, 7
        %v380 = vsub.s32 0, %v379
        %v381 = vrot.slane %v371, %v380
        %vm382 = vcmask 392192
        %v384 = vsel %vm382, %v334, 0
        %v387 = vsel %vm382, %v335, 0
        %v390 = vsel %vm382, %v336, 0
        %v393 = vsel %vm382, %v337, 0
        %v396 = vsel %vm382, %v338, 0
        %v399 = vsel %vm382, %v339, 0
        %v402 = vsel %vm382, %v340, 0
        %v405 = vsel %vm382, %v341, 0
        %v408 = vsel %vm382, %v342, 0
        %v411 = vsel %vm382, %v343, 0
        %v414 = vsel %vm382, %v344, 0
        %v417 = vsel %vm382, %v345, 0
        %v420 = vsel %vm382, %v346, 0
        %v423 = vsel %vm382, %v347, 0
        %v426 = vsel %vm382, %v348, 0
        %v429 = vsel %vm382, %v349, 0
        %431 = vmatprep.subr.mxu0 %v352
        %432 = vmatpush1.msra.mxu0 %v351
        %433 = vmatprep.subr.mxu0 %v354
        %434 = vmatpush1.msra.mxu0 %v353
        %435 = vmatprep.subr.mxu0 %v356
        %436 = vmatpush1.msra.mxu0 %v355
        %437 = vmatprep.subr.mxu0 %v358
        %438 = vmatpush1.msra.mxu0 %v357
        %439 = vmatprep.subr.mxu0 %v360
        %440 = vmatpush1.msra.mxu0 %v359
        %441 = vmatprep.subr.mxu0 %v362
        %442 = vmatpush1.msra.mxu0 %v361
        %443 = vmatprep.subr.mxu0 0.0
        %444 = vmatpush1.msra.mxu0 0.0
        %445 = vmatprep.subr.mxu0 0.0
        %446 = vmatpush1.msra.mxu0 0.0
        %447 = vmatprep.subr.mxu0 0.0
        %448 = vmatpush1.msra.mxu0 0.0
        %449 = vmatprep.subr.mxu0 0.0
        %450 = vmatpush1.msra.mxu0 0.0
        %451 = vmatprep.subr.mxu0 0.0
        %452 = vmatpush1.msra.mxu0 0.0
        %453 = vmatprep.subr.mxu0 0.0
        %454 = vmatpush1.msra.mxu0 0.0
        %455 = vmatprep.subr.mxu0 0.0
        %456 = vmatpush1.msra.mxu0 0.0
        %457 = vmatprep.subr.mxu0 0.0
        %458 = vmatpush1.msra.mxu0 0.0
        %459 = vmatprep.subr.mxu0 0.0
        %460 = vmatpush1.msra.mxu0 0.0
        %461 = vmatprep.subr.mxu0 0.0
        %462 = vmatpush1.msra.mxu0 0.0
        %463 = vmatprep.subr.mxu0 0.0
        %464 = vmatpush1.msra.mxu0 0.0
        %465 = vmatprep.subr.mxu0 0.0
        %466 = vmatpush1.msra.mxu0 0.0
        %467 = vmatprep.subr.mxu0 0.0
        %468 = vmatpush1.msra.mxu0 0.0
        %469 = vmatprep.subr.mxu0 0.0
        %470 = vmatpush1.msra.mxu0 0.0
        %471 = vmatprep.subr.mxu0 0.0
        %472 = vmatpush1.msra.mxu0 0.0
        %473 = vmatprep.subr.mxu0 0.0
        %474 = vmatpush1.msra.mxu0 0.0
        %475 = vmatprep.subr.mxu0 0.0
        %476 = vmatpush1.msra.mxu0 0.0
        %477 = vmatprep.subr.mxu0 0.0
        %478 = vmatpush1.msra.mxu0 0.0
        %479 = vmatprep.subr.mxu0 0.0
        %480 = vmatpush1.msra.mxu0 0.0
        %481 = vmatprep.subr.mxu0 0.0
        %482 = vmatpush1.msra.mxu0 0.0
        %483 = vmatprep.subr.mxu0 0.0
        %484 = vmatpush1.msra.mxu0 0.0
        %485 = vmatprep.subr.mxu0 0.0
        %486 = vmatpush1.msra.mxu0 0.0
        %487 = vmatprep.subr.mxu0 0.0
        %488 = vmatpush1.msra.mxu0 0.0
        %489 = vmatprep.subr.mxu0 0.0
        %490 = vmatpush1.msra.mxu0 0.0
        %491 = vmatprep.subr.mxu0 0.0
        %492 = vmatpush1.msra.mxu0 0.0
        %493 = vmatprep.subr.mxu0 0.0
        %494 = vmatpush1.msra.mxu0 0.0
        %495 = vmatprep.mubr.f32.mxu0 0.0
        %496 = vmatmul.mubr.f32.gmra.mrb[0].mxu0 %v384
        %v497 = vpop.f32.mrb[0].mxu0
        %v498 = vadd.f32 %v377, %v497
        %v499 = vpop.f32.mrb[0].mxu0
        %v500 = vadd.f32 %v381, %v499
        %501 = vmatprep.mubr.f32.mxu0 0.0
        %502 = vmatmul.mubr.f32.gmra.mrb[0].mxu0 %v387
        %v503 = vpop.f32.mrb[0].mxu0
        %v504 = vadd.f32 %v377, %v503
        %v505 = vpop.f32.mrb[0].mxu0
        %v506 = vadd.f32 %v381, %v505
        %507 = vmatprep.mubr.f32.mxu0 0.0
        %508 = vmatmul.mubr.f32.gmra.mrb[0].mxu0 %v390
        %v509 = vpop.f32.mrb[0].mxu0
        %v510 = vadd.f32 %v377, %v509
        %v511 = vpop.f32.mrb[0].mxu0
        %v512 = vadd.f32 %v381, %v511
        %513 = vmatprep.mubr.f32.mxu0 0.0
        %514 = vmatmul.mubr.f32.gmra.mrb[0].mxu0 %v393
        %v515 = vpop.f32.mrb[0].mxu0
        %v516 = vadd.f32 %v377, %v515
        %v517 = vpop.f32.mrb[0].mxu0
        %v518 = vadd.f32 %v381, %v517
        %519 = vmatprep.mubr.f32.mxu0 0.0
        %520 = vmatmul.mubr.f32.gmra.mrb[0].mxu0 %v396
        %v521 = vpop.f32.mrb[0].mxu0
        %v522 = vadd.f32 %v377, %v521
        %v523 = vpop.f32.mrb[0].mxu0
        %v524 = vadd.f32 %v381, %v523
        %525 = vmatprep.mubr.f32.mxu0 0.0
        %526 = vmatmul.mubr.f32.gmra.mrb[0].mxu0 %v399
        %v527 = vpop.f32.mrb[0].mxu0
        %v528 = vadd.f32 %v377, %v527
        %v529 = vpop.f32.mrb[0].mxu0
        %v530 = vadd.f32 %v381, %v529
        %531 = vmatprep.mubr.f32.mxu0 0.0
        %532 = vmatmul.mubr.f32.gmra.mrb[0].mxu0 %v402
        %v533 = vpop.f32.mrb[0].mxu0
        %v534 = vadd.f32 %v377, %v533
        %v535 = vpop.f32.mrb[0].mxu0
        %v536 = vadd.f32 %v381, %v535
        %537 = vmatprep.mubr.f32.mxu0 0.0
        %538 = vmatmul.mubr.f32.gmra.mrb[0].mxu0 %v405
        %v539 = vpop.f32.mrb[0].mxu0
        %v540 = vadd.f32 %v377, %v539
        %v541 = vpop.f32.mrb[0].mxu0
        %v542 = vadd.f32 %v381, %v541
        %543 = vmatprep.mubr.f32.mxu0 0.0
        %544 = vmatmul.mubr.f32.gmra.mrb[0].mxu0 %v408
        %v545 = vpop.f32.mrb[0].mxu0
        %v546 = vadd.f32 %v377, %v545
        %v547 = vpop.f32.mrb[0].mxu0
        %v548 = vadd.f32 %v381, %v547
        %549 = vmatprep.mubr.f32.mxu0 0.0
        %550 = vmatmul.mubr.f32.gmra.mrb[0].mxu0 %v411
        %v551 = vpop.f32.mrb[0].mxu0
        %v552 = vadd.f32 %v377, %v551
        %v553 = vpop.f32.mrb[0].mxu0
        %v554 = vadd.f32 %v381, %v553
        %555 = vmatprep.mubr.f32.mxu0 0.0
        %556 = vmatmul.mubr.f32.gmra.mrb[0].mxu0 %v414
        %v557 = vpop.f32.mrb[0].mxu0
        %v558 = vadd.f32 %v377, %v557
        %v559 = vpop.f32.mrb[0].mxu0
        %v560 = vadd.f32 %v381, %v559
        %561 = vmatprep.mubr.f32.mxu0 0.0
        %562 = vmatmul.mubr.f32.gmra.mrb[0].mxu0 %v417
        %v563 = vpop.f32.mrb[0].mxu0
        %v564 = vadd.f32 %v377, %v563
        %v565 = vpop.f32.mrb[0].mxu0
        %v566 = vadd.f32 %v381, %v565
        %567 = vmatprep.mubr.f32.mxu0 0.0
        %568 = vmatmul.mubr.f32.gmra.mrb[0].mxu0 %v420
        %v569 = vpop.f32.mrb[0].mxu0
        %v570 = vadd.f32 %v377, %v569
        %v571 = vpop.f32.mrb[0].mxu0
        %v572 = vadd.f32 %v381, %v571
        %573 = vmatprep.mubr.f32.mxu0 0.0
        %574 = vmatmul.mubr.f32.gmra.mrb[0].mxu0 %v423
        %v575 = vpop.f32.mrb[0].mxu0
        %v576 = vadd.f32 %v377, %v575
        %v577 = vpop.f32.mrb[0].mxu0
        %v578 = vadd.f32 %v381, %v577
        %579 = vmatprep.mubr.f32.mxu0 0.0
        %580 = vmatmul.mubr.f32.gmra.mrb[0].mxu0 %v426
        %v581 = vpop.f32.mrb[0].mxu0
        %v582 = vadd.f32 %v377, %v581
        %v583 = vpop.f32.mrb[0].mxu0
        %v584 = vadd.f32 %v381, %v583
        %585 = vmatprep.mubr.f32.mxu0 0.0
        %586 = vmatmul.mubr.f32.gmra.mrb[0].mxu0 %v429
        %v587 = vpop.f32.mrb[0].mxu0
        %v588 = vadd.f32 %v377, %v587
        %v589 = vpop.f32.mrb[0].mxu0
        %v590 = vadd.f32 %v381, %v589
        %591 = vdwg.mxu0
        %v592 = vadd.f32 %v498, %v500
        %593 = vadd.xlane.f32.xlu0 %v592
        %v594 = vpop.xlane.xlu0 %593
        %v595 = vadd.f32 %v504, %v506
        %596 = vadd.xlane.f32.xlu0 %v595
        %v597 = vpop.xlane.xlu0 %596
        %v598 = vadd.f32 %v510, %v512
        %599 = vadd.xlane.f32.xlu0 %v598
        %v600 = vpop.xlane.xlu0 %599
        %v601 = vadd.f32 %v516, %v518
        %602 = vadd.xlane.f32.xlu0 %v601
        %v603 = vpop.xlane.xlu0 %602
        %v604 = vadd.f32 %v522, %v524
        %605 = vadd.xlane.f32.xlu0 %v604
        %v606 = vpop.xlane.xlu0 %605
        %v607 = vadd.f32 %v528, %v530
        %608 = vadd.xlane.f32.xlu0 %v607
        %v609 = vpop.xlane.xlu0 %608
        %v610 = vadd.f32 %v534, %v536
        %611 = vadd.xlane.f32.xlu0 %v610
        %v612 = vpop.xlane.xlu0 %611
        %v613 = vadd.f32 %v540, %v542
        %614 = vadd.xlane.f32.xlu0 %v613
        %v615 = vpop.xlane.xlu0 %614
        %v616 = vadd.f32 %v546, %v548
        %617 = vadd.xlane.f32.xlu0 %v616
        %v618 = vpop.xlane.xlu0 %617
        %v619 = vadd.f32 %v552, %v554
        %620 = vadd.xlane.f32.xlu0 %v619
        %v621 = vpop.xlane.xlu0 %620
        %v622 = vadd.f32 %v558, %v560
        %623 = vadd.xlane.f32.xlu0 %v622
        %v624 = vpop.xlane.xlu0 %623
        %v625 = vadd.f32 %v564, %v566
        %626 = vadd.xlane.f32.xlu0 %v625
        %v627 = vpop.xlane.xlu0 %626
        %v628 = vadd.f32 %v570, %v572
        %629 = vadd.xlane.f32.xlu0 %v628
        %v630 = vpop.xlane.xlu0 %629
        %v631 = vadd.f32 %v576, %v578
        %632 = vadd.xlane.f32.xlu0 %v631
        %v633 = vpop.xlane.xlu0 %632
        %v634 = vadd.f32 %v582, %v584
        %635 = vadd.xlane.f32.xlu0 %v634
        %v636 = vpop.xlane.xlu0 %635
        %v637 = vadd.f32 %v588, %v590
        %638 = vadd.xlane.f32.xlu0 %v637
        %v639 = vpop.xlane.xlu0 %638
        %v640 = vmul.f32 %v594, 0.00390625
        %v641 = vmul.f32 %v597, 0.00390625
        %v642 = vmul.f32 %v600, 0.00390625
        %v643 = vmul.f32 %v603, 0.00390625
        %v644 = vmul.f32 %v606, 0.00390625
        %v645 = vmul.f32 %v609, 0.00390625
        %v646 = vmul.f32 %v612, 0.00390625
        %v647 = vmul.f32 %v615, 0.00390625
        %v648 = vmul.f32 %v618, 0.00390625
        %v649 = vmul.f32 %v621, 0.00390625
        %v650 = vmul.f32 %v624, 0.00390625
        %v651 = vmul.f32 %v627, 0.00390625
        %v652 = vmul.f32 %v630, 0.00390625
        %v653 = vmul.f32 %v633, 0.00390625
        %v654 = vmul.f32 %v636, 0.00390625
        %v655 = vmul.f32 %v639, 0.00390625
        %v656 = vsub.f32 %v498, %v640
        %v657 = vsub.f32 %v500, %v640
        %v658 = vsub.f32 %v504, %v641
        %v659 = vsub.f32 %v506, %v641
        %v660 = vsub.f32 %v510, %v642
        %v661 = vsub.f32 %v512, %v642
        %v662 = vsub.f32 %v516, %v643
        %v663 = vsub.f32 %v518, %v643
        %v664 = vsub.f32 %v522, %v644
        %v665 = vsub.f32 %v524, %v644
        %v666 = vsub.f32 %v528, %v645
        %v667 = vsub.f32 %v530, %v645
        %v668 = vsub.f32 %v534, %v646
        %v669 = vsub.f32 %v536, %v646
        %v670 = vsub.f32 %v540, %v647
        %v671 = vsub.f32 %v542, %v647
        %v672 = vsub.f32 %v546, %v648
        %v673 = vsub.f32 %v548, %v648
        %v674 = vsub.f32 %v552, %v649
        %v675 = vsub.f32 %v554, %v649
        %v676 = vsub.f32 %v558, %v650
        %v677 = vsub.f32 %v560, %v650
        %v678 = vsub.f32 %v564, %v651
        %v679 = vsub.f32 %v566, %v651
        %v680 = vsub.f32 %v570, %v652
        %v681 = vsub.f32 %v572, %v652
        %v682 = vsub.f32 %v576, %v653
        %v683 = vsub.f32 %v578, %v653
        %v684 = vsub.f32 %v582, %v654
        %v685 = vsub.f32 %v584, %v654
        %v686 = vsub.f32 %v588, %v655
        %v687 = vsub.f32 %v590, %v655
        %v688 = vmul.f32 %v656, %v656
        %v689 = vmul.f32 %v657, %v657
        %v690 = vmul.f32 %v658, %v658
        %v691 = vmul.f32 %v659, %v659
        %v692 = vmul.f32 %v660, %v660
        %v693 = vmul.f32 %v661, %v661
        %v694 = vmul.f32 %v662, %v662
        %v695 = vmul.f32 %v663, %v663
        %v696 = vmul.f32 %v664, %v664
        %v697 = vmul.f32 %v665, %v665
        %v698 = vmul.f32 %v666, %v666
        %v699 = vmul.f32 %v667, %v667
        %v700 = vmul.f32 %v668, %v668
        %v701 = vmul.f32 %v669, %v669
        %v702 = vmul.f32 %v670, %v670
        %v703 = vmul.f32 %v671, %v671
        %v704 = vmul.f32 %v672, %v672
        %v705 = vmul.f32 %v673, %v673
        %v706 = vmul.f32 %v674, %v674
        %v707 = vmul.f32 %v675, %v675
        %v708 = vmul.f32 %v676, %v676
        %v709 = vmul.f32 %v677, %v677
        %v710 = vmul.f32 %v678, %v678
        %v711 = vmul.f32 %v679, %v679
        %v712 = vmul.f32 %v680, %v680
        %v713 = vmul.f32 %v681, %v681
        %v714 = vmul.f32 %v682, %v682
        %v715 = vmul.f32 %v683, %v683
        %v716 = vmul.f32 %v684, %v684
        %v717 = vmul.f32 %v685, %v685
        %v718 = vmul.f32 %v686, %v686
        %v719 = vmul.f32 %v687, %v687
        %v720 = vadd.f32 %v688, %v689
        %721 = vadd.xlane.f32.xlu0 %v720
        %v722 = vpop.xlane.xlu0 %721
        %v723 = vadd.f32 %v690, %v691
        %724 = vadd.xlane.f32.xlu0 %v723
        %v725 = vpop.xlane.xlu0 %724
        %v726 = vadd.f32 %v692, %v693
        %727 = vadd.xlane.f32.xlu0 %v726
        %v728 = vpop.xlane.xlu0 %727
        %v729 = vadd.f32 %v694, %v695
        %730 = vadd.xlane.f32.xlu0 %v729
        %v731 = vpop.xlane.xlu0 %730
        %v732 = vadd.f32 %v696, %v697
        %733 = vadd.xlane.f32.xlu0 %v732
        %v734 = vpop.xlane.xlu0 %733
        %v735 = vadd.f32 %v698, %v699
        %736 = vadd.xlane.f32.xlu0 %v735
        %v737 = vpop.xlane.xlu0 %736
        %v738 = vadd.f32 %v700, %v701
        %739 = vadd.xlane.f32.xlu0 %v738
        %v740 = vpop.xlane.xlu0 %739
        %v741 = vadd.f32 %v702, %v703
        %742 = vadd.xlane.f32.xlu0 %v741
        %v743 = vpop.xlane.xlu0 %742
        %v744 = vadd.f32 %v704, %v705
        %745 = vadd.xlane.f32.xlu0 %v744
        %v746 = vpop.xlane.xlu0 %745
        %v747 = vadd.f32 %v706, %v707
        %748 = vadd.xlane.f32.xlu0 %v747
        %v749 = vpop.xlane.xlu0 %748
        %v750 = vadd.f32 %v708, %v709
        %751 = vadd.xlane.f32.xlu0 %v750
        %v752 = vpop.xlane.xlu0 %751
        %v753 = vadd.f32 %v710, %v711
        %754 = vadd.xlane.f32.xlu0 %v753
        %v755 = vpop.xlane.xlu0 %754
        %v756 = vadd.f32 %v712, %v713
        %757 = vadd.xlane.f32.xlu0 %v756
        %v758 = vpop.xlane.xlu0 %757
        %v759 = vadd.f32 %v714, %v715
        %760 = vadd.xlane.f32.xlu0 %v759
        %v761 = vpop.xlane.xlu0 %760
        %v762 = vadd.f32 %v716, %v717
        %763 = vadd.xlane.f32.xlu0 %v762
        %v764 = vpop.xlane.xlu0 %763
        %v765 = vadd.f32 %v718, %v719
        %766 = vadd.xlane.f32.xlu0 %v765
        %v767 = vpop.xlane.xlu0 %766
        %v768 = vmul.f32 %v722, 0.00390625
        %v769 = vmul.f32 %v725, 0.00390625
        %v770 = vmul.f32 %v728, 0.00390625
        %v771 = vmul.f32 %v731, 0.00390625
        %v772 = vmul.f32 %v734, 0.00390625
        %v773 = vmul.f32 %v737, 0.00390625
        %v774 = vmul.f32 %v740, 0.00390625
        %v775 = vmul.f32 %v743, 0.00390625
        %v776 = vmul.f32 %v746, 0.00390625
        %v777 = vmul.f32 %v749, 0.00390625
        %v778 = vmul.f32 %v752, 0.00390625
        %v779 = vmul.f32 %v755, 0.00390625
        %v780 = vmul.f32 %v758, 0.00390625
        %v781 = vmul.f32 %v761, 0.00390625
        %v782 = vmul.f32 %v764, 0.00390625
        %v783 = vmul.f32 %v767, 0.00390625
        %v784 = vadd.f32 %v768, 1e-05
        %v785 = vadd.f32 %v769, 1e-05
        %v786 = vadd.f32 %v770, 1e-05
        %v787 = vadd.f32 %v771, 1e-05
        %v788 = vadd.f32 %v772, 1e-05
        %v789 = vadd.f32 %v773, 1e-05
        %v790 = vadd.f32 %v774, 1e-05
        %v791 = vadd.f32 %v775, 1e-05
        %v792 = vadd.f32 %v776, 1e-05
        %v793 = vadd.f32 %v777, 1e-05
        %v794 = vadd.f32 %v778, 1e-05
        %v795 = vadd.f32 %v779, 1e-05
        %v796 = vadd.f32 %v780, 1e-05
        %v797 = vadd.f32 %v781, 1e-05
        %v798 = vadd.f32 %v782, 1e-05
        %v799 = vadd.f32 %v783, 1e-05
        %v800 = vrsqrt.pop %v784
        %v801 = vrsqrt.pop %v785
        %v802 = vrsqrt.pop %v786
        %v803 = vrsqrt.pop %v787
        %v804 = vrsqrt.pop %v788
        %v805 = vrsqrt.pop %v789
        %v806 = vrsqrt.pop %v790
        %v807 = vrsqrt.pop %v791
        %v808 = vrsqrt.pop %v792
        %v809 = vrsqrt.pop %v793
        %v810 = vrsqrt.pop %v794
        %v811 = vrsqrt.pop %v795
        %v812 = vrsqrt.pop %v796
        %v813 = vrsqrt.pop %v797
        %v814 = vrsqrt.pop %v798
        %v815 = vrsqrt.pop %v799
        %v816 = vmul.f32 %v656, %v800
        %v817 = vmul.f32 %v657, %v800
        %v818 = vmul.f32 %v658, %v801
        %v819 = vmul.f32 %v659, %v801
        %v820 = vmul.f32 %v660, %v802
        %v821 = vmul.f32 %v661, %v802
        %v822 = vmul.f32 %v662, %v803
        %v823 = vmul.f32 %v663, %v803
        %v824 = vmul.f32 %v664, %v804
        %v825 = vmul.f32 %v665, %v804
        %v826 = vmul.f32 %v666, %v805
        %v827 = vmul.f32 %v667, %v805
        %v828 = vmul.f32 %v668, %v806
        %v829 = vmul.f32 %v669, %v806
        %v830 = vmul.f32 %v670, %v807
        %v831 = vmul.f32 %v671, %v807
        %v832 = vmul.f32 %v672, %v808
        %v833 = vmul.f32 %v673, %v808
        %v834 = vmul.f32 %v674, %v809
        %v835 = vmul.f32 %v675, %v809
        %v836 = vmul.f32 %v676, %v810
        %v837 = vmul.f32 %v677, %v810
        %v838 = vmul.f32 %v678, %v811
        %v839 = vmul.f32 %v679, %v811
        %v840 = vmul.f32 %v680, %v812
        %v841 = vmul.f32 %v681, %v812
        %v842 = vmul.f32 %v682, %v813
        %v843 = vmul.f32 %v683, %v813
        %v844 = vmul.f32 %v684, %v814
        %v845 = vmul.f32 %v685, %v814
        %v846 = vmul.f32 %v686, %v815
        %v847 = vmul.f32 %v687, %v815
        %v848 = vlaneseq
        %v849 = vshrl.u32 %v848, 7
        %v850 = vsub.s32 1, %v849
        %v851 = vrot.slane %v350, %v850
        %v852 = vlaneseq
        %v853 = vshrl.u32 %v852, 7
        %v854 = vsub.s32 5, %v853
        %v855 = vrot.slane %v350, %v854
        %v858 = vlaneseq
        %v859 = vshrl.u32 %v858, 7
        %v860 = vsub.s32 1, %v859
        %v861 = vrot.slane %v851, %v860
        %v862 = vlaneseq
        %v863 = vshrl.u32 %v862, 7
        %v864 = vsub.s32 1, %v863
        %v865 = vrot.slane %v855, %v864
        %v866 = vmul.f32 %v816, %v861
        %v867 = vmul.f32 %v817, %v865
        %v868 = vmul.f32 %v818, %v861
        %v869 = vmul.f32 %v819, %v865
        %v870 = vmul.f32 %v820, %v861
        %v871 = vmul.f32 %v821, %v865
        %v872 = vmul.f32 %v822, %v861
        %v873 = vmul.f32 %v823, %v865
        %v874 = vmul.f32 %v824, %v861
        %v875 = vmul.f32 %v825, %v865
        %v876 = vmul.f32 %v826, %v861
        %v877 = vmul.f32 %v827, %v865
        %v878 = vmul.f32 %v828, %v861
        %v879 = vmul.f32 %v829, %v865
        %v880 = vmul.f32 %v830, %v861
        %v881 = vmul.f32 %v831, %v865
        %v882 = vmul.f32 %v832, %v861
        %v883 = vmul.f32 %v833, %v865
        %v884 = vmul.f32 %v834, %v861
        %v885 = vmul.f32 %v835, %v865
        %v886 = vmul.f32 %v836, %v861
        %v887 = vmul.f32 %v837, %v865
        %v888 = vmul.f32 %v838, %v861
        %v889 = vmul.f32 %v839, %v865
        %v890 = vmul.f32 %v840, %v861
        %v891 = vmul.f32 %v841, %v865
        %v892 = vmul.f32 %v842, %v861
        %v893 = vmul.f32 %v843, %v865
        %v894 = vmul.f32 %v844, %v861
        %v895 = vmul.f32 %v845, %v865
        %v896 = vmul.f32 %v846, %v861
        %v897 = vmul.f32 %v847, %v865
        %v898 = vlaneseq
        %v899 = vshrl.u32 %v898, 7
        %v900 = vsub.s32 2, %v899
        %v901 = vrot.slane %v350, %v900
        %v902 = vlaneseq
        %v903 = vshrl.u32 %v902, 7
        %v904 = vsub.s32 6, %v903
        %v905 = vrot.slane %v350, %v904
        %v908 = vlaneseq
        %v909 = vshrl.u32 %v908, 7
        %v910 = vsub.s32 2, %v909
        %v911 = vrot.slane %v901, %v910
        %v912 = vlaneseq
        %v913 = vshrl.u32 %v912, 7
        %v914 = vsub.s32 2, %v913
        %v915 = vrot.slane %v905, %v914
        %v916 = vadd.f32 %v866, %v911
        %v917 = vadd.f32 %v867, %v915
        %v918 = vadd.f32 %v868, %v911
        %v919 = vadd.f32 %v869, %v915
        %v920 = vadd.f32 %v870, %v911
        %v921 = vadd.f32 %v871, %v915
        %v922 = vadd.f32 %v872, %v911
        %v923 = vadd.f32 %v873, %v915
        %v924 = vadd.f32 %v874, %v911
        %v925 = vadd.f32 %v875, %v915
        %v926 = vadd.f32 %v876, %v911
        %v927 = vadd.f32 %v877, %v915
        %v928 = vadd.f32 %v878, %v911
        %v929 = vadd.f32 %v879, %v915
        %v930 = vadd.f32 %v880, %v911
        %v931 = vadd.f32 %v881, %v915
        %v932 = vadd.f32 %v882, %v911
        %v933 = vadd.f32 %v883, %v915
        %v934 = vadd.f32 %v884, %v911
        %v935 = vadd.f32 %v885, %v915
        %v936 = vadd.f32 %v886, %v911
        %v937 = vadd.f32 %v887, %v915
        %v938 = vadd.f32 %v888, %v911
        %v939 = vadd.f32 %v889, %v915
        %v940 = vadd.f32 %v890, %v911
        %v941 = vadd.f32 %v891, %v915
        %v942 = vadd.f32 %v892, %v911
        %v943 = vadd.f32 %v893, %v915
        %v944 = vadd.f32 %v894, %v911
        %v945 = vadd.f32 %v895, %v915
        %v946 = vadd.f32 %v896, %v911
        %v947 = vadd.f32 %v897, %v915
        %v948 = vmax.f32 %v916, 0.0
        %v949 = vmax.f32 %v917, 0.0
        %v950 = vmax.f32 %v918, 0.0
        %v951 = vmax.f32 %v919, 0.0
        %v952 = vmax.f32 %v920, 0.0
        %v953 = vmax.f32 %v921, 0.0
        %v954 = vmax.f32 %v922, 0.0
        %v955 = vmax.f32 %v923, 0.0
        %v956 = vmax.f32 %v924, 0.0
        %v957 = vmax.f32 %v925, 0.0
        %v958 = vmax.f32 %v926, 0.0
        %v959 = vmax.f32 %v927, 0.0
        %v960 = vmax.f32 %v928, 0.0
        %v961 = vmax.f32 %v929, 0.0
        %v962 = vmax.f32 %v930, 0.0
        %v963 = vmax.f32 %v931, 0.0
        %v964 = vmax.f32 %v932, 0.0
        %v965 = vmax.f32 %v933, 0.0
        %v966 = vmax.f32 %v934, 0.0
        %v967 = vmax.f32 %v935, 0.0
        %v968 = vmax.f32 %v936, 0.0
        %v969 = vmax.f32 %v937, 0.0
        %v970 = vmax.f32 %v938, 0.0
        %v971 = vmax.f32 %v939, 0.0
        %v972 = vmax.f32 %v940, 0.0
        %v973 = vmax.f32 %v941, 0.0
        %v974 = vmax.f32 %v942, 0.0
        %v975 = vmax.f32 %v943, 0.0
        %v976 = vmax.f32 %v944, 0.0
        %v977 = vmax.f32 %v945, 0.0
        %v978 = vmax.f32 %v946, 0.0
        %v979 = vmax.f32 %v947, 0.0
        %v980 = vld [vmem:[%s4] sm:$0x77]
        %v981 = vld [vmem:[#allocation5] sm:$0xff]
        %v982 = vld [vmem:[#allocation5 + $0x8] sm:$0xff]
        %v983 = vld [vmem:[#allocation5 + $0x10] sm:$0xff]
        %v984 = vld [vmem:[#allocation5 + $0x18] sm:$0xff]
        %v985 = vld [vmem:[#allocation5 + $0x20] sm:$0xff]
        %v986 = vld [vmem:[#allocation5 + $0x28] sm:$0xff]
        %v987 = vld [vmem:[#allocation5 + $0x30] sm:$0xff]
        %v988 = vld [vmem:[#allocation5 + $0x38] sm:$0xff]
        %v989 = vld [vmem:[#allocation5 + $0x40] sm:$0xff]
        %v990 = vld [vmem:[#allocation5 + $0x48] sm:$0xff]
        %v991 = vld [vmem:[#allocation5 + $0x50] sm:$0xff]
        %v992 = vld [vmem:[#allocation5 + $0x58] sm:$0xff]
        %v993 = vld [vmem:[#allocation5 + $0x60] sm:$0xff]
        %v994 = vld [vmem:[#allocation5 + $0x68] sm:$0xff]
        %v995 = vld [vmem:[#allocation5 + $0x70] sm:$0xff]
        %v996 = vld [vmem:[#allocation5 + $0x78] sm:$0xff]
        %v997 = vld [vmem:[#allocation5 + $0x80] sm:$0xff]
        %v998 = vld [vmem:[#allocation5 + $0x88] sm:$0xff]
        %v999 = vld [vmem:[#allocation5 + $0x90] sm:$0xff]
        %v1000 = vld [vmem:[#allocation5 + $0x98] sm:$0xff]
        %v1001 = vld [vmem:[#allocation5 + $0xa0] sm:$0xff]
        %v1002 = vld [vmem:[#allocation5 + $0xa8] sm:$0xff]
        %v1003 = vld [vmem:[#allocation5 + $0xb0] sm:$0xff]
        %v1004 = vld [vmem:[#allocation5 + $0xb8] sm:$0xff]
        %v1005 = vld [vmem:[#allocation5 + $0xc0] sm:$0xff]
        %v1006 = vld [vmem:[#allocation5 + $0xc8] sm:$0xff]
        %v1007 = vld [vmem:[#allocation5 + $0xd0] sm:$0xff]
        %v1008 = vld [vmem:[#allocation5 + $0xd8] sm:$0xff]
        %v1009 = vld [vmem:[#allocation5 + $0xe0] sm:$0xff]
        %v1010 = vld [vmem:[#allocation5 + $0xe8] sm:$0xff]
        %v1011 = vld [vmem:[#allocation5 + $0xf0] sm:$0xff]
        %v1012 = vld [vmem:[#allocation5 + $0xf8] sm:$0xff]
        %v1013 = vld [vmem:[#allocation5 + $0x100] sm:$0xff]
        %v1014 = vld [vmem:[#allocation5 + $0x108] sm:$0xff]
        %v1015 = vld [vmem:[#allocation5 + $0x110] sm:$0xff]
        %v1016 = vld [vmem:[#allocation5 + $0x118] sm:$0xff]
        %v1017 = vld [vmem:[#allocation5 + $0x120] sm:$0xff]
        %v1018 = vld [vmem:[#allocation5 + $0x128] sm:$0xff]
        %v1019 = vld [vmem:[#allocation5 + $0x130] sm:$0xff]
        %v1020 = vld [vmem:[#allocation5 + $0x138] sm:$0xff]
        %v1021 = vld [vmem:[#allocation5 + $0x140] sm:$0xff]
        %v1022 = vld [vmem:[#allocation5 + $0x148] sm:$0xff]
        %v1023 = vld [vmem:[#allocation5 + $0x150] sm:$0xff]
        %v1024 = vld [vmem:[#allocation5 + $0x158] sm:$0xff]
        %v1025 = vld [vmem:[#allocation5 + $0x160] sm:$0xff]
        %v1026 = vld [vmem:[#allocation5 + $0x168] sm:$0xff]
        %v1027 = vld [vmem:[#allocation5 + $0x170] sm:$0xff]
        %v1028 = vld [vmem:[#allocation5 + $0x178] sm:$0xff]
        %v1029 = vld [vmem:[#allocation5 + $0x180] sm:$0xff]
        %v1030 = vld [vmem:[#allocation5 + $0x188] sm:$0xff]
        %v1031 = vld [vmem:[#allocation5 + $0x190] sm:$0xff]
        %v1032 = vld [vmem:[#allocation5 + $0x198] sm:$0xff]
        %v1033 = vld [vmem:[#allocation5 + $0x1a0] sm:$0xff]
        %v1034 = vld [vmem:[#allocation5 + $0x1a8] sm:$0xff]
        %v1035 = vld [vmem:[#allocation5 + $0x1b0] sm:$0xff]
        %v1036 = vld [vmem:[#allocation5 + $0x1b8] sm:$0xff]
        %v1037 = vld [vmem:[#allocation5 + $0x1c0] sm:$0xff]
        %v1038 = vld [vmem:[#allocation5 + $0x1c8] sm:$0xff]
        %v1039 = vld [vmem:[#allocation5 + $0x1d0] sm:$0xff]
        %v1040 = vld [vmem:[#allocation5 + $0x1d8] sm:$0xff]
        %v1041 = vld [vmem:[#allocation5 + $0x1e0] sm:$0xff]
        %v1042 = vld [vmem:[#allocation5 + $0x1e8] sm:$0xff]
        %v1043 = vld [vmem:[#allocation5 + $0x1f0] sm:$0xff]
        %v1044 = vld [vmem:[#allocation5 + $0x1f8] sm:$0xff]
        %v1046 = vlaneseq
        %v1047 = vshrl.u32 %v1046, 7
        %v1048 = vsub.s32 0, %v1047
        %v1049 = vrot.slane %v980, %v1048
        %v1050 = vlaneseq
        %v1051 = vshrl.u32 %v1050, 7
        %v1052 = vsub.s32 4, %v1051
        %v1053 = vrot.slane %v980, %v1052
        %v1056 = vlaneseq
        %v1057 = vshrl.u32 %v1056, 7
        %v1058 = vsub.s32 0, %v1057
        %v1059 = vrot.slane %v1049, %v1058
        %v1060 = vlaneseq
        %v1061 = vshrl.u32 %v1060, 7
        %v1062 = vsub.s32 0, %v1061
        %v1063 = vrot.slane %v1053, %v1062
        %1064 = vmatprep.subr.mxu0 %v982
        %1065 = vmatpush1.msra.mxu0 %v981
        %1066 = vmatprep.subr.mxu0 %v984
        %1067 = vmatpush1.msra.mxu0 %v983
        %1068 = vmatprep.subr.mxu0 %v986
        %1069 = vmatpush1.msra.mxu0 %v985
        %1070 = vmatprep.subr.mxu0 %v988
        %1071 = vmatpush1.msra.mxu0 %v987
        %1072 = vmatprep.subr.mxu0 %v990
        %1073 = vmatpush1.msra.mxu0 %v989
        %1074 = vmatprep.subr.mxu0 %v992
        %1075 = vmatpush1.msra.mxu0 %v991
        %1076 = vmatprep.subr.mxu0 %v994
        %1077 = vmatpush1.msra.mxu0 %v993
        %1078 = vmatprep.subr.mxu0 %v996
        %1079 = vmatpush1.msra.mxu0 %v995
        %1080 = vmatprep.subr.mxu0 %v998
        %1081 = vmatpush1.msra.mxu0 %v997
        %1082 = vmatprep.subr.mxu0 %v1000
        %1083 = vmatpush1.msra.mxu0 %v999
        %1084 = vmatprep.subr.mxu0 %v1002
        %1085 = vmatpush1.msra.mxu0 %v1001
        %1086 = vmatprep.subr.mxu0 %v1004
        %1087 = vmatpush1.msra.mxu0 %v1003
        %1088 = vmatprep.subr.mxu0 %v1006
        %1089 = vmatpush1.msra.mxu0 %v1005
        %1090 = vmatprep.subr.mxu0 %v1008
        %1091 = vmatpush1.msra.mxu0 %v1007
        %1092 = vmatprep.subr.mxu0 %v1010
        %1093 = vmatpush1.msra.mxu0 %v1009
        %1094 = vmatprep.subr.mxu0 %v1012
        %1095 = vmatpush1.msra.mxu0 %v1011
        %1096 = vmatprep.subr.mxu0 %v1014
        %1097 = vmatpush1.msra.mxu0 %v1013
        %1098 = vmatprep.subr.mxu0 %v1016
        %1099 = vmatpush1.msra.mxu0 %v1015
        %1100 = vmatprep.subr.mxu0 %v1018
        %1101 = vmatpush1.msra.mxu0 %v1017
        %1102 = vmatprep.subr.mxu0 %v1020
        %1103 = vmatpush1.msra.mxu0 %v1019
        %1104 = vmatprep.subr.mxu0 %v1022
        %1105 = vmatpush1.msra.mxu0 %v1021
        %1106 = vmatprep.subr.mxu0 %v1024
        %1107 = vmatpush1.msra.mxu0 %v1023
        %1108 = vmatprep.subr.mxu0 %v1026
        %1109 = vmatpush1.msra.mxu0 %v1025
        %1110 = vmatprep.subr.mxu0 %v1028
        %1111 = vmatpush1.msra.mxu0 %v1027
        %1112 = vmatprep.subr.mxu0 %v1030
        %1113 = vmatpush1.msra.mxu0 %v1029
        %1114 = vmatprep.subr.mxu0 %v1032
        %1115 = vmatpush1.msra.mxu0 %v1031
        %1116 = vmatprep.subr.mxu0 %v1034
        %1117 = vmatpush1.msra.mxu0 %v1033
        %1118 = vmatprep.subr.mxu0 %v1036
        %1119 = vmatpush1.msra.mxu0 %v1035
        %1120 = vmatprep.subr.mxu0 %v1038
        %1121 = vmatpush1.msra.mxu0 %v1037
        %1122 = vmatprep.subr.mxu0 %v1040
        %1123 = vmatpush1.msra.mxu0 %v1039
        %1124 = vmatprep.subr.mxu0 %v1042
        %1125 = vmatpush1.msra.mxu0 %v1041
        %1126 = vmatprep.subr.mxu0 %v1044
        %1127 = vmatpush1.msra.mxu0 %v1043
        %1128 = vmatprep.mubr.f32.mxu0 %v949
        %1129 = vmatmul.mubr.f32.gmra.mrb[0].mxu0 %v948
        %v1130 = vpop.f32.mrb[0].mxu0
        %v1131 = vadd.f32 %v1059, %v1130
        %v1132 = vpop.f32.mrb[0].mxu0
        %v1133 = vadd.f32 %v1063, %v1132
        %1134 = vmatprep.mubr.f32.mxu0 %v951
        %1135 = vmatmul.mubr.f32.gmra.mrb[0].mxu0 %v950
        %v1136 = vpop.f32.mrb[0].mxu0
        %v1137 = vadd.f32 %v1059, %v1136
        %v1138 = vpop.f32.mrb[0].mxu0
        %v1139 = vadd.f32 %v1063, %v1138
        %1140 = vmatprep.mubr.f32.mxu0 %v953
        %1141 = vmatmul.mubr.f32.gmra.mrb[0].mxu0 %v952
        %v1142 = vpop.f32.mrb[0].mxu0
        %v1143 = vadd.f32 %v1059, %v1142
        %v1144 = vpop.f32.mrb[0].mxu0
        %v1145 = vadd.f32 %v1063, %v1144
        %1146 = vmatprep.mubr.f32.mxu0 %v955
        %1147 = vmatmul.mubr.f32.gmra.mrb[0].mxu0 %v954
        %v1148 = vpop.f32.mrb[0].mxu0
        %v1149 = vadd.f32 %v1059, %v1148
        %v1150 = vpop.f32.mrb[0].mxu0
        %v1151 = vadd.f32 %v1063, %v1150
        %1152 = vmatprep.mubr.f32.mxu0 %v957
        %1153 = vmatmul.mubr.f32.gmra.mrb[0].mxu0 %v956
        %v1154 = vpop.f32.mrb[0].mxu0
        %v1155 = vadd.f32 %v1059, %v1154
        %v1156 = vpop.f32.mrb[0].mxu0
        %v1157 = vadd.f32 %v1063, %v1156
        %1158 = vmatprep.mubr.f32.mxu0 %v959
        %1159 = vmatmul.mubr.f32.gmra.mrb[0].mxu0 %v958
        %v1160 = vpop.f32.mrb[0].mxu0
        %v1161 = vadd.f32 %v1059, %v1160
        %v1162 = vpop.f32.mrb[0].mxu0
        %v1163 = vadd.f32 %v1063, %v1162
        %1164 = vmatprep.mubr.f32.mxu0 %v961
        %1165 = vmatmul.mubr.f32.gmra.mrb[0].mxu0 %v960
        %v1166 = vpop.f32.mrb[0].mxu0
        %v1167 = vadd.f32 %v1059, %v1166
        %v1168 = vpop.f32.mrb[0].mxu0
        %v1169 = vadd.f32 %v1063, %v1168
        %1170 = vmatprep.mubr.f32.mxu0 %v963
        %1171 = vmatmul.mubr.f32.gmra.mrb[0].mxu0 %v962
        %v1172 = vpop.f32.mrb[0].mxu0
        %v1173 = vadd.f32 %v1059, %v1172
        %v1174 = vpop.f32.mrb[0].mxu0
        %v1175 = vadd.f32 %v1063, %v1174
        %1176 = vmatprep.mubr.f32.mxu0 %v965
        %1177 = vmatmul.mubr.f32.gmra.mrb[0].mxu0 %v964
        %v1178 = vpop.f32.mrb[0].mxu0
        %v1179 = vadd.f32 %v1059, %v1178
        %v1180 = vpop.f32.mrb[0].mxu0
        %v1181 = vadd.f32 %v1063, %v1180
        %1182 = vmatprep.mubr.f32.mxu0 %v967
        %1183 = vmatmul.mubr.f32.gmra.mrb[0].mxu0 %v966
        %v1184 = vpop.f32.mrb[0].mxu0
        %v1185 = vadd.f32 %v1059, %v1184
        %v1186 = vpop.f32.mrb[0].mxu0
        %v1187 = vadd.f32 %v1063, %v1186
        %1188 = vmatprep.mubr.f32.mxu0 %v969
        %1189 = vmatmul.mubr.f32.gmra.mrb[0].mxu0 %v968
        %v1190 = vpop.f32.mrb[0].mxu0
        %v1191 = vadd.f32 %v1059, %v1190
        %v1192 = vpop.f32.mrb[0].mxu0
        %v1193 = vadd.f32 %v1063, %v1192
        %1194 = vmatprep.mubr.f32.mxu0 %v971
        %1195 = vmatmul.mubr.f32.gmra.mrb[0].mxu0 %v970
        %v1196 = vpop.f32.mrb[0].mxu0
        %v1197 = vadd.f32 %v1059, %v1196
        %v1198 = vpop.f32.mrb[0].mxu0
        %v1199 = vadd.f32 %v1063, %v1198
        %1200 = vmatprep.mubr.f32.mxu0 %v973
        %1201 = vmatmul.mubr.f32.gmra.mrb[0].mxu0 %v972
        %v1202 = vpop.f32.mrb[0].mxu0
        %v1203 = vadd.f32 %v1059, %v1202
        %v1204 = vpop.f32.mrb[0].mxu0
        %v1205 = vadd.f32 %v1063, %v1204
        %1206 = vmatprep.mubr.f32.mxu0 %v975
        %1207 = vmatmul.mubr.f32.gmra.mrb[0].mxu0 %v974
        %v1208 = vpop.f32.mrb[0].mxu0
        %v1209 = vadd.f32 %v1059, %v1208
        %v1210 = vpop.f32.mrb[0].mxu0
        %v1211 = vadd.f32 %v1063, %v1210
        %1212 = vmatprep.mubr.f32.mxu0 %v977
        %1213 = vmatmul.mubr.f32.gmra.mrb[0].mxu0 %v976
        %v1214 = vpop.f32.mrb[0].mxu0
        %v1215 = vadd.f32 %v1059, %v1214
        %v1216 = vpop.f32.mrb[0].mxu0
        %v1217 = vadd.f32 %v1063, %v1216
        %1218 = vmatprep.mubr.f32.mxu0 %v979
        %1219 = vmatmul.mubr.f32.gmra.mrb[0].mxu0 %v978
        %v1220 = vpop.f32.mrb[0].mxu0
        %v1221 = vadd.f32 %v1059, %v1220
        %v1222 = vpop.f32.mrb[0].mxu0
        %v1223 = vadd.f32 %v1063, %v1222
        %1224 = vdwg.mxu0
        %v1225 = vadd.f32 %v1131, %v1133
        %1226 = vadd.xlane.f32.xlu0 %v1225
        %v1227 = vpop.xlane.xlu0 %1226
        %v1228 = vadd.f32 %v1137, %v1139
        %1229 = vadd.xlane.f32.xlu0 %v1228
        %v1230 = vpop.xlane.xlu0 %1229
        %v1231 = vadd.f32 %v1143, %v1145
        %1232 = vadd.xlane.f32.xlu0 %v1231
        %v1233 = vpop.xlane.xlu0 %1232
        %v1234 = vadd.f32 %v1149, %v1151
        %1235 = vadd.xlane.f32.xlu0 %v1234
        %v1236 = vpop.xlane.xlu0 %1235
        %v1237 = vadd.f32 %v1155, %v1157
        %1238 = vadd.xlane.f32.xlu0 %v1237
        %v1239 = vpop.xlane.xlu0 %1238
        %v1240 = vadd.f32 %v1161, %v1163
        %1241 = vadd.xlane.f32.xlu0 %v1240
        %v1242 = vpop.xlane.xlu0 %1241
        %v1243 = vadd.f32 %v1167, %v1169
        %1244 = vadd.xlane.f32.xlu0 %v1243
        %v1245 = vpop.xlane.xlu0 %1244
        %v1246 = vadd.f32 %v1173, %v1175
        %1247 = vadd.xlane.f32.xlu0 %v1246
        %v1248 = vpop.xlane.xlu0 %1247
        %v1249 = vadd.f32 %v1179, %v1181
        %1250 = vadd.xlane.f32.xlu0 %v1249
        %v1251 = vpop.xlane.xlu0 %1250
        %v1252 = vadd.f32 %v1185, %v1187
        %1253 = vadd.xlane.f32.xlu0 %v1252
        %v1254 = vpop.xlane.xlu0 %1253
        %v1255 = vadd.f32 %v1191, %v1193
        %1256 = vadd.xlane.f32.xlu0 %v1255
        %v1257 = vpop.xlane.xlu0 %1256
        %v1258 = vadd.f32 %v1197, %v1199
        %1259 = vadd.xlane.f32.xlu0 %v1258
        %v1260 = vpop.xlane.xlu0 %1259
        %v1261 = vadd.f32 %v1203, %v1205
        %1262 = vadd.xlane.f32.xlu0 %v1261
        %v1263 = vpop.xlane.xlu0 %1262
        %v1264 = vadd.f32 %v1209, %v1211
        %1265 = vadd.xlane.f32.xlu0 %v1264
        %v1266 = vpop.xlane.xlu0 %1265
        %v1267 = vadd.f32 %v1215, %v1217
        %1268 = vadd.xlane.f32.xlu0 %v1267
        %v1269 = vpop.xlane.xlu0 %1268
        %v1270 = vadd.f32 %v1221, %v1223
        %1271 = vadd.xlane.f32.xlu0 %v1270
        %v1272 = vpop.xlane.xlu0 %1271
        %v1273 = vmul.f32 %v1227, 0.00390625
        %v1274 = vmul.f32 %v1230, 0.00390625
        %v1275 = vmul.f32 %v1233, 0.00390625
        %v1276 = vmul.f32 %v1236, 0.00390625
        %v1277 = vmul.f32 %v1239, 0.00390625
        %v1278 = vmul.f32 %v1242, 0.00390625
        %v1279 = vmul.f32 %v1245, 0.00390625
        %v1280 = vmul.f32 %v1248, 0.00390625
        %v1281 = vmul.f32 %v1251, 0.00390625
        %v1282 = vmul.f32 %v1254, 0.00390625
        %v1283 = vmul.f32 %v1257, 0.00390625
        %v1284 = vmul.f32 %v1260, 0.00390625
        %v1285 = vmul.f32 %v1263, 0.00390625
        %v1286 = vmul.f32 %v1266, 0.00390625
        %v1287 = vmul.f32 %v1269, 0.00390625
        %v1288 = vmul.f32 %v1272, 0.00390625
        %v1289 = vsub.f32 %v1131, %v1273
        %v1290 = vsub.f32 %v1133, %v1273
        %v1291 = vsub.f32 %v1137, %v1274
        %v1292 = vsub.f32 %v1139, %v1274
        %v1293 = vsub.f32 %v1143, %v1275
        %v1294 = vsub.f32 %v1145, %v1275
        %v1295 = vsub.f32 %v1149, %v1276
        %v1296 = vsub.f32 %v1151, %v1276
        %v1297 = vsub.f32 %v1155, %v1277
        %v1298 = vsub.f32 %v1157, %v1277
        %v1299 = vsub.f32 %v1161, %v1278
        %v1300 = vsub.f32 %v1163, %v1278
        %v1301 = vsub.f32 %v1167, %v1279
        %v1302 = vsub.f32 %v1169, %v1279
        %v1303 = vsub.f32 %v1173, %v1280
        %v1304 = vsub.f32 %v1175, %v1280
        %v1305 = vsub.f32 %v1179, %v1281
        %v1306 = vsub.f32 %v1181, %v1281
        %v1307 = vsub.f32 %v1185, %v1282
        %v1308 = vsub.f32 %v1187, %v1282
        %v1309 = vsub.f32 %v1191, %v1283
        %v1310 = vsub.f32 %v1193, %v1283
        %v1311 = vsub.f32 %v1197, %v1284
        %v1312 = vsub.f32 %v1199, %v1284
        %v1313 = vsub.f32 %v1203, %v1285
        %v1314 = vsub.f32 %v1205, %v1285
        %v1315 = vsub.f32 %v1209, %v1286
        %v1316 = vsub.f32 %v1211, %v1286
        %v1317 = vsub.f32 %v1215, %v1287
        %v1318 = vsub.f32 %v1217, %v1287
        %v1319 = vsub.f32 %v1221, %v1288
        %v1320 = vsub.f32 %v1223, %v1288
        %v1321 = vmul.f32 %v1289, %v1289
        %v1322 = vmul.f32 %v1290, %v1290
        %v1323 = vmul.f32 %v1291, %v1291
        %v1324 = vmul.f32 %v1292, %v1292
        %v1325 = vmul.f32 %v1293, %v1293
        %v1326 = vmul.f32 %v1294, %v1294
        %v1327 = vmul.f32 %v1295, %v1295
        %v1328 = vmul.f32 %v1296, %v1296
        %v1329 = vmul.f32 %v1297, %v1297
        %v1330 = vmul.f32 %v1298, %v1298
        %v1331 = vmul.f32 %v1299, %v1299
        %v1332 = vmul.f32 %v1300, %v1300
        %v1333 = vmul.f32 %v1301, %v1301
        %v1334 = vmul.f32 %v1302, %v1302
        %v1335 = vmul.f32 %v1303, %v1303
        %v1336 = vmul.f32 %v1304, %v1304
        %v1337 = vmul.f32 %v1305, %v1305
        %v1338 = vmul.f32 %v1306, %v1306
        %v1339 = vmul.f32 %v1307, %v1307
        %v1340 = vmul.f32 %v1308, %v1308
        %v1341 = vmul.f32 %v1309, %v1309
        %v1342 = vmul.f32 %v1310, %v1310
        %v1343 = vmul.f32 %v1311, %v1311
        %v1344 = vmul.f32 %v1312, %v1312
        %v1345 = vmul.f32 %v1313, %v1313
        %v1346 = vmul.f32 %v1314, %v1314
        %v1347 = vmul.f32 %v1315, %v1315
        %v1348 = vmul.f32 %v1316, %v1316
        %v1349 = vmul.f32 %v1317, %v1317
        %v1350 = vmul.f32 %v1318, %v1318
        %v1351 = vmul.f32 %v1319, %v1319
        %v1352 = vmul.f32 %v1320, %v1320
        %v1353 = vadd.f32 %v1321, %v1322
        %1354 = vadd.xlane.f32.xlu0 %v1353
        %v1355 = vpop.xlane.xlu0 %1354
        %v1356 = vadd.f32 %v1323, %v1324
        %1357 = vadd.xlane.f32.xlu0 %v1356
        %v1358 = vpop.xlane.xlu0 %1357
        %v1359 = vadd.f32 %v1325, %v1326
        %1360 = vadd.xlane.f32.xlu0 %v1359
        %v1361 = vpop.xlane.xlu0 %1360
        %v1362 = vadd.f32 %v1327, %v1328
        %1363 = vadd.xlane.f32.xlu0 %v1362
        %v1364 = vpop.xlane.xlu0 %1363
        %v1365 = vadd.f32 %v1329, %v1330
        %1366 = vadd.xlane.f32.xlu0 %v1365
        %v1367 = vpop.xlane.xlu0 %1366
        %v1368 = vadd.f32 %v1331, %v1332
        %1369 = vadd.xlane.f32.xlu0 %v1368
        %v1370 = vpop.xlane.xlu0 %1369
        %v1371 = vadd.f32 %v1333, %v1334
        %1372 = vadd.xlane.f32.xlu0 %v1371
        %v1373 = vpop.xlane.xlu0 %1372
        %v1374 = vadd.f32 %v1335, %v1336
        %1375 = vadd.xlane.f32.xlu0 %v1374
        %v1376 = vpop.xlane.xlu0 %1375
        %v1377 = vadd.f32 %v1337, %v1338
        %1378 = vadd.xlane.f32.xlu0 %v1377
        %v1379 = vpop.xlane.xlu0 %1378
        %v1380 = vadd.f32 %v1339, %v1340
        %1381 = vadd.xlane.f32.xlu0 %v1380
        %v1382 = vpop.xlane.xlu0 %1381
        %v1383 = vadd.f32 %v1341, %v1342
        %1384 = vadd.xlane.f32.xlu0 %v1383
        %v1385 = vpop.xlane.xlu0 %1384
        %v1386 = vadd.f32 %v1343, %v1344
        %1387 = vadd.xlane.f32.xlu0 %v1386
        %v1388 = vpop.xlane.xlu0 %1387
        %v1389 = vadd.f32 %v1345, %v1346
        %1390 = vadd.xlane.f32.xlu0 %v1389
        %v1391 = vpop.xlane.xlu0 %1390
        %v1392 = vadd.f32 %v1347, %v1348
        %1393 = vadd.xlane.f32.xlu0 %v1392
        %v1394 = vpop.xlane.xlu0 %1393
        %v1395 = vadd.f32 %v1349, %v1350
        %1396 = vadd.xlane.f32.xlu0 %v1395
        %v1397 = vpop.xlane.xlu0 %1396
        %v1398 = vadd.f32 %v1351, %v1352
        %1399 = vadd.xlane.f32.xlu0 %v1398
        %v1400 = vpop.xlane.xlu0 %1399
        %v1401 = vmul.f32 %v1355, 0.00390625
        %v1402 = vmul.f32 %v1358, 0.00390625
        %v1403 = vmul.f32 %v1361, 0.00390625
        %v1404 = vmul.f32 %v1364, 0.00390625
        %v1405 = vmul.f32 %v1367, 0.00390625
        %v1406 = vmul.f32 %v1370, 0.00390625
        %v1407 = vmul.f32 %v1373, 0.00390625
        %v1408 = vmul.f32 %v1376, 0.00390625
        %v1409 = vmul.f32 %v1379, 0.00390625
        %v1410 = vmul.f32 %v1382, 0.00390625
        %v1411 = vmul.f32 %v1385, 0.00390625
        %v1412 = vmul.f32 %v1388, 0.00390625
        %v1413 = vmul.f32 %v1391, 0.00390625
        %v1414 = vmul.f32 %v1394, 0.00390625
        %v1415 = vmul.f32 %v1397, 0.00390625
        %v1416 = vmul.f32 %v1400, 0.00390625
        %v1417 = vadd.f32 %v1401, 1e-05
        %v1418 = vadd.f32 %v1402, 1e-05
        %v1419 = vadd.f32 %v1403, 1e-05
        %v1420 = vadd.f32 %v1404, 1e-05
        %v1421 = vadd.f32 %v1405, 1e-05
        %v1422 = vadd.f32 %v1406, 1e-05
        %v1423 = vadd.f32 %v1407, 1e-05
        %v1424 = vadd.f32 %v1408, 1e-05
        %v1425 = vadd.f32 %v1409, 1e-05
        %v1426 = vadd.f32 %v1410, 1e-05
        %v1427 = vadd.f32 %v1411, 1e-05
        %v1428 = vadd.f32 %v1412, 1e-05
        %v1429 = vadd.f32 %v1413, 1e-05
        %v1430 = vadd.f32 %v1414, 1e-05
        %v1431 = vadd.f32 %v1415, 1e-05
        %v1432 = vadd.f32 %v1416, 1e-05
        %v1433 = vrsqrt.pop %v1417
        %v1434 = vrsqrt.pop %v1418
        %v1435 = vrsqrt.pop %v1419
        %v1436 = vrsqrt.pop %v1420
        %v1437 = vrsqrt.pop %v1421
        %v1438 = vrsqrt.pop %v1422
        %v1439 = vrsqrt.pop %v1423
        %v1440 = vrsqrt.pop %v1424
        %v1441 = vrsqrt.pop %v1425
        %v1442 = vrsqrt.pop %v1426
        %v1443 = vrsqrt.pop %v1427
        %v1444 = vrsqrt.pop %v1428
        %v1445 = vrsqrt.pop %v1429
        %v1446 = vrsqrt.pop %v1430
        %v1447 = vrsqrt.pop %v1431
        %v1448 = vrsqrt.pop %v1432
        %v1449 = vmul.f32 %v1289, %v1433
        %v1450 = vmul.f32 %v1290, %v1433
        %v1451 = vmul.f32 %v1291, %v1434
        %v1452 = vmul.f32 %v1292, %v1434
        %v1453 = vmul.f32 %v1293, %v1435
        %v1454 = vmul.f32 %v1294, %v1435
        %v1455 = vmul.f32 %v1295, %v1436
        %v1456 = vmul.f32 %v1296, %v1436
        %v1457 = vmul.f32 %v1297, %v1437
        %v1458 = vmul.f32 %v1298, %v1437
        %v1459 = vmul.f32 %v1299, %v1438
        %v1460 = vmul.f32 %v1300, %v1438
        %v1461 = vmul.f32 %v1301, %v1439
        %v1462 = vmul.f32 %v1302, %v1439
        %v1463 = vmul.f32 %v1303, %v1440
        %v1464 = vmul.f32 %v1304, %v1440
        %v1465 = vmul.f32 %v1305, %v1441
        %v1466 = vmul.f32 %v1306, %v1441
        %v1467 = vmul.f32 %v1307, %v1442
        %v1468 = vmul.f32 %v1308, %v1442
        %v1469 = vmul.f32 %v1309, %v1443
        %v1470 = vmul.f32 %v1310, %v1443
        %v1471 = vmul.f32 %v1311, %v1444
        %v1472 = vmul.f32 %v1312, %v1444
        %v1473 = vmul.f32 %v1313, %v1445
        %v1474 = vmul.f32 %v1314, %v1445
        %v1475 = vmul.f32 %v1315, %v1446
        %v1476 = vmul.f32 %v1316, %v1446
        %v1477 = vmul.f32 %v1317, %v1447
        %v1478 = vmul.f32 %v1318, %v1447
        %v1479 = vmul.f32 %v1319, %v1448
        %v1480 = vmul.f32 %v1320, %v1448
        %v1481 = vlaneseq
        %v1482 = vshrl.u32 %v1481, 7
        %v1483 = vsub.s32 1, %v1482
        %v1484 = vrot.slane %v980, %v1483
        %v1485 = vlaneseq
        %v1486 = vshrl.u32 %v1485, 7
        %v1487 = vsub.s32 5, %v1486
        %v1488 = vrot.slane %v980, %v1487
        %v1491 = vlaneseq
        %v1492 = vshrl.u32 %v1491, 7
        %v1493 = vsub.s32 1, %v1492
        %v1494 = vrot.slane %v1484, %v1493
        %v1495 = vlaneseq
        %v1496 = vshrl.u32 %v1495, 7
        %v1497 = vsub.s32 1, %v1496
        %v1498 = vrot.slane %v1488, %v1497
        %v1499 = vmul.f32 %v1449, %v1494
        %v1500 = vmul.f32 %v1450, %v1498
        %v1501 = vmul.f32 %v1451, %v1494
        %v1502 = vmul.f32 %v1452, %v1498
        %v1503 = vmul.f32 %v1453, %v1494
        %v1504 = vmul.f32 %v1454, %v1498
        %v1505 = vmul.f32 %v1455, %v1494
        %v1506 = vmul.f32 %v1456, %v1498
        %v1507 = vmul.f32 %v1457, %v1494
        %v1508 = vmul.f32 %v1458, %v1498
        %v1509 = vmul.f32 %v1459, %v1494
        %v1510 = vmul.f32 %v1460, %v1498
        %v1511 = vmul.f32 %v1461, %v1494
        %v1512 = vmul.f32 %v1462, %v1498
        %v1513 = vmul.f32 %v1463, %v1494
        %v1514 = vmul.f32 %v1464, %v1498
        %v1515 = vmul.f32 %v1465, %v1494
        %v1516 = vmul.f32 %v1466, %v1498
        %v1517 = vmul.f32 %v1467, %v1494
        %v1518 = vmul.f32 %v1468, %v1498
        %v1519 = vmul.f32 %v1469, %v1494
        %v1520 = vmul.f32 %v1470, %v1498
        %v1521 = vmul.f32 %v1471, %v1494
        %v1522 = vmul.f32 %v1472, %v1498
        %v1523 = vmul.f32 %v1473, %v1494
        %v1524 = vmul.f32 %v1474, %v1498
        %v1525 = vmul.f32 %v1475, %v1494
        %v1526 = vmul.f32 %v1476, %v1498
        %v1527 = vmul.f32 %v1477, %v1494
        %v1528 = vmul.f32 %v1478, %v1498
        %v1529 = vmul.f32 %v1479, %v1494
        %v1530 = vmul.f32 %v1480, %v1498
        %v1531 = vlaneseq
        %v1532 = vshrl.u32 %v1531, 7
        %v1533 = vsub.s32 2, %v1532
        %v1534 = vrot.slane %v980, %v1533
        %v1535 = vlaneseq
        %v1536 = vshrl.u32 %v1535, 7
        %v1537 = vsub.s32 6, %v1536
        %v1538 = vrot.slane %v980, %v1537
        %v1541 = vlaneseq
        %v1542 = vshrl.u32 %v1541, 7
        %v1543 = vsub.s32 2, %v1542
        %v1544 = vrot.slane %v1534, %v1543
        %v1545 = vlaneseq
        %v1546 = vshrl.u32 %v1545, 7
        %v1547 = vsub.s32 2, %v1546
        %v1548 = vrot.slane %v1538, %v1547
        %v1549 = vadd.f32 %v1499, %v1544
        %v1550 = vadd.f32 %v1500, %v1548
        %v1551 = vadd.f32 %v1501, %v1544
        %v1552 = vadd.f32 %v1502, %v1548
        %v1553 = vadd.f32 %v1503, %v1544
        %v1554 = vadd.f32 %v1504, %v1548
        %v1555 = vadd.f32 %v1505, %v1544
        %v1556 = vadd.f32 %v1506, %v1548
        %v1557 = vadd.f32 %v1507, %v1544
        %v1558 = vadd.f32 %v1508, %v1548
        %v1559 = vadd.f32 %v1509, %v1544
        %v1560 = vadd.f32 %v1510, %v1548
        %v1561 = vadd.f32 %v1511, %v1544
        %v1562 = vadd.f32 %v1512, %v1548
        %v1563 = vadd.f32 %v1513, %v1544
        %v1564 = vadd.f32 %v1514, %v1548
        %v1565 = vadd.f32 %v1515, %v1544
        %v1566 = vadd.f32 %v1516, %v1548
        %v1567 = vadd.f32 %v1517, %v1544
        %v1568 = vadd.f32 %v1518, %v1548
        %v1569 = vadd.f32 %v1519, %v1544
        %v1570 = vadd.f32 %v1520, %v1548
        %v1571 = vadd.f32 %v1521, %v1544
        %v1572 = vadd.f32 %v1522, %v1548
        %v1573 = vadd.f32 %v1523, %v1544
        %v1574 = vadd.f32 %v1524, %v1548
        %v1575 = vadd.f32 %v1525, %v1544
        %v1576 = vadd.f32 %v1526, %v1548
        %v1577 = vadd.f32 %v1527, %v1544
        %v1578 = vadd.f32 %v1528, %v1548
        %v1579 = vadd.f32 %v1529, %v1544
        %v1580 = vadd.f32 %v1530, %v1548
        %v1581 = vmax.f32 %v1549, 0.0
        %v1582 = vmax.f32 %v1550, 0.0
        %v1583 = vmax.f32 %v1551, 0.0
        %v1584 = vmax.f32 %v1552, 0.0
        %v1585 = vmax.f32 %v1553, 0.0
        %v1586 = vmax.f32 %v1554, 0.0
        %v1587 = vmax.f32 %v1555, 0.0
        %v1588 = vmax.f32 %v1556, 0.0
        %v1589 = vmax.f32 %v1557, 0.0
        %v1590 = vmax.f32 %v1558, 0.0
        %v1591 = vmax.f32 %v1559, 0.0
        %v1592 = vmax.f32 %v1560, 0.0
        %v1593 = vmax.f32 %v1561, 0.0
        %v1594 = vmax.f32 %v1562, 0.0
        %v1595 = vmax.f32 %v1563, 0.0
        %v1596 = vmax.f32 %v1564, 0.0
        %v1597 = vmax.f32 %v1565, 0.0
        %v1598 = vmax.f32 %v1566, 0.0
        %v1599 = vmax.f32 %v1567, 0.0
        %v1600 = vmax.f32 %v1568, 0.0
        %v1601 = vmax.f32 %v1569, 0.0
        %v1602 = vmax.f32 %v1570, 0.0
        %v1603 = vmax.f32 %v1571, 0.0
        %v1604 = vmax.f32 %v1572, 0.0
        %v1605 = vmax.f32 %v1573, 0.0
        %v1606 = vmax.f32 %v1574, 0.0
        %v1607 = vmax.f32 %v1575, 0.0
        %v1608 = vmax.f32 %v1576, 0.0
        %v1609 = vmax.f32 %v1577, 0.0
        %v1610 = vmax.f32 %v1578, 0.0
        %v1611 = vmax.f32 %v1579, 0.0
        %v1612 = vmax.f32 %v1580, 0.0
        %v1613 = vld [vmem:[%s6] sm:$0x7]
        %v1614 = vld [vmem:[%s5] sm:$0xff]
        %v1615 = vld [vmem:[%s5 + $0x8] sm:$0xff]
        %v1616 = vld [vmem:[%s5 + $0x10] sm:$0xff]
        %v1617 = vld [vmem:[%s5 + $0x18] sm:$0xff]
        %v1618 = vld [vmem:[%s5 + $0x20] sm:$0xff]
        %v1619 = vld [vmem:[%s5 + $0x28] sm:$0xff]
        %v1620 = vld [vmem:[%s5 + $0x30] sm:$0xff]
        %v1621 = vld [vmem:[%s5 + $0x38] sm:$0xff]
        %v1622 = vld [vmem:[%s5 + $0x40] sm:$0xff]
        %v1623 = vld [vmem:[%s5 + $0x48] sm:$0xff]
        %v1624 = vld [vmem:[%s5 + $0x50] sm:$0xff]
        %v1625 = vld [vmem:[%s5 + $0x58] sm:$0xff]
        %v1626 = vld [vmem:[%s5 + $0x60] sm:$0xff]
        %v1627 = vld [vmem:[%s5 + $0x68] sm:$0xff]
        %v1628 = vld [vmem:[%s5 + $0x70] sm:$0xff]
        %v1629 = vld [vmem:[%s5 + $0x78] sm:$0xff]
        %v1630 = vld [vmem:[%s5 + $0x80] sm:$0xff]
        %v1631 = vld [vmem:[%s5 + $0x88] sm:$0xff]
        %v1632 = vld [vmem:[%s5 + $0x90] sm:$0xff]
        %v1633 = vld [vmem:[%s5 + $0x98] sm:$0xff]
        %v1634 = vld [vmem:[%s5 + $0xa0] sm:$0xff]
        %v1635 = vld [vmem:[%s5 + $0xa8] sm:$0xff]
        %v1636 = vld [vmem:[%s5 + $0xb0] sm:$0xff]
        %v1637 = vld [vmem:[%s5 + $0xb8] sm:$0xff]
        %v1638 = vld [vmem:[%s5 + $0xc0] sm:$0xff]
        %v1639 = vld [vmem:[%s5 + $0xc8] sm:$0xff]
        %v1640 = vld [vmem:[%s5 + $0xd0] sm:$0xff]
        %v1641 = vld [vmem:[%s5 + $0xd8] sm:$0xff]
        %v1642 = vld [vmem:[%s5 + $0xe0] sm:$0xff]
        %v1643 = vld [vmem:[%s5 + $0xe8] sm:$0xff]
        %v1644 = vld [vmem:[%s5 + $0xf0] sm:$0xff]
        %v1645 = vld [vmem:[%s5 + $0xf8] sm:$0xff]
        %v1646 = vlaneseq
        %v1647 = vshrl.u32 %v1646, 7
        %v1648 = vsub.s32 0, %v1647
        %v1649 = vrot.slane %v1613, %v1648
        %1650 = vmatprep.subr.mxu0 0.0
        %1651 = vmatpush1.msra.mxu0 %v1614
        %1652 = vmatprep.subr.mxu0 0.0
        %1653 = vmatpush1.msra.mxu0 %v1615
        %1654 = vmatprep.subr.mxu0 0.0
        %1655 = vmatpush1.msra.mxu0 %v1616
        %1656 = vmatprep.subr.mxu0 0.0
        %1657 = vmatpush1.msra.mxu0 %v1617
        %1658 = vmatprep.subr.mxu0 0.0
        %1659 = vmatpush1.msra.mxu0 %v1618
        %1660 = vmatprep.subr.mxu0 0.0
        %1661 = vmatpush1.msra.mxu0 %v1619
        %1662 = vmatprep.subr.mxu0 0.0
        %1663 = vmatpush1.msra.mxu0 %v1620
        %1664 = vmatprep.subr.mxu0 0.0
        %1665 = vmatpush1.msra.mxu0 %v1621
        %1666 = vmatprep.subr.mxu0 0.0
        %1667 = vmatpush1.msra.mxu0 %v1622
        %1668 = vmatprep.subr.mxu0 0.0
        %1669 = vmatpush1.msra.mxu0 %v1623
        %1670 = vmatprep.subr.mxu0 0.0
        %1671 = vmatpush1.msra.mxu0 %v1624
        %1672 = vmatprep.subr.mxu0 0.0
        %1673 = vmatpush1.msra.mxu0 %v1625
        %1674 = vmatprep.subr.mxu0 0.0
        %1675 = vmatpush1.msra.mxu0 %v1626
        %1676 = vmatprep.subr.mxu0 0.0
        %1677 = vmatpush1.msra.mxu0 %v1627
        %1678 = vmatprep.subr.mxu0 0.0
        %1679 = vmatpush1.msra.mxu0 %v1628
        %1680 = vmatprep.subr.mxu0 0.0
        %1681 = vmatpush1.msra.mxu0 %v1629
        %1682 = vmatprep.subr.mxu0 0.0
        %1683 = vmatpush1.msra.mxu0 %v1630
        %1684 = vmatprep.subr.mxu0 0.0
        %1685 = vmatpush1.msra.mxu0 %v1631
        %1686 = vmatprep.subr.mxu0 0.0
        %1687 = vmatpush1.msra.mxu0 %v1632
        %1688 = vmatprep.subr.mxu0 0.0
        %1689 = vmatpush1.msra.mxu0 %v1633
        %1690 = vmatprep.subr.mxu0 0.0
        %1691 = vmatpush1.msra.mxu0 %v1634
        %1692 = vmatprep.subr.mxu0 0.0
        %1693 = vmatpush1.msra.mxu0 %v1635
        %1694 = vmatprep.subr.mxu0 0.0
        %1695 = vmatpush1.msra.mxu0 %v1636
        %1696 = vmatprep.subr.mxu0 0.0
        %1697 = vmatpush1.msra.mxu0 %v1637
        %1698 = vmatprep.subr.mxu0 0.0
        %1699 = vmatpush1.msra.mxu0 %v1638
        %1700 = vmatprep.subr.mxu0 0.0
        %1701 = vmatpush1.msra.mxu0 %v1639
        %1702 = vmatprep.subr.mxu0 0.0
        %1703 = vmatpush1.msra.mxu0 %v1640
        %1704 = vmatprep.subr.mxu0 0.0
        %1705 = vmatpush1.msra.mxu0 %v1641
        %1706 = vmatprep.subr.mxu0 0.0
        %1707 = vmatpush1.msra.mxu0 %v1642
        %1708 = vmatprep.subr.mxu0 0.0
        %1709 = vmatpush1.msra.mxu0 %v1643
        %1710 = vmatprep.subr.mxu0 0.0
        %1711 = vmatpush1.msra.mxu0 %v1644
        %1712 = vmatprep.subr.mxu0 0.0
        %1713 = vmatpush1.msra.mxu0 %v1645
        %1714 = vmatprep.mubr.f32.mxu0 %v1582
        %1715 = vmatmul.mubr.f32.gmra.mrb[0].mxu0 %v1581
        %v1716 = vpop.f32.mrb[0].mxu0
        %v1717 = vadd.f32 %v1649, %v1716
        %v1718 = vpop.f32.mrb[0].mxu0
        %1719 = vmatprep.mubr.f32.mxu0 %v1584
        %1720 = vmatmul.mubr.f32.gmra.mrb[0].mxu0 %v1583
        %v1721 = vpop.f32.mrb[0].mxu0
        %v1722 = vadd.f32 %v1649, %v1721
        %v1723 = vpop.f32.mrb[0].mxu0
        %1724 = vmatprep.mubr.f32.mxu0 %v1586
        %1725 = vmatmul.mubr.f32.gmra.mrb[0].mxu0 %v1585
        %v1726 = vpop.f32.mrb[0].mxu0
        %v1727 = vadd.f32 %v1649, %v1726
        %v1728 = vpop.f32.mrb[0].mxu0
        %1729 = vmatprep.mubr.f32.mxu0 %v1588
        %1730 = vmatmul.mubr.f32.gmra.mrb[0].mxu0 %v1587
        %v1731 = vpop.f32.mrb[0].mxu0
        %v1732 = vadd.f32 %v1649, %v1731
        %v1733 = vpop.f32.mrb[0].mxu0
        %1734 = vmatprep.mubr.f32.mxu0 %v1590
        %1735 = vmatmul.mubr.f32.gmra.mrb[0].mxu0 %v1589
        %v1736 = vpop.f32.mrb[0].mxu0
        %v1737 = vadd.f32 %v1649, %v1736
        %v1738 = vpop.f32.mrb[0].mxu0
        %1739 = vmatprep.mubr.f32.mxu0 %v1592
        %1740 = vmatmul.mubr.f32.gmra.mrb[0].mxu0 %v1591
        %v1741 = vpop.f32.mrb[0].mxu0
        %v1742 = vadd.f32 %v1649, %v1741
        %v1743 = vpop.f32.mrb[0].mxu0
        %1744 = vmatprep.mubr.f32.mxu0 %v1594
        %1745 = vmatmul.mubr.f32.gmra.mrb[0].mxu0 %v1593
        %v1746 = vpop.f32.mrb[0].mxu0
        %v1747 = vadd.f32 %v1649, %v1746
        %v1748 = vpop.f32.mrb[0].mxu0
        %1749 = vmatprep.mubr.f32.mxu0 %v1596
        %1750 = vmatmul.mubr.f32.gmra.mrb[0].mxu0 %v1595
        %v1751 = vpop.f32.mrb[0].mxu0
        %v1752 = vadd.f32 %v1649, %v1751
        %v1753 = vpop.f32.mrb[0].mxu0
        %1754 = vmatprep.mubr.f32.mxu0 %v1598
        %1755 = vmatmul.mubr.f32.gmra.mrb[0].mxu0 %v1597
        %v1756 = vpop.f32.mrb[0].mxu0
        %v1757 = vadd.f32 %v1649, %v1756
        %v1758 = vpop.f32.mrb[0].mxu0
        %1759 = vmatprep.mubr.f32.mxu0 %v1600
        %1760 = vmatmul.mubr.f32.gmra.mrb[0].mxu0 %v1599
        %v1761 = vpop.f32.mrb[0].mxu0
        %v1762 = vadd.f32 %v1649, %v1761
        %v1763 = vpop.f32.mrb[0].mxu0
        %1764 = vmatprep.mubr.f32.mxu0 %v1602
        %1765 = vmatmul.mubr.f32.gmra.mrb[0].mxu0 %v1601
        %v1766 = vpop.f32.mrb[0].mxu0
        %v1767 = vadd.f32 %v1649, %v1766
        %v1768 = vpop.f32.mrb[0].mxu0
        %1769 = vmatprep.mubr.f32.mxu0 %v1604
        %1770 = vmatmul.mubr.f32.gmra.mrb[0].mxu0 %v1603
        %v1771 = vpop.f32.mrb[0].mxu0
        %v1772 = vadd.f32 %v1649, %v1771
        %v1773 = vpop.f32.mrb[0].mxu0
        %1774 = vmatprep.mubr.f32.mxu0 %v1606
        %1775 = vmatmul.mubr.f32.gmra.mrb[0].mxu0 %v1605
        %v1776 = vpop.f32.mrb[0].mxu0
        %v1777 = vadd.f32 %v1649, %v1776
        %v1778 = vpop.f32.mrb[0].mxu0
        %1779 = vmatprep.mubr.f32.mxu0 %v1608
        %1780 = vmatmul.mubr.f32.gmra.mrb[0].mxu0 %v1607
        %v1781 = vpop.f32.mrb[0].mxu0
        %v1782 = vadd.f32 %v1649, %v1781
        %v1783 = vpop.f32.mrb[0].mxu0
        %1784 = vmatprep.mubr.f32.mxu0 %v1610
        %1785 = vmatmul.mubr.f32.gmra.mrb[0].mxu0 %v1609
        %v1786 = vpop.f32.mrb[0].mxu0
        %v1787 = vadd.f32 %v1649, %v1786
        %v1788 = vpop.f32.mrb[0].mxu0
        %1789 = vmatprep.mubr.f32.mxu0 %v1612
        %1790 = vmatmul.mubr.f32.gmra.mrb[0].mxu0 %v1611
        %v1791 = vpop.f32.mrb[0].mxu0
        %v1792 = vadd.f32 %v1649, %v1791
        %v1793 = vpop.f32.mrb[0].mxu0
        %1794 = vdwg.mxu0
        %1795 = vadd.xlane.f32.xlu0 %v1717
        %v1796 = vpop.xlane.xlu0 %1795
        %1797 = vadd.xlane.f32.xlu0 %v1722
        %v1798 = vpop.xlane.xlu0 %1797
        %1799 = vadd.xlane.f32.xlu0 %v1727
        %v1800 = vpop.xlane.xlu0 %1799
        %1801 = vadd.xlane.f32.xlu0 %v1732
        %v1802 = vpop.xlane.xlu0 %1801
        %1803 = vadd.xlane.f32.xlu0 %v1737
        %v1804 = vpop.xlane.xlu0 %1803
        %1805 = vadd.xlane.f32.xlu0 %v1742
        %v1806 = vpop.xlane.xlu0 %1805
        %1807 = vadd.xlane.f32.xlu0 %v1747
        %v1808 = vpop.xlane.xlu0 %1807
        %1809 = vadd.xlane.f32.xlu0 %v1752
        %v1810 = vpop.xlane.xlu0 %1809
        %1811 = vadd.xlane.f32.xlu0 %v1757
        %v1812 = vpop.xlane.xlu0 %1811
        %1813 = vadd.xlane.f32.xlu0 %v1762
        %v1814 = vpop.xlane.xlu0 %1813
        %1815 = vadd.xlane.f32.xlu0 %v1767
        %v1816 = vpop.xlane.xlu0 %1815
        %1817 = vadd.xlane.f32.xlu0 %v1772
        %v1818 = vpop.xlane.xlu0 %1817
        %1819 = vadd.xlane.f32.xlu0 %v1777
        %v1820 = vpop.xlane.xlu0 %1819
        %1821 = vadd.xlane.f32.xlu0 %v1782
        %v1822 = vpop.xlane.xlu0 %1821
        %1823 = vadd.xlane.f32.xlu0 %v1787
        %v1824 = vpop.xlane.xlu0 %1823
        %1825 = vadd.xlane.f32.xlu0 %v1792
        %v1826 = vpop.xlane.xlu0 %1825
        %v1827 = vmul.f32 %v1796, 0.010416667
        %v1828 = vmul.f32 %v1798, 0.010416667
        %v1829 = vmul.f32 %v1800, 0.010416667
        %v1830 = vmul.f32 %v1802, 0.010416667
        %v1831 = vmul.f32 %v1804, 0.010416667
        %v1832 = vmul.f32 %v1806, 0.010416667
        %v1833 = vmul.f32 %v1808, 0.010416667
        %v1834 = vmul.f32 %v1810, 0.010416667
        %v1835 = vmul.f32 %v1812, 0.010416667
        %v1836 = vmul.f32 %v1814, 0.010416667
        %v1837 = vmul.f32 %v1816, 0.010416667
        %v1838 = vmul.f32 %v1818, 0.010416667
        %v1839 = vmul.f32 %v1820, 0.010416667
        %v1840 = vmul.f32 %v1822, 0.010416667
        %v1841 = vmul.f32 %v1824, 0.010416667
        %v1842 = vmul.f32 %v1826, 0.010416667
        %v1843 = vsub.f32 %v1717, %v1827
        %v1844 = vsub.f32 %v1722, %v1828
        %v1845 = vsub.f32 %v1727, %v1829
        %v1846 = vsub.f32 %v1732, %v1830
        %v1847 = vsub.f32 %v1737, %v1831
        %v1848 = vsub.f32 %v1742, %v1832
        %v1849 = vsub.f32 %v1747, %v1833
        %v1850 = vsub.f32 %v1752, %v1834
        %v1851 = vsub.f32 %v1757, %v1835
        %v1852 = vsub.f32 %v1762, %v1836
        %v1853 = vsub.f32 %v1767, %v1837
        %v1854 = vsub.f32 %v1772, %v1838
        %v1855 = vsub.f32 %v1777, %v1839
        %v1856 = vsub.f32 %v1782, %v1840
        %v1857 = vsub.f32 %v1787, %v1841
        %v1858 = vsub.f32 %v1792, %v1842
        %v1859 = vmul.f32 %v1843, %v1843
        %v1860 = vmul.f32 %v1844, %v1844
        %v1861 = vmul.f32 %v1845, %v1845
        %v1862 = vmul.f32 %v1846, %v1846
        %v1863 = vmul.f32 %v1847, %v1847
        %v1864 = vmul.f32 %v1848, %v1848
        %v1865 = vmul.f32 %v1849, %v1849
        %v1866 = vmul.f32 %v1850, %v1850
        %v1867 = vmul.f32 %v1851, %v1851
        %v1868 = vmul.f32 %v1852, %v1852
        %v1869 = vmul.f32 %v1853, %v1853
        %v1870 = vmul.f32 %v1854, %v1854
        %v1871 = vmul.f32 %v1855, %v1855
        %v1872 = vmul.f32 %v1856, %v1856
        %v1873 = vmul.f32 %v1857, %v1857
        %v1874 = vmul.f32 %v1858, %v1858
        %1875 = vadd.xlane.f32.xlu0 %v1859
        %v1876 = vpop.xlane.xlu0 %1875
        %1877 = vadd.xlane.f32.xlu0 %v1860
        %v1878 = vpop.xlane.xlu0 %1877
        %1879 = vadd.xlane.f32.xlu0 %v1861
        %v1880 = vpop.xlane.xlu0 %1879
        %1881 = vadd.xlane.f32.xlu0 %v1862
        %v1882 = vpop.xlane.xlu0 %1881
        %1883 = vadd.xlane.f32.xlu0 %v1863
        %v1884 = vpop.xlane.xlu0 %1883
        %1885 = vadd.xlane.f32.xlu0 %v1864
        %v1886 = vpop.xlane.xlu0 %1885
        %1887 = vadd.xlane.f32.xlu0 %v1865
        %v1888 = vpop.xlane.xlu0 %1887
        %1889 = vadd.xlane.f32.xlu0 %v1866
        %v1890 = vpop.xlane.xlu0 %1889
        %1891 = vadd.xlane.f32.xlu0 %v1867
        %v1892 = vpop.xlane.xlu0 %1891
        %1893 = vadd.xlane.f32.xlu0 %v1868
        %v1894 = vpop.xlane.xlu0 %1893
        %1895 = vadd.xlane.f32.xlu0 %v1869
        %v1896 = vpop.xlane.xlu0 %1895
        %1897 = vadd.xlane.f32.xlu0 %v1870
        %v1898 = vpop.xlane.xlu0 %1897
        %1899 = vadd.xlane.f32.xlu0 %v1871
        %v1900 = vpop.xlane.xlu0 %1899
        %1901 = vadd.xlane.f32.xlu0 %v1872
        %v1902 = vpop.xlane.xlu0 %1901
        %1903 = vadd.xlane.f32.xlu0 %v1873
        %v1904 = vpop.xlane.xlu0 %1903
        %1905 = vadd.xlane.f32.xlu0 %v1874
        %v1906 = vpop.xlane.xlu0 %1905
        %v1907 = vmul.f32 %v1827, %v1827
        %v1908 = vmul.f32 %v1828, %v1828
        %v1909 = vmul.f32 %v1829, %v1829
        %v1910 = vmul.f32 %v1830, %v1830
        %v1911 = vmul.f32 %v1831, %v1831
        %v1912 = vmul.f32 %v1832, %v1832
        %v1913 = vmul.f32 %v1833, %v1833
        %v1914 = vmul.f32 %v1834, %v1834
        %v1915 = vmul.f32 %v1835, %v1835
        %v1916 = vmul.f32 %v1836, %v1836
        %v1917 = vmul.f32 %v1837, %v1837
        %v1918 = vmul.f32 %v1838, %v1838
        %v1919 = vmul.f32 %v1839, %v1839
        %v1920 = vmul.f32 %v1840, %v1840
        %v1921 = vmul.f32 %v1841, %v1841
        %v1922 = vmul.f32 %v1842, %v1842
        %v1923 = vmul.f32 %v1907, 32.0
        %v1924 = vmul.f32 %v1908, 32.0
        %v1925 = vmul.f32 %v1909, 32.0
        %v1926 = vmul.f32 %v1910, 32.0
        %v1927 = vmul.f32 %v1911, 32.0
        %v1928 = vmul.f32 %v1912, 32.0
        %v1929 = vmul.f32 %v1913, 32.0
        %v1930 = vmul.f32 %v1914, 32.0
        %v1931 = vmul.f32 %v1915, 32.0
        %v1932 = vmul.f32 %v1916, 32.0
        %v1933 = vmul.f32 %v1917, 32.0
        %v1934 = vmul.f32 %v1918, 32.0
        %v1935 = vmul.f32 %v1919, 32.0
        %v1936 = vmul.f32 %v1920, 32.0
        %v1937 = vmul.f32 %v1921, 32.0
        %v1938 = vmul.f32 %v1922, 32.0
        %v1939 = vsub.f32 %v1876, %v1923
        %v1940 = vsub.f32 %v1878, %v1924
        %v1941 = vsub.f32 %v1880, %v1925
        %v1942 = vsub.f32 %v1882, %v1926
        %v1943 = vsub.f32 %v1884, %v1927
        %v1944 = vsub.f32 %v1886, %v1928
        %v1945 = vsub.f32 %v1888, %v1929
        %v1946 = vsub.f32 %v1890, %v1930
        %v1947 = vsub.f32 %v1892, %v1931
        %v1948 = vsub.f32 %v1894, %v1932
        %v1949 = vsub.f32 %v1896, %v1933
        %v1950 = vsub.f32 %v1898, %v1934
        %v1951 = vsub.f32 %v1900, %v1935
        %v1952 = vsub.f32 %v1902, %v1936
        %v1953 = vsub.f32 %v1904, %v1937
        %v1954 = vsub.f32 %v1906, %v1938
        %v1955 = vmul.f32 %v1939, 0.010416667
        %v1956 = vmul.f32 %v1940, 0.010416667
        %v1957 = vmul.f32 %v1941, 0.010416667
        %v1958 = vmul.f32 %v1942, 0.010416667
        %v1959 = vmul.f32 %v1943, 0.010416667
        %v1960 = vmul.f32 %v1944, 0.010416667
        %v1961 = vmul.f32 %v1945, 0.010416667
        %v1962 = vmul.f32 %v1946, 0.010416667
        %v1963 = vmul.f32 %v1947, 0.010416667
        %v1964 = vmul.f32 %v1948, 0.010416667
        %v1965 = vmul.f32 %v1949, 0.010416667
        %v1966 = vmul.f32 %v1950, 0.010416667
        %v1967 = vmul.f32 %v1951, 0.010416667
        %v1968 = vmul.f32 %v1952, 0.010416667
        %v1969 = vmul.f32 %v1953, 0.010416667
        %v1970 = vmul.f32 %v1954, 0.010416667
        %v1971 = vadd.f32 %v1955, 1e-05
        %v1972 = vadd.f32 %v1956, 1e-05
        %v1973 = vadd.f32 %v1957, 1e-05
        %v1974 = vadd.f32 %v1958, 1e-05
        %v1975 = vadd.f32 %v1959, 1e-05
        %v1976 = vadd.f32 %v1960, 1e-05
        %v1977 = vadd.f32 %v1961, 1e-05
        %v1978 = vadd.f32 %v1962, 1e-05
        %v1979 = vadd.f32 %v1963, 1e-05
        %v1980 = vadd.f32 %v1964, 1e-05
        %v1981 = vadd.f32 %v1965, 1e-05
        %v1982 = vadd.f32 %v1966, 1e-05
        %v1983 = vadd.f32 %v1967, 1e-05
        %v1984 = vadd.f32 %v1968, 1e-05
        %v1985 = vadd.f32 %v1969, 1e-05
        %v1986 = vadd.f32 %v1970, 1e-05
        %v1987 = vrsqrt.pop %v1971
        %v1988 = vrsqrt.pop %v1972
        %v1989 = vrsqrt.pop %v1973
        %v1990 = vrsqrt.pop %v1974
        %v1991 = vrsqrt.pop %v1975
        %v1992 = vrsqrt.pop %v1976
        %v1993 = vrsqrt.pop %v1977
        %v1994 = vrsqrt.pop %v1978
        %v1995 = vrsqrt.pop %v1979
        %v1996 = vrsqrt.pop %v1980
        %v1997 = vrsqrt.pop %v1981
        %v1998 = vrsqrt.pop %v1982
        %v1999 = vrsqrt.pop %v1983
        %v2000 = vrsqrt.pop %v1984
        %v2001 = vrsqrt.pop %v1985
        %v2002 = vrsqrt.pop %v1986
        %v2003 = vmul.f32 %v1843, %v1987
        %v2004 = vmul.f32 %v1844, %v1988
        %v2005 = vmul.f32 %v1845, %v1989
        %v2006 = vmul.f32 %v1846, %v1990
        %v2007 = vmul.f32 %v1847, %v1991
        %v2008 = vmul.f32 %v1848, %v1992
        %v2009 = vmul.f32 %v1849, %v1993
        %v2010 = vmul.f32 %v1850, %v1994
        %v2011 = vmul.f32 %v1851, %v1995
        %v2012 = vmul.f32 %v1852, %v1996
        %v2013 = vmul.f32 %v1853, %v1997
        %v2014 = vmul.f32 %v1854, %v1998
        %v2015 = vmul.f32 %v1855, %v1999
        %v2016 = vmul.f32 %v1856, %v2000
        %v2017 = vmul.f32 %v1857, %v2001
        %v2018 = vmul.f32 %v1858, %v2002
        %v2019 = vlaneseq
        %v2020 = vshrl.u32 %v2019, 7
        %v2021 = vsub.s32 1, %v2020
        %v2022 = vrot.slane %v1613, %v2021
        %v2023 = vmul.f32 %v2003, %v2022
        %v2024 = vmul.f32 %v2004, %v2022
        %v2025 = vmul.f32 %v2005, %v2022
        %v2026 = vmul.f32 %v2006, %v2022
        %v2027 = vmul.f32 %v2007, %v2022
        %v2028 = vmul.f32 %v2008, %v2022
        %v2029 = vmul.f32 %v2009, %v2022
        %v2030 = vmul.f32 %v2010, %v2022
        %v2031 = vmul.f32 %v2011, %v2022
        %v2032 = vmul.f32 %v2012, %v2022
        %v2033 = vmul.f32 %v2013, %v2022
        %v2034 = vmul.f32 %v2014, %v2022
        %v2035 = vmul.f32 %v2015, %v2022
        %v2036 = vmul.f32 %v2016, %v2022
        %v2037 = vmul.f32 %v2017, %v2022
        %v2038 = vmul.f32 %v2018, %v2022
        %v2039 = vlaneseq
        %v2040 = vshrl.u32 %v2039, 7
        %v2041 = vsub.s32 2, %v2040
        %v2042 = vrot.slane %v1613, %v2041
        %v2043 = vadd.f32 %v2023, %v2042
        %v2044 = vadd.f32 %v2024, %v2042
        %v2045 = vadd.f32 %v2025, %v2042
        %v2046 = vadd.f32 %v2026, %v2042
        %v2047 = vadd.f32 %v2027, %v2042
        %v2048 = vadd.f32 %v2028, %v2042
        %v2049 = vadd.f32 %v2029, %v2042
        %v2050 = vadd.f32 %v2030, %v2042
        %v2051 = vadd.f32 %v2031, %v2042
        %v2052 = vadd.f32 %v2032, %v2042
        %v2053 = vadd.f32 %v2033, %v2042
        %v2054 = vadd.f32 %v2034, %v2042
        %v2055 = vadd.f32 %v2035, %v2042
        %v2056 = vadd.f32 %v2036, %v2042
        %v2057 = vadd.f32 %v2037, %v2042
        %v2058 = vadd.f32 %v2038, %v2042
        %v2059 = vmax.f32 %v2043, 0.0
        %v2060 = vmax.f32 %v2044, 0.0
        %v2061 = vmax.f32 %v2045, 0.0
        %v2062 = vmax.f32 %v2046, 0.0
        %v2063 = vmax.f32 %v2047, 0.0
        %v2064 = vmax.f32 %v2048, 0.0
        %v2065 = vmax.f32 %v2049, 0.0
        %v2066 = vmax.f32 %v2050, 0.0
        %v2067 = vmax.f32 %v2051, 0.0
        %v2068 = vmax.f32 %v2052, 0.0
        %v2069 = vmax.f32 %v2053, 0.0
        %v2070 = vmax.f32 %v2054, 0.0
        %v2071 = vmax.f32 %v2055, 0.0
        %v2072 = vmax.f32 %v2056, 0.0
        %v2073 = vmax.f32 %v2057, 0.0
        %v2074 = vmax.f32 %v2058, 0.0
        %2075 = vst [vmem:[%s314] sm:$0xff] %v2059
        %2076 = vst [vmem:[%s314 + $0x8] sm:$0xff] %v2060
        %2077 = vst [vmem:[%s314 + $0x10] sm:$0xff] %v2061
        %2078 = vst [vmem:[%s314 + $0x18] sm:$0xff] %v2062
        %2079 = vst [vmem:[%s314 + $0x20] sm:$0xff] %v2063
        %2080 = vst [vmem:[%s314 + $0x28] sm:$0xff] %v2064
        %2081 = vst [vmem:[%s314 + $0x30] sm:$0xff] %v2065
        %2082 = vst [vmem:[%s314 + $0x38] sm:$0xff] %v2066
        %2083 = vst [vmem:[%s314 + $0x40] sm:$0xff] %v2067
        %2084 = vst [vmem:[%s314 + $0x48] sm:$0xff] %v2068
        %2085 = vst [vmem:[%s314 + $0x50] sm:$0xff] %v2069
        %2086 = vst [vmem:[%s314 + $0x58] sm:$0xff] %v2070
        %2087 = vst [vmem:[%s314 + $0x60] sm:$0xff] %v2071
        %2088 = vst [vmem:[%s314 + $0x68] sm:$0xff] %v2072
        %2089 = vst [vmem:[%s314 + $0x70] sm:$0xff] %v2073
        %2090 = vst [vmem:[%s314 + $0x78] sm:$0xff] %v2074
        %s2091 = sand.u32 %s183, 1
        %s2092 = scalar_lea.sflag [#allocation4], %s2091
        %s2093 = sand.u32 %s183, 1
        %s2094 = smul.addr %s2093, 128
        %s2095 = scalar_lea.vmem [#allocation7], %s2094
        // Predicated region
        $region57: #{tpu_custom_call.1} parent=47 // pred_check
          %p2096 = pneg %p193
        $region58: #{tpu_custom_call.1} parent=47 // pred_check_branch
          %2098 = sbr.rel (%p2096) target = $region60
        $region59: #{tpu_custom_call.1} parent=47 // pred_region
          %s2099 = smul.u32 16, %s23
          %s2100 = ssub.s32 25, %s2099
          %p2101 = scmp.lt.s32.totalorder %s2100, 16
          %s2102 = scalar_select %p2101, %s2100, 16
          %s2103 = smul.u32 128, %s2102
          %s2105 = ssub.s32 2048, %s2103
          %2106 = vsyncadd %s2092, %s2105
          %p2107 = scmp.ne.s32.totalorder 0, %s2103
          %s2108 = smul.addr %s2099, 128
          %s2109 = scalar_lea.hbm %s7, %s2108
          %s2110 = smul.u32 8, %s2102
          %s2111 = sshll.u32 %s2095, 4
          %s2112 = int_to_ptr.vmem [resolvable:$true] %s2111
          %s2113 = sshll.u32 %s2110, 4
          %2117 = dma.vmem_to_hbm [thread:$0]  (%p2107), %s2112, %s2113, %s2109, %s2092, 128, 128, 8
        $region60: #{tpu_custom_call.1} parent=47 // pred_fallthru
          _
      $region48: #{tpu_custom_call.1} parent=5 // pred_fallthru
        _
      %p2118 = scmp.le.s32.totalorder 2, %s18
      // Predicated region
      $region61: #{tpu_custom_call.1} parent=5 // pred_check
        %p2119 = pneg %p2118
      $region62: #{tpu_custom_call.1} parent=5 // pred_check_branch
        %2121 = sbr.rel (%p2119) target = $region64
      $region63: #{tpu_custom_call.1} parent=5 // pred_region
        %s2122 = ssub.s32 %s18, 2
        // Predicated region
        $region65: #{tpu_custom_call.1} parent=63 // pred_check
          %p2123 = pneg %p199
        $region66: #{tpu_custom_call.1} parent=63 // pred_check_branch
          %2125 = sbr.rel (%p2123) target = $region68
        $region67: #{tpu_custom_call.1} parent=63 // pred_region
          %s2126 = sand.u32 %s184, 1
          %s2127 = scalar_lea.sflag [#allocation4], %s2126
          %s2128 = sand.u32 %s184, 1
          %s2129 = smul.addr %s2128, 128
          %s2130 = scalar_lea.vmem [#allocation7], %s2129
          %2131 = dma.done %s2127, 2048
        $region68: #{tpu_custom_call.1} parent=63 // pred_fallthru
          _
      $region64: #{tpu_custom_call.1} parent=5 // pred_fallthru
        _
    $region6: #{tpu_custom_call.1} parent=1 // loop_footer
      %s22 = sadd.s32 1, %s18
    $region7: #{tpu_custom_call.1} parent=1 // loop_footer_branch
      %17 = sbr.rel target = $region3
    $region8: #{tpu_custom_call.1} parent=1 // loop_exit
      _
    %2132 = vsyncpa [#allocation3], 1
    %s2133 = scalar_lea.sflag [#allocation3], 1
    %2134 = vsyncpa %s2133, 1
    %2135 = vsyncpa [#allocation6], 1
    %2136 = vsyncpa [#allocation4], 1
    %s2137 = scalar_lea.sflag [#allocation4], 1
    %2138 = vsyncpa %s2137, 1

// kernel: tpu_custom_call.1
$region0: #{tpu_custom_call.1}
  #allocation0 [shape = 'u32[]', space=smem, size = 0x4, offset = 0x4, fixed_abs, tag = 'smem constant byte address 0x4 - core index']
  #allocation1 [shape = 'u32[144,128]{1,0:T(1,128)}', space=vmem, size = 0x12000, scoped, tag = 'internal scratch']
  %s0 = inlined_call_operand.vmem [shape: f32[200,48], index: 0, kind: input, shape index: {}]
  %s1 = inlined_call_operand.hbm [shape: f32[48,256], index: 1, kind: input, shape index: {}]
  %s2 = inlined_call_operand.vmem [shape: f32[3,256], index: 2, kind: input, shape index: {}]
  %s3 = inlined_call_operand.hbm [shape: f32[256,256], index: 3, kind: input, shape index: {}]
  %s4 = inlined_call_operand.vmem [shape: f32[3,256], index: 4, kind: input, shape index: {}]
  %s5 = inlined_call_operand.vmem [shape: f32[256,128], index: 5, kind: input, shape index: {}]
  %s6 = inlined_call_operand.vmem [shape: f32[3,128], index: 6, kind: input, shape index: {}]
  %s7 = inlined_call_operand.hbm [shape: f32[200,128], index: 7, kind: output, shape index: {}]
  %s8 = sld [smem:[#allocation0]]
  $region69: #{tpu_custom_call.1} parent=0
    _
  %s10 = ssub.s32 1, %s8
  %s11 = scalar_select 0, %s10, %s8
  $region1: #{tpu_custom_call.1} parent=0
    #allocation2 [shape = 'u8[49152]{0}', space=vmem, size = 0xc000, scoped, tag = 'input window, operand 1, single buffered']
    #allocation3 [shape = 's32[2]{0}', space=sflag, size = 0x8, scoped, tag = 'scoped memory for tpu_custom_call.1']
    #allocation4 [shape = 's32[2]{0}', space=sflag, size = 0x8, scoped, tag = 'scoped memory for tpu_custom_call.1']
    #allocation5 [shape = 'u8[262144]{0}', space=vmem, size = 0x40000, scoped, tag = 'input window, operand 3, single buffered']
    #allocation6 [shape = 's32[1]{0}', space=sflag, size = 0x4, scoped, tag = 'scoped memory for tpu_custom_call.1']
    #allocation7 [shape = 'u8[131072]{0}', space=vmem, size = 0x20000, scoped, tag = 'output window, operand 0']
    %12 = vsyncpa [#allocation3], 0
    %13 = vsyncpa [#allocation6], 0
    %14 = vsyncpa [#allocation4], 0
    %s15 = scalar_lea.sflag [#allocation4], 1
    %16 = vsyncpa %s15, 0
    loop: start=0, step=1, limit=4
    $region2: #{tpu_custom_call.1} parent=1 // loop_pre_header
      _
    $region3: #{tpu_custom_call.1} parent=1 // loop_header
      %s18 = sphi 0, %s22
      %p19 = scmp.ge.s32.totalorder %s18, 4
      %s28 = sphi 0, %s30
      %s31 = sphi 0, %s28
      %s32 = sphi 0, %s31
      %s48 = sphi 0, %s32
      %s52 = sphi 0, %s52
      %s54 = sphi 0, %s52
      %s55 = sphi 0, %s54
      %s69 = sphi 0, %s55
      %s73 = sphi 0, %s73
      %s75 = sphi 0, %s73
      %s76 = sphi 0, %s75
      %s90 = sphi 0, %s76
      %s94 = sphi 0, %s94
      %s96 = sphi 0, %s94
      %s97 = sphi 0, %s96
      %s111 = sphi 0, %s97
      %s115 = sphi 0, %s115
      %s117 = sphi 0, %s115
      %s118 = sphi 0, %s117
      %s132 = sphi 0, %s118
      %s136 = sphi 0, %s136
      %s138 = sphi 0, %s136
      %s139 = sphi 0, %s138
      %s153 = sphi 0, %s139
      %s157 = sphi 0, %s157
      %s159 = sphi 0, %s157
      %s160 = sphi 0, %s159
      %s174 = sphi 0, %s160
      %s180 = sphi 0, %s182
      %s183 = sphi 0, %s180
      %s184 = sphi 0, %s183
      %s200 = sphi 0, %s184
    $region4: #{tpu_custom_call.1} parent=1 // loop_header_branch
      %21 = sbr.rel (%p19) target = $region8
    $region5: #{tpu_custom_call.1} parent=1 // loop_body
      %s23 = ssub.s32 %s18, 1
      %s24 = ssub.s32 %s18, 2
      %s25 = sadd.s32 %s18, 1
      %s26 = ssub.s32 %s18, %s25
      %p27 = scmp.eq.s32.totalorder %s26, 0
      %s29 = sadd.s32 %s28, 1
      %s30 = scalar_select %p27, %s28, %s29
      %p33 = pneg %p27
      %p34 = scmp.eq.s32.totalorder %s18, 1
      %p35 = por %p33, %p34
      %p36 = scmp.ne.s32.totalorder %s28, %s31
      %p37 = scmp.eq.s32.totalorder %s18, 0
      %p38 = por %p36, %p37
      %p39 = scmp.ne.s32.totalorder %s28, %s31
      %p40 = scmp.eq.s32.totalorder %s23, 1
      %p41 = por %p39, %p40
      %p42 = scmp.ne.s32.totalorder %s31, %s32
      %p43 = scmp.eq.s32.totalorder %s23, 0
      %p44 = por %p42, %p43
      %p45 = scmp.ne.s32.totalorder %s31, %s32
      %p46 = scmp.eq.s32.totalorder %s24, 1
      %p47 = por %p45, %p46
      %p49 = scmp.ne.s32.totalorder %s32, %s48
      %p50 = scmp.eq.s32.totalorder %s24, 0
      %p51 = por %p49, %p50
      %s53 = sadd.s32 %s52, 1
      %p56 = scmp.eq.s32.totalorder %s18, 1
      %p57 = scmp.ne.s32.totalorder %s52, %s54
      %p58 = scmp.eq.s32.totalorder %s18, 0
      %p59 = por %p57, %p58
      %p60 = scmp.ne.s32.totalorder %s52, %s54
      %p61 = scmp.eq.s32.totalorder %s23, 1
      %p62 = por %p60, %p61
      %p63 = scmp.ne.s32.totalorder %s54, %s55
      %p64 = scmp.eq.s32.totalorder %s23, 0
      %p65 = por %p63, %p64
      %p66 = scmp.ne.s32.totalorder %s54, %s55
      %p67 = scmp.eq.s32.totalorder %s24, 1
      %p68 = por %p66, %p67
      %p70 = scmp.ne.s32.totalorder %s55, %s69
      %p71 = scmp.eq.s32.totalorder %s24, 0
      %p72 = por %p70, %p71
      %s74 = sadd.s32 %s73, 1
      %p77 = scmp.eq.s32.totalorder %s18, 1
      %p78 = scmp.ne.s32.totalorder %s73, %s75
      %p79 = scmp.eq.s32.totalorder %s18, 0
      %p80 = por %p78, %p79
      %p81 = scmp.ne.s32.totalorder %s73, %s75
      %p82 = scmp.eq.s32.totalorder %s23, 1
      %p83 = por %p81, %p82
      %p84 = scmp.ne.s32.totalorder %s75, %s76
      %p85 = scmp.eq.s32.totalorder %s23, 0
      %p86 = por %p84, %p85
      %p87 = scmp.ne.s32.totalorder %s75, %s76
      %p88 = scmp.eq.s32.totalorder %s24, 1
      %p89 = por %p87, %p88
      %p91 = scmp.ne.s32.totalorder %s76, %s90
      %p92 = scmp.eq.s32.totalorder %s24, 0
      %p93 = por %p91, %p92
      %s95 = sadd.s32 %s94, 1
      %p98 = scmp.eq.s32.totalorder %s18, 1
      %p99 = scmp.ne.s32.totalorder %s94, %s96
      %p100 = scmp.eq.s32.totalorder %s18, 0
      %p101 = por %p99, %p100
      %p102 = scmp.ne.s32.totalorder %s94, %s96
      %p103 = scmp.eq.s32.totalorder %s23, 1
      %p104 = por %p102, %p103
      %p105 = scmp.ne.s32.totalorder %s96, %s97
      %p106 = scmp.eq.s32.totalorder %s23, 0
      %p107 = por %p105, %p106
      %p108 = scmp.ne.s32.totalorder %s96, %s97
      %p109 = scmp.eq.s32.totalorder %s24, 1
      %p110 = por %p108, %p109
      %p112 = scmp.ne.s32.totalorder %s97, %s111
      %p113 = scmp.eq.s32.totalorder %s24, 0
      %p114 = por %p112, %p113
      %s116 = sadd.s32 %s115, 1
      %p119 = scmp.eq.s32.totalorder %s18, 1
      %p120 = scmp.ne.s32.totalorder %s115, %s117
      %p121 = scmp.eq.s32.totalorder %s18, 0
      %p122 = por %p120, %p121
      %p123 = scmp.ne.s32.totalorder %s115, %s117
      %p124 = scmp.eq.s32.totalorder %s23, 1
      %p125 = por %p123, %p124
      %p126 = scmp.ne.s32.totalorder %s117, %s118
      %p127 = scmp.eq.s32.totalorder %s23, 0
      %p128 = por %p126, %p127
      %p129 = scmp.ne.s32.totalorder %s117, %s118
      %p130 = scmp.eq.s32.totalorder %s24, 1
      %p131 = por %p129, %p130
      %p133 = scmp.ne.s32.totalorder %s118, %s132
      %p134 = scmp.eq.s32.totalorder %s24, 0
      %p135 = por %p133, %p134
      %s137 = sadd.s32 %s136, 1
      %p140 = scmp.eq.s32.totalorder %s18, 1
      %p141 = scmp.ne.s32.totalorder %s136, %s138
      %p142 = scmp.eq.s32.totalorder %s18, 0
      %p143 = por %p141, %p142
      %p144 = scmp.ne.s32.totalorder %s136, %s138
      %p145 = scmp.eq.s32.totalorder %s23, 1
      %p146 = por %p144, %p145
      %p147 = scmp.ne.s32.totalorder %s138, %s139
      %p148 = scmp.eq.s32.totalorder %s23, 0
      %p149 = por %p147, %p148
      %p150 = scmp.ne.s32.totalorder %s138, %s139
      %p151 = scmp.eq.s32.totalorder %s24, 1
      %p152 = por %p150, %p151
      %p154 = scmp.ne.s32.totalorder %s139, %s153
      %p155 = scmp.eq.s32.totalorder %s24, 0
      %p156 = por %p154, %p155
      %s158 = sadd.s32 %s157, 1
      %p161 = scmp.eq.s32.totalorder %s18, 1
      %p162 = scmp.ne.s32.totalorder %s157, %s159
      %p163 = scmp.eq.s32.totalorder %s18, 0
      %p164 = por %p162, %p163
      %p165 = scmp.ne.s32.totalorder %s157, %s159
      %p166 = scmp.eq.s32.totalorder %s23, 1
      %p167 = por %p165, %p166
      %p168 = scmp.ne.s32.totalorder %s159, %s160
      %p169 = scmp.eq.s32.totalorder %s23, 0
      %p170 = por %p168, %p169
      %p171 = scmp.ne.s32.totalorder %s159, %s160
      %p172 = scmp.eq.s32.totalorder %s24, 1
      %p173 = por %p171, %p172
      %p175 = scmp.ne.s32.totalorder %s160, %s174
      %p176 = scmp.eq.s32.totalorder %s24, 0
      %p177 = por %p175, %p176
      %s178 = ssub.s32 %s18, %s25
      %p179 = scmp.eq.s32.totalorder %s178, 0
      %s181 = sadd.s32 %s180, 1
      %s182 = scalar_select %p179, %s180, %s181
      %p185 = pneg %p179
      %p186 = scmp.eq.s32.totalorder %s18, 1
      %p187 = por %p185, %p186
      %p188 = scmp.ne.s32.totalorder %s180, %s183
      %p189 = scmp.eq.s32.totalorder %s18, 0
      %p190 = por %p188, %p189
      %p191 = scmp.ne.s32.totalorder %s180, %s183
      %p192 = scmp.eq.s32.totalorder %s23, 1
      %p193 = por %p191, %p192
      %p194 = scmp.ne.s32.totalorder %s183, %s184
      %p195 = scmp.eq.s32.totalorder %s23, 0
      %p196 = por %p194, %p195
      %p197 = scmp.ne.s32.totalorder %s183, %s184
      %p198 = scmp.eq.s32.totalorder %s24, 1
      %p199 = por %p197, %p198
      %p201 = scmp.ne.s32.totalorder %s184, %s200
      %p202 = scmp.eq.s32.totalorder %s24, 0
      %p203 = por %p201, %p202
      %p204 = scmp.le.s32.totalorder 1, %s18
      %p205 = scmp.lt.s32.totalorder %s18, 3
      %p206 = pnand %p204, %p205
      %p207 = pneg %p206
      // Predicated region
      $region9: #{tpu_custom_call.1} parent=5 // pred_check
        _
      $region10: #{tpu_custom_call.1} parent=5 // pred_check_branch
        %209 = sbr.rel (%p206) target = $region12
      $region11: #{tpu_custom_call.1} parent=5 // pred_region
        %s210 = ssub.s32 %s18, 1
        // Predicated region
        $region13: #{tpu_custom_call.1} parent=11 // pred_check
          %p211 = pneg %p65
        $region14: #{tpu_custom_call.1} parent=11 // pred_check_branch
          %213 = sbr.rel (%p211) target = $region16
        $region15: #{tpu_custom_call.1} parent=11 // pred_region
          %s215 = ssub.s32 1536, 1536
          %216 = vsyncadd [#allocation3], %s215
          %s217 = sshll.u32 [#allocation2], 4
          %s218 = int_to_ptr.vmem [resolvable:$true] %s217
          %223 = dma.hbm_to_vmem [thread:$0]  %s1, 1536, %s218, [#allocation3], 256, 256, 16
        $region16: #{tpu_custom_call.1} parent=11 // pred_fallthru
          _
        // Predicated region
        $region17: #{tpu_custom_call.1} parent=11 // pred_check
          %p224 = pneg %p86
        $region18: #{tpu_custom_call.1} parent=11 // pred_check_branch
          %226 = sbr.rel (%p224) target = $region20
        $region19: #{tpu_custom_call.1} parent=11 // pred_region
          _
        $region20: #{tpu_custom_call.1} parent=11 // pred_fallthru
          _
        // Predicated region
        $region21: #{tpu_custom_call.1} parent=11 // pred_check
          %p227 = pneg %p107
        $region22: #{tpu_custom_call.1} parent=11 // pred_check_branch
          %229 = sbr.rel (%p227) target = $region24
        $region23: #{tpu_custom_call.1} parent=11 // pred_region
          %s231 = ssub.s32 8192, 8192
          %232 = vsyncadd [#allocation6], %s231
          %s233 = sshll.u32 [#allocation5], 4
          %s234 = int_to_ptr.vmem [resolvable:$true] %s233
          %239 = dma.hbm_to_vmem [thread:$0]  %s3, 8192, %s234, [#allocation6], 256, 256, 16
        $region24: #{tpu_custom_call.1} parent=11 // pred_fallthru
          _
        // Predicated region
        $region25: #{tpu_custom_call.1} parent=11 // pred_check
          %p240 = pneg %p128
        $region26: #{tpu_custom_call.1} parent=11 // pred_check_branch
          %242 = sbr.rel (%p240) target = $region28
        $region27: #{tpu_custom_call.1} parent=11 // pred_region
          _
        $region28: #{tpu_custom_call.1} parent=11 // pred_fallthru
          _
        // Predicated region
        $region29: #{tpu_custom_call.1} parent=11 // pred_check
          %p243 = pneg %p149
        $region30: #{tpu_custom_call.1} parent=11 // pred_check_branch
          %245 = sbr.rel (%p243) target = $region32
        $region31: #{tpu_custom_call.1} parent=11 // pred_region
          _
        $region32: #{tpu_custom_call.1} parent=11 // pred_fallthru
          _
        // Predicated region
        $region33: #{tpu_custom_call.1} parent=11 // pred_check
          %p246 = pneg %p170
        $region34: #{tpu_custom_call.1} parent=11 // pred_check_branch
          %248 = sbr.rel (%p246) target = $region36
        $region35: #{tpu_custom_call.1} parent=11 // pred_region
          _
        $region36: #{tpu_custom_call.1} parent=11 // pred_fallthru
          _
      $region12: #{tpu_custom_call.1} parent=5 // pred_fallthru
        _
      %p249 = scmp.lt.s32.totalorder %s18, 2
      // Predicated region
      $region37: #{tpu_custom_call.1} parent=5 // pred_check
        %p250 = pneg %p249
      $region38: #{tpu_custom_call.1} parent=5 // pred_check_branch
        %252 = sbr.rel (%p250) target = $region40
      $region39: #{tpu_custom_call.1} parent=5 // pred_region
        // Predicated region
        $region41: #{tpu_custom_call.1} parent=39 // pred_check
          %p253 = pneg %p38
        $region42: #{tpu_custom_call.1} parent=39 // pred_check_branch
          %255 = sbr.rel (%p253) target = $region44
        $region43: #{tpu_custom_call.1} parent=39 // pred_region
          %s256 = smul.u32 16, %s18
          %s257 = ssub.s32 25, %s256
          %p258 = scmp.lt.s32.totalorder %s257, 16
          %s259 = scalar_select %p258, %s257, 16
          %s260 = smul.u32 128, %s259
          %p261 = scmp.lt.s32.totalorder %s256, 24
          %s262 = scalar_select %p261, %s256, 24
          %s263 = smul.addr %s262, 8
          %s264 = scalar_lea.vmem %s0, %s263
          %s265 = smul.u32 16, %s18
          %s266 = ssub.s32 25, %s265
          %p267 = scmp.lt.s32.totalorder %s266, 16
          %s268 = scalar_select %p267, %s266, 16
          %s269 = smul.u32 128, %s268
        $region44: #{tpu_custom_call.1} parent=39 // pred_fallthru
          _
      $region40: #{tpu_custom_call.1} parent=5 // pred_fallthru
        _
      %p270 = scmp.le.s32.totalorder 1, %s18
      %p271 = scmp.lt.s32.totalorder %s18, 3
      %p272 = pnand %p270, %p271
      %p273 = pneg %p272
      // Predicated region
      $region45: #{tpu_custom_call.1} parent=5 // pred_check
        _
      $region46: #{tpu_custom_call.1} parent=5 // pred_check_branch
        %275 = sbr.rel (%p272) target = $region48
      $region47: #{tpu_custom_call.1} parent=5 // pred_region
        %s276 = ssub.s32 %s18, 1
        // Predicated region
        $region49: #{tpu_custom_call.1} parent=47 // pred_check
          %p277 = pneg %p65
        $region50: #{tpu_custom_call.1} parent=47 // pred_check_branch
          %279 = sbr.rel (%p277) target = $region52
        $region51: #{tpu_custom_call.1} parent=47 // pred_region
          %280 = dma.done [#allocation3], 1536
        $region52: #{tpu_custom_call.1} parent=47 // pred_fallthru
          _
        // Predicated region
        $region53: #{tpu_custom_call.1} parent=47 // pred_check
          %p281 = pneg %p107
        $region54: #{tpu_custom_call.1} parent=47 // pred_check_branch
          %283 = sbr.rel (%p281) target = $region56
        $region55: #{tpu_custom_call.1} parent=47 // pred_region
          %284 = dma.done [#allocation6], 8192
        $region56: #{tpu_custom_call.1} parent=47 // pred_fallthru
          _
        %s285 = smul.u32 16, %s23
        %s286 = ssub.s32 25, %s285
        %p287 = scmp.lt.s32.totalorder %s286, 16
        %s288 = scalar_select %p287, %s286, 16
        %s289 = smul.u32 128, %s288
        %p290 = scmp.lt.s32.totalorder %s285, 24
        %s291 = scalar_select %p290, %s285, 24
        %s292 = smul.addr %s291, 8
        %s293 = scalar_lea.vmem %s0, %s292
        %p294 = pneg %p44
        %p295 = pneg %p41
        %p296 = pneg %p65
        %p297 = pneg %p62
        %p298 = pneg %p86
        %p299 = pneg %p83
        %p300 = pneg %p107
        %p301 = pneg %p104
        %p302 = pneg %p128
        %p303 = pneg %p125
        %p304 = pneg %p149
        %p305 = pneg %p146
        %p306 = pneg %p170
        %p307 = pneg %p167
        %p308 = pneg %p196
        %p309 = pneg %p193
        %s310 = sand.u32 %s183, 1
        %s311 = scalar_lea.sflag [#allocation4], %s310
        %s312 = sand.u32 %s183, 1
        %s313 = smul.addr %s312, 128
        %s314 = scalar_lea.vmem [#allocation7], %s313
        %s315 = smul.u32 16, %s23
        %s316 = ssub.s32 25, %s315
        %p317 = scmp.lt.s32.totalorder %s316, 16
        %s318 = scalar_select %p317, %s316, 16
        %s319 = smul.u32 128, %s318
        %p320 = scmp.lt.s32.totalorder %s315, 24
        %s321 = scalar_select %p320, %s315, 24
        %s322 = smul.addr %s321, 8
        %s323 = scalar_lea.vmem %s0, %s322
        %s324 = smul.u32 16, %s23
        %s325 = ssub.s32 25, %s324
        %p326 = scmp.lt.s32.totalorder %s325, 16
        %s327 = scalar_select %p326, %s325, 16
        %s328 = smul.u32 128, %s327
        %s329 = smul.u32 16, %s23
        %s330 = ssub.s32 25, %s329
        %p331 = scmp.lt.s32.totalorder %s330, 16
        %s332 = scalar_select %p331, %s330, 16
        %s333 = smul.u32 128, %s332
        %v334 = vld [vmem:[%s323] sm:$0xff]
        %v335 = vld [vmem:[%s323 + $0x8] sm:$0xff]
        %v336 = vld [vmem:[%s323 + $0x10] sm:$0xff]
        %v337 = vld [vmem:[%s323 + $0x18] sm:$0xff]
        %v338 = vld [vmem:[%s323 + $0x20] sm:$0xff]
        %v339 = vld [vmem:[%s323 + $0x28] sm:$0xff]
        %v340 = vld [vmem:[%s323 + $0x30] sm:$0xff]
        %v341 = vld [vmem:[%s323 + $0x38] sm:$0xff]
        %v342 = vld [vmem:[%s323 + $0x40] sm:$0xff]
        %v343 = vld [vmem:[%s323 + $0x48] sm:$0xff]
        %v344 = vld [vmem:[%s323 + $0x50] sm:$0xff]
        %v345 = vld [vmem:[%s323 + $0x58] sm:$0xff]
        %v346 = vld [vmem:[%s323 + $0x60] sm:$0xff]
        %v347 = vld [vmem:[%s323 + $0x68] sm:$0xff]
        %v348 = vld [vmem:[%s323 + $0x70] sm:$0xff]
        %v349 = vld [vmem:[%s323 + $0x78] sm:$0xff]
        %v350 = vld [vmem:[%s2] sm:$0x77]
        %v351 = vld [vmem:[#allocation2] sm:$0xff]
        %v352 = vld [vmem:[#allocation2 + $0x8] sm:$0xff]
        %v353 = vld [vmem:[#allocation2 + $0x10] sm:$0xff]
        %v354 = vld [vmem:[#allocation2 + $0x18] sm:$0xff]
        %v355 = vld [vmem:[#allocation2 + $0x20] sm:$0xff]
        %v356 = vld [vmem:[#allocation2 + $0x28] sm:$0xff]
        %v357 = vld [vmem:[#allocation2 + $0x30] sm:$0xff]
        %v358 = vld [vmem:[#allocation2 + $0x38] sm:$0xff]
        %v359 = vld [vmem:[#allocation2 + $0x40] sm:$0xff]
        %v360 = vld [vmem:[#allocation2 + $0x48] sm:$0xff]
        %v361 = vld [vmem:[#allocation2 + $0x50] sm:$0xff]
        %v362 = vld [vmem:[#allocation2 + $0x58] sm:$0xff]
        %v364 = vlaneseq
        %v365 = vshrl.u32 %v364, 7
        %v366 = vsub.s32 0, %v365
        %v367 = vrot.slane %v350, %v366
        %v368 = vlaneseq
        %v369 = vshrl.u32 %v368, 7
        %v370 = vsub.s32 4, %v369
        %v371 = vrot.slane %v350, %v370
        %v374 = vlaneseq
        %v375 = vshrl.u32 %v374, 7
        %v376 = vsub.s32 0, %v375
        %v377 = vrot.slane %v367, %v376
        %v378 = vlaneseq
        %v379 = vshrl.u32 %v378, 7
        %v380 = vsub.s32 0, %v379
        %v381 = vrot.slane %v371, %v380
        %vm382 = vcmask 392192
        %v384 = vsel %vm382, %v334, 0
        %v387 = vsel %vm382, %v335, 0
        %v390 = vsel %vm382, %v336, 0
        %v393 = vsel %vm382, %v337, 0
        %v396 = vsel %vm382, %v338, 0
        %v399 = vsel %vm382, %v339, 0
        %v402 = vsel %vm382, %v340, 0
        %v405 = vsel %vm382, %v341, 0
        %v408 = vsel %vm382, %v342, 0
        %v411 = vsel %vm382, %v343, 0
        %v414 = vsel %vm382, %v344, 0
        %v417 = vsel %vm382, %v345, 0
        %v420 = vsel %vm382, %v346, 0
        %v423 = vsel %vm382, %v347, 0
        %v426 = vsel %vm382, %v348, 0
        %v429 = vsel %vm382, %v349, 0
        %431 = vmatprep.subr.mxu0 %v352
        %432 = vmatpush1.msra.mxu0 %v351
        %433 = vmatprep.subr.mxu0 %v354
        %434 = vmatpush1.msra.mxu0 %v353
        %435 = vmatprep.subr.mxu0 %v356
        %436 = vmatpush1.msra.mxu0 %v355
        %437 = vmatprep.subr.mxu0 %v358
        %438 = vmatpush1.msra.mxu0 %v357
        %439 = vmatprep.subr.mxu0 %v360
        %440 = vmatpush1.msra.mxu0 %v359
        %441 = vmatprep.subr.mxu0 %v362
        %442 = vmatpush1.msra.mxu0 %v361
        %443 = vmatprep.subr.mxu0 0.0
        %444 = vmatpush1.msra.mxu0 0.0
        %445 = vmatprep.subr.mxu0 0.0
        %446 = vmatpush1.msra.mxu0 0.0
        %447 = vmatprep.subr.mxu0 0.0
        %448 = vmatpush1.msra.mxu0 0.0
        %449 = vmatprep.subr.mxu0 0.0
        %450 = vmatpush1.msra.mxu0 0.0
        %451 = vmatprep.subr.mxu0 0.0
        %452 = vmatpush1.msra.mxu0 0.0
        %453 = vmatprep.subr.mxu0 0.0
        %454 = vmatpush1.msra.mxu0 0.0
        %455 = vmatprep.subr.mxu0 0.0
        %456 = vmatpush1.msra.mxu0 0.0
        %457 = vmatprep.subr.mxu0 0.0
        %458 = vmatpush1.msra.mxu0 0.0
        %459 = vmatprep.subr.mxu0 0.0
        %460 = vmatpush1.msra.mxu0 0.0
        %461 = vmatprep.subr.mxu0 0.0
        %462 = vmatpush1.msra.mxu0 0.0
        %463 = vmatprep.subr.mxu0 0.0
        %464 = vmatpush1.msra.mxu0 0.0
        %465 = vmatprep.subr.mxu0 0.0
        %466 = vmatpush1.msra.mxu0 0.0
        %467 = vmatprep.subr.mxu0 0.0
        %468 = vmatpush1.msra.mxu0 0.0
        %469 = vmatprep.subr.mxu0 0.0
        %470 = vmatpush1.msra.mxu0 0.0
        %471 = vmatprep.subr.mxu0 0.0
        %472 = vmatpush1.msra.mxu0 0.0
        %473 = vmatprep.subr.mxu0 0.0
        %474 = vmatpush1.msra.mxu0 0.0
        %475 = vmatprep.subr.mxu0 0.0
        %476 = vmatpush1.msra.mxu0 0.0
        %477 = vmatprep.subr.mxu0 0.0
        %478 = vmatpush1.msra.mxu0 0.0
        %479 = vmatprep.subr.mxu0 0.0
        %480 = vmatpush1.msra.mxu0 0.0
        %481 = vmatprep.subr.mxu0 0.0
        %482 = vmatpush1.msra.mxu0 0.0
        %483 = vmatprep.subr.mxu0 0.0
        %484 = vmatpush1.msra.mxu0 0.0
        %485 = vmatprep.subr.mxu0 0.0
        %486 = vmatpush1.msra.mxu0 0.0
        %487 = vmatprep.subr.mxu0 0.0
        %488 = vmatpush1.msra.mxu0 0.0
        %489 = vmatprep.subr.mxu0 0.0
        %490 = vmatpush1.msra.mxu0 0.0
        %491 = vmatprep.subr.mxu0 0.0
        %492 = vmatpush1.msra.mxu0 0.0
        %493 = vmatprep.subr.mxu0 0.0
        %494 = vmatpush1.msra.mxu0 0.0
        %495 = vmatprep.mubr.f32.mxu0 0.0
        %496 = vmatmul.mubr.f32.gmra.mrb[0].mxu0 %v384
        %v497 = vpop.f32.mrb[0].mxu0
        %v498 = vadd.f32 %v377, %v497
        %v499 = vpop.f32.mrb[0].mxu0
        %v500 = vadd.f32 %v381, %v499
        %501 = vmatprep.mubr.f32.mxu0 0.0
        %502 = vmatmul.mubr.f32.gmra.mrb[0].mxu0 %v387
        %v503 = vpop.f32.mrb[0].mxu0
        %v504 = vadd.f32 %v377, %v503
        %v505 = vpop.f32.mrb[0].mxu0
        %v506 = vadd.f32 %v381, %v505
        %507 = vmatprep.mubr.f32.mxu0 0.0
        %508 = vmatmul.mubr.f32.gmra.mrb[0].mxu0 %v390
        %v509 = vpop.f32.mrb[0].mxu0
        %v510 = vadd.f32 %v377, %v509
        %v511 = vpop.f32.mrb[0].mxu0
        %v512 = vadd.f32 %v381, %v511
        %513 = vmatprep.mubr.f32.mxu0 0.0
        %514 = vmatmul.mubr.f32.gmra.mrb[0].mxu0 %v393
        %v515 = vpop.f32.mrb[0].mxu0
        %v516 = vadd.f32 %v377, %v515
        %v517 = vpop.f32.mrb[0].mxu0
        %v518 = vadd.f32 %v381, %v517
        %519 = vmatprep.mubr.f32.mxu0 0.0
        %520 = vmatmul.mubr.f32.gmra.mrb[0].mxu0 %v396
        %v521 = vpop.f32.mrb[0].mxu0
        %v522 = vadd.f32 %v377, %v521
        %v523 = vpop.f32.mrb[0].mxu0
        %v524 = vadd.f32 %v381, %v523
        %525 = vmatprep.mubr.f32.mxu0 0.0
        %526 = vmatmul.mubr.f32.gmra.mrb[0].mxu0 %v399
        %v527 = vpop.f32.mrb[0].mxu0
        %v528 = vadd.f32 %v377, %v527
        %v529 = vpop.f32.mrb[0].mxu0
        %v530 = vadd.f32 %v381, %v529
        %531 = vmatprep.mubr.f32.mxu0 0.0
        %532 = vmatmul.mubr.f32.gmra.mrb[0].mxu0 %v402
        %v533 = vpop.f32.mrb[0].mxu0
        %v534 = vadd.f32 %v377, %v533
        %v535 = vpop.f32.mrb[0].mxu0
        %v536 = vadd.f32 %v381, %v535
        %537 = vmatprep.mubr.f32.mxu0 0.0
        %538 = vmatmul.mubr.f32.gmra.mrb[0].mxu0 %v405
        %v539 = vpop.f32.mrb[0].mxu0
        %v540 = vadd.f32 %v377, %v539
        %v541 = vpop.f32.mrb[0].mxu0
        %v542 = vadd.f32 %v381, %v541
        %543 = vmatprep.mubr.f32.mxu0 0.0
        %544 = vmatmul.mubr.f32.gmra.mrb[0].mxu0 %v408
        %v545 = vpop.f32.mrb[0].mxu0
        %v546 = vadd.f32 %v377, %v545
        %v547 = vpop.f32.mrb[0].mxu0
        %v548 = vadd.f32 %v381, %v547
        %549 = vmatprep.mubr.f32.mxu0 0.0
        %550 = vmatmul.mubr.f32.gmra.mrb[0].mxu0 %v411
        %v551 = vpop.f32.mrb[0].mxu0
        %v552 = vadd.f32 %v377, %v551
        %v553 = vpop.f32.mrb[0].mxu0
        %v554 = vadd.f32 %v381, %v553
        %555 = vmatprep.mubr.f32.mxu0 0.0
        %556 = vmatmul.mubr.f32.gmra.mrb[0].mxu0 %v414
        %v557 = vpop.f32.mrb[0].mxu0
        %v558 = vadd.f32 %v377, %v557
        %v559 = vpop.f32.mrb[0].mxu0
        %v560 = vadd.f32 %v381, %v559
        %561 = vmatprep.mubr.f32.mxu0 0.0
        %562 = vmatmul.mubr.f32.gmra.mrb[0].mxu0 %v417
        %v563 = vpop.f32.mrb[0].mxu0
        %v564 = vadd.f32 %v377, %v563
        %v565 = vpop.f32.mrb[0].mxu0
        %v566 = vadd.f32 %v381, %v565
        %567 = vmatprep.mubr.f32.mxu0 0.0
        %568 = vmatmul.mubr.f32.gmra.mrb[0].mxu0 %v420
        %v569 = vpop.f32.mrb[0].mxu0
        %v570 = vadd.f32 %v377, %v569
        %v571 = vpop.f32.mrb[0].mxu0
        %v572 = vadd.f32 %v381, %v571
        %573 = vmatprep.mubr.f32.mxu0 0.0
        %574 = vmatmul.mubr.f32.gmra.mrb[0].mxu0 %v423
        %v575 = vpop.f32.mrb[0].mxu0
        %v576 = vadd.f32 %v377, %v575
        %v577 = vpop.f32.mrb[0].mxu0
        %v578 = vadd.f32 %v381, %v577
        %579 = vmatprep.mubr.f32.mxu0 0.0
        %580 = vmatmul.mubr.f32.gmra.mrb[0].mxu0 %v426
        %v581 = vpop.f32.mrb[0].mxu0
        %v582 = vadd.f32 %v377, %v581
        %v583 = vpop.f32.mrb[0].mxu0
        %v584 = vadd.f32 %v381, %v583
        %585 = vmatprep.mubr.f32.mxu0 0.0
        %586 = vmatmul.mubr.f32.gmra.mrb[0].mxu0 %v429
        %v587 = vpop.f32.mrb[0].mxu0
        %v588 = vadd.f32 %v377, %v587
        %v589 = vpop.f32.mrb[0].mxu0
        %v590 = vadd.f32 %v381, %v589
        %591 = vdwg.mxu0
        %v592 = vadd.f32 %v498, %v500
        %593 = vadd.xlane.f32.xlu0 %v592
        %v594 = vpop.xlane.xlu0 %593
        %v595 = vadd.f32 %v504, %v506
        %596 = vadd.xlane.f32.xlu0 %v595
        %v597 = vpop.xlane.xlu0 %596
        %v598 = vadd.f32 %v510, %v512
        %599 = vadd.xlane.f32.xlu0 %v598
        %v600 = vpop.xlane.xlu0 %599
        %v601 = vadd.f32 %v516, %v518
        %602 = vadd.xlane.f32.xlu0 %v601
        %v603 = vpop.xlane.xlu0 %602
        %v604 = vadd.f32 %v522, %v524
        %605 = vadd.xlane.f32.xlu0 %v604
        %v606 = vpop.xlane.xlu0 %605
        %v607 = vadd.f32 %v528, %v530
        %608 = vadd.xlane.f32.xlu0 %v607
        %v609 = vpop.xlane.xlu0 %608
        %v610 = vadd.f32 %v534, %v536
        %611 = vadd.xlane.f32.xlu0 %v610
        %v612 = vpop.xlane.xlu0 %611
        %v613 = vadd.f32 %v540, %v542
        %614 = vadd.xlane.f32.xlu0 %v613
        %v615 = vpop.xlane.xlu0 %614
        %v616 = vadd.f32 %v546, %v548
        %617 = vadd.xlane.f32.xlu0 %v616
        %v618 = vpop.xlane.xlu0 %617
        %v619 = vadd.f32 %v552, %v554
        %620 = vadd.xlane.f32.xlu0 %v619
        %v621 = vpop.xlane.xlu0 %620
        %v622 = vadd.f32 %v558, %v560
        %623 = vadd.xlane.f32.xlu0 %v622
        %v624 = vpop.xlane.xlu0 %623
        %v625 = vadd.f32 %v564, %v566
        %626 = vadd.xlane.f32.xlu0 %v625
        %v627 = vpop.xlane.xlu0 %626
        %v628 = vadd.f32 %v570, %v572
        %629 = vadd.xlane.f32.xlu0 %v628
        %v630 = vpop.xlane.xlu0 %629
        %v631 = vadd.f32 %v576, %v578
        %632 = vadd.xlane.f32.xlu0 %v631
        %v633 = vpop.xlane.xlu0 %632
        %v634 = vadd.f32 %v582, %v584
        %635 = vadd.xlane.f32.xlu0 %v634
        %v636 = vpop.xlane.xlu0 %635
        %v637 = vadd.f32 %v588, %v590
        %638 = vadd.xlane.f32.xlu0 %v637
        %v639 = vpop.xlane.xlu0 %638
        %v640 = vmul.f32 %v594, 0.00390625
        %v641 = vmul.f32 %v597, 0.00390625
        %v642 = vmul.f32 %v600, 0.00390625
        %v643 = vmul.f32 %v603, 0.00390625
        %v644 = vmul.f32 %v606, 0.00390625
        %v645 = vmul.f32 %v609, 0.00390625
        %v646 = vmul.f32 %v612, 0.00390625
        %v647 = vmul.f32 %v615, 0.00390625
        %v648 = vmul.f32 %v618, 0.00390625
        %v649 = vmul.f32 %v621, 0.00390625
        %v650 = vmul.f32 %v624, 0.00390625
        %v651 = vmul.f32 %v627, 0.00390625
        %v652 = vmul.f32 %v630, 0.00390625
        %v653 = vmul.f32 %v633, 0.00390625
        %v654 = vmul.f32 %v636, 0.00390625
        %v655 = vmul.f32 %v639, 0.00390625
        %v656 = vsub.f32 %v498, %v640
        %v657 = vsub.f32 %v500, %v640
        %v658 = vsub.f32 %v504, %v641
        %v659 = vsub.f32 %v506, %v641
        %v660 = vsub.f32 %v510, %v642
        %v661 = vsub.f32 %v512, %v642
        %v662 = vsub.f32 %v516, %v643
        %v663 = vsub.f32 %v518, %v643
        %v664 = vsub.f32 %v522, %v644
        %v665 = vsub.f32 %v524, %v644
        %v666 = vsub.f32 %v528, %v645
        %v667 = vsub.f32 %v530, %v645
        %v668 = vsub.f32 %v534, %v646
        %v669 = vsub.f32 %v536, %v646
        %v670 = vsub.f32 %v540, %v647
        %v671 = vsub.f32 %v542, %v647
        %v672 = vsub.f32 %v546, %v648
        %v673 = vsub.f32 %v548, %v648
        %v674 = vsub.f32 %v552, %v649
        %v675 = vsub.f32 %v554, %v649
        %v676 = vsub.f32 %v558, %v650
        %v677 = vsub.f32 %v560, %v650
        %v678 = vsub.f32 %v564, %v651
        %v679 = vsub.f32 %v566, %v651
        %v680 = vsub.f32 %v570, %v652
        %v681 = vsub.f32 %v572, %v652
        %v682 = vsub.f32 %v576, %v653
        %v683 = vsub.f32 %v578, %v653
        %v684 = vsub.f32 %v582, %v654
        %v685 = vsub.f32 %v584, %v654
        %v686 = vsub.f32 %v588, %v655
        %v687 = vsub.f32 %v590, %v655
        %v688 = vmul.f32 %v656, %v656
        %v689 = vmul.f32 %v657, %v657
        %v690 = vmul.f32 %v658, %v658
        %v691 = vmul.f32 %v659, %v659
        %v692 = vmul.f32 %v660, %v660
        %v693 = vmul.f32 %v661, %v661
        %v694 = vmul.f32 %v662, %v662
        %v695 = vmul.f32 %v663, %v663
        %v696 = vmul.f32 %v664, %v664
        %v697 = vmul.f32 %v665, %v665
        %v698 = vmul.f32 %v666, %v666
        %v699 = vmul.f32 %v667, %v667
        %v700 = vmul.f32 %v668, %v668
        %v701 = vmul.f32 %v669, %v669
        %v702 = vmul.f32 %v670, %v670
        %v703 = vmul.f32 %v671, %v671
        %v704 = vmul.f32 %v672, %v672
        %v705 = vmul.f32 %v673, %v673
        %v706 = vmul.f32 %v674, %v674
        %v707 = vmul.f32 %v675, %v675
        %v708 = vmul.f32 %v676, %v676
        %v709 = vmul.f32 %v677, %v677
        %v710 = vmul.f32 %v678, %v678
        %v711 = vmul.f32 %v679, %v679
        %v712 = vmul.f32 %v680, %v680
        %v713 = vmul.f32 %v681, %v681
        %v714 = vmul.f32 %v682, %v682
        %v715 = vmul.f32 %v683, %v683
        %v716 = vmul.f32 %v684, %v684
        %v717 = vmul.f32 %v685, %v685
        %v718 = vmul.f32 %v686, %v686
        %v719 = vmul.f32 %v687, %v687
        %v720 = vadd.f32 %v688, %v689
        %721 = vadd.xlane.f32.xlu0 %v720
        %v722 = vpop.xlane.xlu0 %721
        %v723 = vadd.f32 %v690, %v691
        %724 = vadd.xlane.f32.xlu0 %v723
        %v725 = vpop.xlane.xlu0 %724
        %v726 = vadd.f32 %v692, %v693
        %727 = vadd.xlane.f32.xlu0 %v726
        %v728 = vpop.xlane.xlu0 %727
        %v729 = vadd.f32 %v694, %v695
        %730 = vadd.xlane.f32.xlu0 %v729
        %v731 = vpop.xlane.xlu0 %730
        %v732 = vadd.f32 %v696, %v697
        %733 = vadd.xlane.f32.xlu0 %v732
        %v734 = vpop.xlane.xlu0 %733
        %v735 = vadd.f32 %v698, %v699
        %736 = vadd.xlane.f32.xlu0 %v735
        %v737 = vpop.xlane.xlu0 %736
        %v738 = vadd.f32 %v700, %v701
        %739 = vadd.xlane.f32.xlu0 %v738
        %v740 = vpop.xlane.xlu0 %739
        %v741 = vadd.f32 %v702, %v703
        %742 = vadd.xlane.f32.xlu0 %v741
        %v743 = vpop.xlane.xlu0 %742
        %v744 = vadd.f32 %v704, %v705
        %745 = vadd.xlane.f32.xlu0 %v744
        %v746 = vpop.xlane.xlu0 %745
        %v747 = vadd.f32 %v706, %v707
        %748 = vadd.xlane.f32.xlu0 %v747
        %v749 = vpop.xlane.xlu0 %748
        %v750 = vadd.f32 %v708, %v709
        %751 = vadd.xlane.f32.xlu0 %v750
        %v752 = vpop.xlane.xlu0 %751
        %v753 = vadd.f32 %v710, %v711
        %754 = vadd.xlane.f32.xlu0 %v753
        %v755 = vpop.xlane.xlu0 %754
        %v756 = vadd.f32 %v712, %v713
        %757 = vadd.xlane.f32.xlu0 %v756
        %v758 = vpop.xlane.xlu0 %757
        %v759 = vadd.f32 %v714, %v715
        %760 = vadd.xlane.f32.xlu0 %v759
        %v761 = vpop.xlane.xlu0 %760
        %v762 = vadd.f32 %v716, %v717
        %763 = vadd.xlane.f32.xlu0 %v762
        %v764 = vpop.xlane.xlu0 %763
        %v765 = vadd.f32 %v718, %v719
        %766 = vadd.xlane.f32.xlu0 %v765
        %v767 = vpop.xlane.xlu0 %766
        %v768 = vmul.f32 %v722, 0.00390625
        %v769 = vmul.f32 %v725, 0.00390625
        %v770 = vmul.f32 %v728, 0.00390625
        %v771 = vmul.f32 %v731, 0.00390625
        %v772 = vmul.f32 %v734, 0.00390625
        %v773 = vmul.f32 %v737, 0.00390625
        %v774 = vmul.f32 %v740, 0.00390625
        %v775 = vmul.f32 %v743, 0.00390625
        %v776 = vmul.f32 %v746, 0.00390625
        %v777 = vmul.f32 %v749, 0.00390625
        %v778 = vmul.f32 %v752, 0.00390625
        %v779 = vmul.f32 %v755, 0.00390625
        %v780 = vmul.f32 %v758, 0.00390625
        %v781 = vmul.f32 %v761, 0.00390625
        %v782 = vmul.f32 %v764, 0.00390625
        %v783 = vmul.f32 %v767, 0.00390625
        %v784 = vadd.f32 %v768, 1e-05
        %v785 = vadd.f32 %v769, 1e-05
        %v786 = vadd.f32 %v770, 1e-05
        %v787 = vadd.f32 %v771, 1e-05
        %v788 = vadd.f32 %v772, 1e-05
        %v789 = vadd.f32 %v773, 1e-05
        %v790 = vadd.f32 %v774, 1e-05
        %v791 = vadd.f32 %v775, 1e-05
        %v792 = vadd.f32 %v776, 1e-05
        %v793 = vadd.f32 %v777, 1e-05
        %v794 = vadd.f32 %v778, 1e-05
        %v795 = vadd.f32 %v779, 1e-05
        %v796 = vadd.f32 %v780, 1e-05
        %v797 = vadd.f32 %v781, 1e-05
        %v798 = vadd.f32 %v782, 1e-05
        %v799 = vadd.f32 %v783, 1e-05
        %v800 = vrsqrt.pop %v784
        %v801 = vrsqrt.pop %v785
        %v802 = vrsqrt.pop %v786
        %v803 = vrsqrt.pop %v787
        %v804 = vrsqrt.pop %v788
        %v805 = vrsqrt.pop %v789
        %v806 = vrsqrt.pop %v790
        %v807 = vrsqrt.pop %v791
        %v808 = vrsqrt.pop %v792
        %v809 = vrsqrt.pop %v793
        %v810 = vrsqrt.pop %v794
        %v811 = vrsqrt.pop %v795
        %v812 = vrsqrt.pop %v796
        %v813 = vrsqrt.pop %v797
        %v814 = vrsqrt.pop %v798
        %v815 = vrsqrt.pop %v799
        %v816 = vmul.f32 %v656, %v800
        %v817 = vmul.f32 %v657, %v800
        %v818 = vmul.f32 %v658, %v801
        %v819 = vmul.f32 %v659, %v801
        %v820 = vmul.f32 %v660, %v802
        %v821 = vmul.f32 %v661, %v802
        %v822 = vmul.f32 %v662, %v803
        %v823 = vmul.f32 %v663, %v803
        %v824 = vmul.f32 %v664, %v804
        %v825 = vmul.f32 %v665, %v804
        %v826 = vmul.f32 %v666, %v805
        %v827 = vmul.f32 %v667, %v805
        %v828 = vmul.f32 %v668, %v806
        %v829 = vmul.f32 %v669, %v806
        %v830 = vmul.f32 %v670, %v807
        %v831 = vmul.f32 %v671, %v807
        %v832 = vmul.f32 %v672, %v808
        %v833 = vmul.f32 %v673, %v808
        %v834 = vmul.f32 %v674, %v809
        %v835 = vmul.f32 %v675, %v809
        %v836 = vmul.f32 %v676, %v810
        %v837 = vmul.f32 %v677, %v810
        %v838 = vmul.f32 %v678, %v811
        %v839 = vmul.f32 %v679, %v811
        %v840 = vmul.f32 %v680, %v812
        %v841 = vmul.f32 %v681, %v812
        %v842 = vmul.f32 %v682, %v813
        %v843 = vmul.f32 %v683, %v813
        %v844 = vmul.f32 %v684, %v814
        %v845 = vmul.f32 %v685, %v814
        %v846 = vmul.f32 %v686, %v815
        %v847 = vmul.f32 %v687, %v815
        %v848 = vlaneseq
        %v849 = vshrl.u32 %v848, 7
        %v850 = vsub.s32 1, %v849
        %v851 = vrot.slane %v350, %v850
        %v852 = vlaneseq
        %v853 = vshrl.u32 %v852, 7
        %v854 = vsub.s32 5, %v853
        %v855 = vrot.slane %v350, %v854
        %v858 = vlaneseq
        %v859 = vshrl.u32 %v858, 7
        %v860 = vsub.s32 1, %v859
        %v861 = vrot.slane %v851, %v860
        %v862 = vlaneseq
        %v863 = vshrl.u32 %v862, 7
        %v864 = vsub.s32 1, %v863
        %v865 = vrot.slane %v855, %v864
        %v866 = vmul.f32 %v816, %v861
        %v867 = vmul.f32 %v817, %v865
        %v868 = vmul.f32 %v818, %v861
        %v869 = vmul.f32 %v819, %v865
        %v870 = vmul.f32 %v820, %v861
        %v871 = vmul.f32 %v821, %v865
        %v872 = vmul.f32 %v822, %v861
        %v873 = vmul.f32 %v823, %v865
        %v874 = vmul.f32 %v824, %v861
        %v875 = vmul.f32 %v825, %v865
        %v876 = vmul.f32 %v826, %v861
        %v877 = vmul.f32 %v827, %v865
        %v878 = vmul.f32 %v828, %v861
        %v879 = vmul.f32 %v829, %v865
        %v880 = vmul.f32 %v830, %v861
        %v881 = vmul.f32 %v831, %v865
        %v882 = vmul.f32 %v832, %v861
        %v883 = vmul.f32 %v833, %v865
        %v884 = vmul.f32 %v834, %v861
        %v885 = vmul.f32 %v835, %v865
        %v886 = vmul.f32 %v836, %v861
        %v887 = vmul.f32 %v837, %v865
        %v888 = vmul.f32 %v838, %v861
        %v889 = vmul.f32 %v839, %v865
        %v890 = vmul.f32 %v840, %v861
        %v891 = vmul.f32 %v841, %v865
        %v892 = vmul.f32 %v842, %v861
        %v893 = vmul.f32 %v843, %v865
        %v894 = vmul.f32 %v844, %v861
        %v895 = vmul.f32 %v845, %v865
        %v896 = vmul.f32 %v846, %v861
        %v897 = vmul.f32 %v847, %v865
        %v898 = vlaneseq
        %v899 = vshrl.u32 %v898, 7
        %v900 = vsub.s32 2, %v899
        %v901 = vrot.slane %v350, %v900
        %v902 = vlaneseq
        %v903 = vshrl.u32 %v902, 7
        %v904 = vsub.s32 6, %v903
        %v905 = vrot.slane %v350, %v904
        %v908 = vlaneseq
        %v909 = vshrl.u32 %v908, 7
        %v910 = vsub.s32 2, %v909
        %v911 = vrot.slane %v901, %v910
        %v912 = vlaneseq
        %v913 = vshrl.u32 %v912, 7
        %v914 = vsub.s32 2, %v913
        %v915 = vrot.slane %v905, %v914
        %v916 = vadd.f32 %v866, %v911
        %v917 = vadd.f32 %v867, %v915
        %v918 = vadd.f32 %v868, %v911
        %v919 = vadd.f32 %v869, %v915
        %v920 = vadd.f32 %v870, %v911
        %v921 = vadd.f32 %v871, %v915
        %v922 = vadd.f32 %v872, %v911
        %v923 = vadd.f32 %v873, %v915
        %v924 = vadd.f32 %v874, %v911
        %v925 = vadd.f32 %v875, %v915
        %v926 = vadd.f32 %v876, %v911
        %v927 = vadd.f32 %v877, %v915
        %v928 = vadd.f32 %v878, %v911
        %v929 = vadd.f32 %v879, %v915
        %v930 = vadd.f32 %v880, %v911
        %v931 = vadd.f32 %v881, %v915
        %v932 = vadd.f32 %v882, %v911
        %v933 = vadd.f32 %v883, %v915
        %v934 = vadd.f32 %v884, %v911
        %v935 = vadd.f32 %v885, %v915
        %v936 = vadd.f32 %v886, %v911
        %v937 = vadd.f32 %v887, %v915
        %v938 = vadd.f32 %v888, %v911
        %v939 = vadd.f32 %v889, %v915
        %v940 = vadd.f32 %v890, %v911
        %v941 = vadd.f32 %v891, %v915
        %v942 = vadd.f32 %v892, %v911
        %v943 = vadd.f32 %v893, %v915
        %v944 = vadd.f32 %v894, %v911
        %v945 = vadd.f32 %v895, %v915
        %v946 = vadd.f32 %v896, %v911
        %v947 = vadd.f32 %v897, %v915
        %v948 = vmax.f32 %v916, 0.0
        %v949 = vmax.f32 %v917, 0.0
        %v950 = vmax.f32 %v918, 0.0
        %v951 = vmax.f32 %v919, 0.0
        %v952 = vmax.f32 %v920, 0.0
        %v953 = vmax.f32 %v921, 0.0
        %v954 = vmax.f32 %v922, 0.0
        %v955 = vmax.f32 %v923, 0.0
        %v956 = vmax.f32 %v924, 0.0
        %v957 = vmax.f32 %v925, 0.0
        %v958 = vmax.f32 %v926, 0.0
        %v959 = vmax.f32 %v927, 0.0
        %v960 = vmax.f32 %v928, 0.0
        %v961 = vmax.f32 %v929, 0.0
        %v962 = vmax.f32 %v930, 0.0
        %v963 = vmax.f32 %v931, 0.0
        %v964 = vmax.f32 %v932, 0.0
        %v965 = vmax.f32 %v933, 0.0
        %v966 = vmax.f32 %v934, 0.0
        %v967 = vmax.f32 %v935, 0.0
        %v968 = vmax.f32 %v936, 0.0
        %v969 = vmax.f32 %v937, 0.0
        %v970 = vmax.f32 %v938, 0.0
        %v971 = vmax.f32 %v939, 0.0
        %v972 = vmax.f32 %v940, 0.0
        %v973 = vmax.f32 %v941, 0.0
        %v974 = vmax.f32 %v942, 0.0
        %v975 = vmax.f32 %v943, 0.0
        %v976 = vmax.f32 %v944, 0.0
        %v977 = vmax.f32 %v945, 0.0
        %v978 = vmax.f32 %v946, 0.0
        %v979 = vmax.f32 %v947, 0.0
        %v980 = vld [vmem:[%s4] sm:$0x77]
        %v981 = vld [vmem:[#allocation5] sm:$0xff]
        %v982 = vld [vmem:[#allocation5 + $0x8] sm:$0xff]
        %v983 = vld [vmem:[#allocation5 + $0x10] sm:$0xff]
        %v984 = vld [vmem:[#allocation5 + $0x18] sm:$0xff]
        %v985 = vld [vmem:[#allocation5 + $0x20] sm:$0xff]
        %v986 = vld [vmem:[#allocation5 + $0x28] sm:$0xff]
        %v987 = vld [vmem:[#allocation5 + $0x30] sm:$0xff]
        %v988 = vld [vmem:[#allocation5 + $0x38] sm:$0xff]
        %v989 = vld [vmem:[#allocation5 + $0x40] sm:$0xff]
        %v990 = vld [vmem:[#allocation5 + $0x48] sm:$0xff]
        %v991 = vld [vmem:[#allocation5 + $0x50] sm:$0xff]
        %v992 = vld [vmem:[#allocation5 + $0x58] sm:$0xff]
        %v993 = vld [vmem:[#allocation5 + $0x60] sm:$0xff]
        %v994 = vld [vmem:[#allocation5 + $0x68] sm:$0xff]
        %v995 = vld [vmem:[#allocation5 + $0x70] sm:$0xff]
        %v996 = vld [vmem:[#allocation5 + $0x78] sm:$0xff]
        %v997 = vld [vmem:[#allocation5 + $0x80] sm:$0xff]
        %v998 = vld [vmem:[#allocation5 + $0x88] sm:$0xff]
        %v999 = vld [vmem:[#allocation5 + $0x90] sm:$0xff]
        %v1000 = vld [vmem:[#allocation5 + $0x98] sm:$0xff]
        %v1001 = vld [vmem:[#allocation5 + $0xa0] sm:$0xff]
        %v1002 = vld [vmem:[#allocation5 + $0xa8] sm:$0xff]
        %v1003 = vld [vmem:[#allocation5 + $0xb0] sm:$0xff]
        %v1004 = vld [vmem:[#allocation5 + $0xb8] sm:$0xff]
        %v1005 = vld [vmem:[#allocation5 + $0xc0] sm:$0xff]
        %v1006 = vld [vmem:[#allocation5 + $0xc8] sm:$0xff]
        %v1007 = vld [vmem:[#allocation5 + $0xd0] sm:$0xff]
        %v1008 = vld [vmem:[#allocation5 + $0xd8] sm:$0xff]
        %v1009 = vld [vmem:[#allocation5 + $0xe0] sm:$0xff]
        %v1010 = vld [vmem:[#allocation5 + $0xe8] sm:$0xff]
        %v1011 = vld [vmem:[#allocation5 + $0xf0] sm:$0xff]
        %v1012 = vld [vmem:[#allocation5 + $0xf8] sm:$0xff]
        %v1013 = vld [vmem:[#allocation5 + $0x100] sm:$0xff]
        %v1014 = vld [vmem:[#allocation5 + $0x108] sm:$0xff]
        %v1015 = vld [vmem:[#allocation5 + $0x110] sm:$0xff]
        %v1016 = vld [vmem:[#allocation5 + $0x118] sm:$0xff]
        %v1017 = vld [vmem:[#allocation5 + $0x120] sm:$0xff]
        %v1018 = vld [vmem:[#allocation5 + $0x128] sm:$0xff]
        %v1019 = vld [vmem:[#allocation5 + $0x130] sm:$0xff]
        %v1020 = vld [vmem:[#allocation5 + $0x138] sm:$0xff]
        %v1021 = vld [vmem:[#allocation5 + $0x140] sm:$0xff]
        %v1022 = vld [vmem:[#allocation5 + $0x148] sm:$0xff]
        %v1023 = vld [vmem:[#allocation5 + $0x150] sm:$0xff]
        %v1024 = vld [vmem:[#allocation5 + $0x158] sm:$0xff]
        %v1025 = vld [vmem:[#allocation5 + $0x160] sm:$0xff]
        %v1026 = vld [vmem:[#allocation5 + $0x168] sm:$0xff]
        %v1027 = vld [vmem:[#allocation5 + $0x170] sm:$0xff]
        %v1028 = vld [vmem:[#allocation5 + $0x178] sm:$0xff]
        %v1029 = vld [vmem:[#allocation5 + $0x180] sm:$0xff]
        %v1030 = vld [vmem:[#allocation5 + $0x188] sm:$0xff]
        %v1031 = vld [vmem:[#allocation5 + $0x190] sm:$0xff]
        %v1032 = vld [vmem:[#allocation5 + $0x198] sm:$0xff]
        %v1033 = vld [vmem:[#allocation5 + $0x1a0] sm:$0xff]
        %v1034 = vld [vmem:[#allocation5 + $0x1a8] sm:$0xff]
        %v1035 = vld [vmem:[#allocation5 + $0x1b0] sm:$0xff]
        %v1036 = vld [vmem:[#allocation5 + $0x1b8] sm:$0xff]
        %v1037 = vld [vmem:[#allocation5 + $0x1c0] sm:$0xff]
        %v1038 = vld [vmem:[#allocation5 + $0x1c8] sm:$0xff]
        %v1039 = vld [vmem:[#allocation5 + $0x1d0] sm:$0xff]
        %v1040 = vld [vmem:[#allocation5 + $0x1d8] sm:$0xff]
        %v1041 = vld [vmem:[#allocation5 + $0x1e0] sm:$0xff]
        %v1042 = vld [vmem:[#allocation5 + $0x1e8] sm:$0xff]
        %v1043 = vld [vmem:[#allocation5 + $0x1f0] sm:$0xff]
        %v1044 = vld [vmem:[#allocation5 + $0x1f8] sm:$0xff]
        %v1046 = vlaneseq
        %v1047 = vshrl.u32 %v1046, 7
        %v1048 = vsub.s32 0, %v1047
        %v1049 = vrot.slane %v980, %v1048
        %v1050 = vlaneseq
        %v1051 = vshrl.u32 %v1050, 7
        %v1052 = vsub.s32 4, %v1051
        %v1053 = vrot.slane %v980, %v1052
        %v1056 = vlaneseq
        %v1057 = vshrl.u32 %v1056, 7
        %v1058 = vsub.s32 0, %v1057
        %v1059 = vrot.slane %v1049, %v1058
        %v1060 = vlaneseq
        %v1061 = vshrl.u32 %v1060, 7
        %v1062 = vsub.s32 0, %v1061
        %v1063 = vrot.slane %v1053, %v1062
        %1064 = vmatprep.subr.mxu0 %v982
        %1065 = vmatpush1.msra.mxu0 %v981
        %1066 = vmatprep.subr.mxu0 %v984
        %1067 = vmatpush1.msra.mxu0 %v983
        %1068 = vmatprep.subr.mxu0 %v986
        %1069 = vmatpush1.msra.mxu0 %v985
        %1070 = vmatprep.subr.mxu0 %v988
        %1071 = vmatpush1.msra.mxu0 %v987
        %1072 = vmatprep.subr.mxu0 %v990
        %1073 = vmatpush1.msra.mxu0 %v989
        %1074 = vmatprep.subr.mxu0 %v992
        %1075 = vmatpush1.msra.mxu0 %v991
        %1076 = vmatprep.subr.mxu0 %v994
        %1077 = vmatpush1.msra.mxu0 %v993
        %1078 = vmatprep.subr.mxu0 %v996
        %1079 = vmatpush1.msra.mxu0 %v995
        %1080 = vmatprep.subr.mxu0 %v998
        %1081 = vmatpush1.msra.mxu0 %v997
        %1082 = vmatprep.subr.mxu0 %v1000
        %1083 = vmatpush1.msra.mxu0 %v999
        %1084 = vmatprep.subr.mxu0 %v1002
        %1085 = vmatpush1.msra.mxu0 %v1001
        %1086 = vmatprep.subr.mxu0 %v1004
        %1087 = vmatpush1.msra.mxu0 %v1003
        %1088 = vmatprep.subr.mxu0 %v1006
        %1089 = vmatpush1.msra.mxu0 %v1005
        %1090 = vmatprep.subr.mxu0 %v1008
        %1091 = vmatpush1.msra.mxu0 %v1007
        %1092 = vmatprep.subr.mxu0 %v1010
        %1093 = vmatpush1.msra.mxu0 %v1009
        %1094 = vmatprep.subr.mxu0 %v1012
        %1095 = vmatpush1.msra.mxu0 %v1011
        %1096 = vmatprep.subr.mxu0 %v1014
        %1097 = vmatpush1.msra.mxu0 %v1013
        %1098 = vmatprep.subr.mxu0 %v1016
        %1099 = vmatpush1.msra.mxu0 %v1015
        %1100 = vmatprep.subr.mxu0 %v1018
        %1101 = vmatpush1.msra.mxu0 %v1017
        %1102 = vmatprep.subr.mxu0 %v1020
        %1103 = vmatpush1.msra.mxu0 %v1019
        %1104 = vmatprep.subr.mxu0 %v1022
        %1105 = vmatpush1.msra.mxu0 %v1021
        %1106 = vmatprep.subr.mxu0 %v1024
        %1107 = vmatpush1.msra.mxu0 %v1023
        %1108 = vmatprep.subr.mxu0 %v1026
        %1109 = vmatpush1.msra.mxu0 %v1025
        %1110 = vmatprep.subr.mxu0 %v1028
        %1111 = vmatpush1.msra.mxu0 %v1027
        %1112 = vmatprep.subr.mxu0 %v1030
        %1113 = vmatpush1.msra.mxu0 %v1029
        %1114 = vmatprep.subr.mxu0 %v1032
        %1115 = vmatpush1.msra.mxu0 %v1031
        %1116 = vmatprep.subr.mxu0 %v1034
        %1117 = vmatpush1.msra.mxu0 %v1033
        %1118 = vmatprep.subr.mxu0 %v1036
        %1119 = vmatpush1.msra.mxu0 %v1035
        %1120 = vmatprep.subr.mxu0 %v1038
        %1121 = vmatpush1.msra.mxu0 %v1037
        %1122 = vmatprep.subr.mxu0 %v1040
        %1123 = vmatpush1.msra.mxu0 %v1039
        %1124 = vmatprep.subr.mxu0 %v1042
        %1125 = vmatpush1.msra.mxu0 %v1041
        %1126 = vmatprep.subr.mxu0 %v1044
        %1127 = vmatpush1.msra.mxu0 %v1043
        %1128 = vmatprep.mubr.f32.mxu0 %v949
        %1129 = vmatmul.mubr.f32.gmra.mrb[0].mxu0 %v948
        %v1130 = vpop.f32.mrb[0].mxu0
        %v1131 = vadd.f32 %v1059, %v1130
        %v1132 = vpop.f32.mrb[0].mxu0
        %v1133 = vadd.f32 %v1063, %v1132
        %1134 = vmatprep.mubr.f32.mxu0 %v951
        %1135 = vmatmul.mubr.f32.gmra.mrb[0].mxu0 %v950
        %v1136 = vpop.f32.mrb[0].mxu0
        %v1137 = vadd.f32 %v1059, %v1136
        %v1138 = vpop.f32.mrb[0].mxu0
        %v1139 = vadd.f32 %v1063, %v1138
        %1140 = vmatprep.mubr.f32.mxu0 %v953
        %1141 = vmatmul.mubr.f32.gmra.mrb[0].mxu0 %v952
        %v1142 = vpop.f32.mrb[0].mxu0
        %v1143 = vadd.f32 %v1059, %v1142
        %v1144 = vpop.f32.mrb[0].mxu0
        %v1145 = vadd.f32 %v1063, %v1144
        %1146 = vmatprep.mubr.f32.mxu0 %v955
        %1147 = vmatmul.mubr.f32.gmra.mrb[0].mxu0 %v954
        %v1148 = vpop.f32.mrb[0].mxu0
        %v1149 = vadd.f32 %v1059, %v1148
        %v1150 = vpop.f32.mrb[0].mxu0
        %v1151 = vadd.f32 %v1063, %v1150
        %1152 = vmatprep.mubr.f32.mxu0 %v957
        %1153 = vmatmul.mubr.f32.gmra.mrb[0].mxu0 %v956
        %v1154 = vpop.f32.mrb[0].mxu0
        %v1155 = vadd.f32 %v1059, %v1154
        %v1156 = vpop.f32.mrb[0].mxu0
        %v1157 = vadd.f32 %v1063, %v1156
        %1158 = vmatprep.mubr.f32.mxu0 %v959
        %1159 = vmatmul.mubr.f32.gmra.mrb[0].mxu0 %v958
        %v1160 = vpop.f32.mrb[0].mxu0
        %v1161 = vadd.f32 %v1059, %v1160
        %v1162 = vpop.f32.mrb[0].mxu0
        %v1163 = vadd.f32 %v1063, %v1162
        %1164 = vmatprep.mubr.f32.mxu0 %v961
        %1165 = vmatmul.mubr.f32.gmra.mrb[0].mxu0 %v960
        %v1166 = vpop.f32.mrb[0].mxu0
        %v1167 = vadd.f32 %v1059, %v1166
        %v1168 = vpop.f32.mrb[0].mxu0
        %v1169 = vadd.f32 %v1063, %v1168
        %1170 = vmatprep.mubr.f32.mxu0 %v963
        %1171 = vmatmul.mubr.f32.gmra.mrb[0].mxu0 %v962
        %v1172 = vpop.f32.mrb[0].mxu0
        %v1173 = vadd.f32 %v1059, %v1172
        %v1174 = vpop.f32.mrb[0].mxu0
        %v1175 = vadd.f32 %v1063, %v1174
        %1176 = vmatprep.mubr.f32.mxu0 %v965
        %1177 = vmatmul.mubr.f32.gmra.mrb[0].mxu0 %v964
        %v1178 = vpop.f32.mrb[0].mxu0
        %v1179 = vadd.f32 %v1059, %v1178
        %v1180 = vpop.f32.mrb[0].mxu0
        %v1181 = vadd.f32 %v1063, %v1180
        %1182 = vmatprep.mubr.f32.mxu0 %v967
        %1183 = vmatmul.mubr.f32.gmra.mrb[0].mxu0 %v966
        %v1184 = vpop.f32.mrb[0].mxu0
        %v1185 = vadd.f32 %v1059, %v1184
        %v1186 = vpop.f32.mrb[0].mxu0
        %v1187 = vadd.f32 %v1063, %v1186
        %1188 = vmatprep.mubr.f32.mxu0 %v969
        %1189 = vmatmul.mubr.f32.gmra.mrb[0].mxu0 %v968
        %v1190 = vpop.f32.mrb[0].mxu0
        %v1191 = vadd.f32 %v1059, %v1190
        %v1192 = vpop.f32.mrb[0].mxu0
        %v1193 = vadd.f32 %v1063, %v1192
        %1194 = vmatprep.mubr.f32.mxu0 %v971
        %1195 = vmatmul.mubr.f32.gmra.mrb[0].mxu0 %v970
        %v1196 = vpop.f32.mrb[0].mxu0
        %v1197 = vadd.f32 %v1059, %v1196
        %v1198 = vpop.f32.mrb[0].mxu0
        %v1199 = vadd.f32 %v1063, %v1198
        %1200 = vmatprep.mubr.f32.mxu0 %v973
        %1201 = vmatmul.mubr.f32.gmra.mrb[0].mxu0 %v972
        %v1202 = vpop.f32.mrb[0].mxu0
        %v1203 = vadd.f32 %v1059, %v1202
        %v1204 = vpop.f32.mrb[0].mxu0
        %v1205 = vadd.f32 %v1063, %v1204
        %1206 = vmatprep.mubr.f32.mxu0 %v975
        %1207 = vmatmul.mubr.f32.gmra.mrb[0].mxu0 %v974
        %v1208 = vpop.f32.mrb[0].mxu0
        %v1209 = vadd.f32 %v1059, %v1208
        %v1210 = vpop.f32.mrb[0].mxu0
        %v1211 = vadd.f32 %v1063, %v1210
        %1212 = vmatprep.mubr.f32.mxu0 %v977
        %1213 = vmatmul.mubr.f32.gmra.mrb[0].mxu0 %v976
        %v1214 = vpop.f32.mrb[0].mxu0
        %v1215 = vadd.f32 %v1059, %v1214
        %v1216 = vpop.f32.mrb[0].mxu0
        %v1217 = vadd.f32 %v1063, %v1216
        %1218 = vmatprep.mubr.f32.mxu0 %v979
        %1219 = vmatmul.mubr.f32.gmra.mrb[0].mxu0 %v978
        %v1220 = vpop.f32.mrb[0].mxu0
        %v1221 = vadd.f32 %v1059, %v1220
        %v1222 = vpop.f32.mrb[0].mxu0
        %v1223 = vadd.f32 %v1063, %v1222
        %1224 = vdwg.mxu0
        %v1225 = vadd.f32 %v1131, %v1133
        %1226 = vadd.xlane.f32.xlu0 %v1225
        %v1227 = vpop.xlane.xlu0 %1226
        %v1228 = vadd.f32 %v1137, %v1139
        %1229 = vadd.xlane.f32.xlu0 %v1228
        %v1230 = vpop.xlane.xlu0 %1229
        %v1231 = vadd.f32 %v1143, %v1145
        %1232 = vadd.xlane.f32.xlu0 %v1231
        %v1233 = vpop.xlane.xlu0 %1232
        %v1234 = vadd.f32 %v1149, %v1151
        %1235 = vadd.xlane.f32.xlu0 %v1234
        %v1236 = vpop.xlane.xlu0 %1235
        %v1237 = vadd.f32 %v1155, %v1157
        %1238 = vadd.xlane.f32.xlu0 %v1237
        %v1239 = vpop.xlane.xlu0 %1238
        %v1240 = vadd.f32 %v1161, %v1163
        %1241 = vadd.xlane.f32.xlu0 %v1240
        %v1242 = vpop.xlane.xlu0 %1241
        %v1243 = vadd.f32 %v1167, %v1169
        %1244 = vadd.xlane.f32.xlu0 %v1243
        %v1245 = vpop.xlane.xlu0 %1244
        %v1246 = vadd.f32 %v1173, %v1175
        %1247 = vadd.xlane.f32.xlu0 %v1246
        %v1248 = vpop.xlane.xlu0 %1247
        %v1249 = vadd.f32 %v1179, %v1181
        %1250 = vadd.xlane.f32.xlu0 %v1249
        %v1251 = vpop.xlane.xlu0 %1250
        %v1252 = vadd.f32 %v1185, %v1187
        %1253 = vadd.xlane.f32.xlu0 %v1252
        %v1254 = vpop.xlane.xlu0 %1253
        %v1255 = vadd.f32 %v1191, %v1193
        %1256 = vadd.xlane.f32.xlu0 %v1255
        %v1257 = vpop.xlane.xlu0 %1256
        %v1258 = vadd.f32 %v1197, %v1199
        %1259 = vadd.xlane.f32.xlu0 %v1258
        %v1260 = vpop.xlane.xlu0 %1259
        %v1261 = vadd.f32 %v1203, %v1205
        %1262 = vadd.xlane.f32.xlu0 %v1261
        %v1263 = vpop.xlane.xlu0 %1262
        %v1264 = vadd.f32 %v1209, %v1211
        %1265 = vadd.xlane.f32.xlu0 %v1264
        %v1266 = vpop.xlane.xlu0 %1265
        %v1267 = vadd.f32 %v1215, %v1217
        %1268 = vadd.xlane.f32.xlu0 %v1267
        %v1269 = vpop.xlane.xlu0 %1268
        %v1270 = vadd.f32 %v1221, %v1223
        %1271 = vadd.xlane.f32.xlu0 %v1270
        %v1272 = vpop.xlane.xlu0 %1271
        %v1273 = vmul.f32 %v1227, 0.00390625
        %v1274 = vmul.f32 %v1230, 0.00390625
        %v1275 = vmul.f32 %v1233, 0.00390625
        %v1276 = vmul.f32 %v1236, 0.00390625
        %v1277 = vmul.f32 %v1239, 0.00390625
        %v1278 = vmul.f32 %v1242, 0.00390625
        %v1279 = vmul.f32 %v1245, 0.00390625
        %v1280 = vmul.f32 %v1248, 0.00390625
        %v1281 = vmul.f32 %v1251, 0.00390625
        %v1282 = vmul.f32 %v1254, 0.00390625
        %v1283 = vmul.f32 %v1257, 0.00390625
        %v1284 = vmul.f32 %v1260, 0.00390625
        %v1285 = vmul.f32 %v1263, 0.00390625
        %v1286 = vmul.f32 %v1266, 0.00390625
        %v1287 = vmul.f32 %v1269, 0.00390625
        %v1288 = vmul.f32 %v1272, 0.00390625
        %v1289 = vsub.f32 %v1131, %v1273
        %v1290 = vsub.f32 %v1133, %v1273
        %v1291 = vsub.f32 %v1137, %v1274
        %v1292 = vsub.f32 %v1139, %v1274
        %v1293 = vsub.f32 %v1143, %v1275
        %v1294 = vsub.f32 %v1145, %v1275
        %v1295 = vsub.f32 %v1149, %v1276
        %v1296 = vsub.f32 %v1151, %v1276
        %v1297 = vsub.f32 %v1155, %v1277
        %v1298 = vsub.f32 %v1157, %v1277
        %v1299 = vsub.f32 %v1161, %v1278
        %v1300 = vsub.f32 %v1163, %v1278
        %v1301 = vsub.f32 %v1167, %v1279
        %v1302 = vsub.f32 %v1169, %v1279
        %v1303 = vsub.f32 %v1173, %v1280
        %v1304 = vsub.f32 %v1175, %v1280
        %v1305 = vsub.f32 %v1179, %v1281
        %v1306 = vsub.f32 %v1181, %v1281
        %v1307 = vsub.f32 %v1185, %v1282
        %v1308 = vsub.f32 %v1187, %v1282
        %v1309 = vsub.f32 %v1191, %v1283
        %v1310 = vsub.f32 %v1193, %v1283
        %v1311 = vsub.f32 %v1197, %v1284
        %v1312 = vsub.f32 %v1199, %v1284
        %v1313 = vsub.f32 %v1203, %v1285
        %v1314 = vsub.f32 %v1205, %v1285
        %v1315 = vsub.f32 %v1209, %v1286
        %v1316 = vsub.f32 %v1211, %v1286
        %v1317 = vsub.f32 %v1215, %v1287
        %v1318 = vsub.f32 %v1217, %v1287
        %v1319 = vsub.f32 %v1221, %v1288
        %v1320 = vsub.f32 %v1223, %v1288
        %v1321 = vmul.f32 %v1289, %v1289
        %v1322 = vmul.f32 %v1290, %v1290
        %v1323 = vmul.f32 %v1291, %v1291
        %v1324 = vmul.f32 %v1292, %v1292
        %v1325 = vmul.f32 %v1293, %v1293
        %v1326 = vmul.f32 %v1294, %v1294
        %v1327 = vmul.f32 %v1295, %v1295
        %v1328 = vmul.f32 %v1296, %v1296
        %v1329 = vmul.f32 %v1297, %v1297
        %v1330 = vmul.f32 %v1298, %v1298
        %v1331 = vmul.f32 %v1299, %v1299
        %v1332 = vmul.f32 %v1300, %v1300
        %v1333 = vmul.f32 %v1301, %v1301
        %v1334 = vmul.f32 %v1302, %v1302
        %v1335 = vmul.f32 %v1303, %v1303
        %v1336 = vmul.f32 %v1304, %v1304
        %v1337 = vmul.f32 %v1305, %v1305
        %v1338 = vmul.f32 %v1306, %v1306
        %v1339 = vmul.f32 %v1307, %v1307
        %v1340 = vmul.f32 %v1308, %v1308
        %v1341 = vmul.f32 %v1309, %v1309
        %v1342 = vmul.f32 %v1310, %v1310
        %v1343 = vmul.f32 %v1311, %v1311
        %v1344 = vmul.f32 %v1312, %v1312
        %v1345 = vmul.f32 %v1313, %v1313
        %v1346 = vmul.f32 %v1314, %v1314
        %v1347 = vmul.f32 %v1315, %v1315
        %v1348 = vmul.f32 %v1316, %v1316
        %v1349 = vmul.f32 %v1317, %v1317
        %v1350 = vmul.f32 %v1318, %v1318
        %v1351 = vmul.f32 %v1319, %v1319
        %v1352 = vmul.f32 %v1320, %v1320
        %v1353 = vadd.f32 %v1321, %v1322
        %1354 = vadd.xlane.f32.xlu0 %v1353
        %v1355 = vpop.xlane.xlu0 %1354
        %v1356 = vadd.f32 %v1323, %v1324
        %1357 = vadd.xlane.f32.xlu0 %v1356
        %v1358 = vpop.xlane.xlu0 %1357
        %v1359 = vadd.f32 %v1325, %v1326
        %1360 = vadd.xlane.f32.xlu0 %v1359
        %v1361 = vpop.xlane.xlu0 %1360
        %v1362 = vadd.f32 %v1327, %v1328
        %1363 = vadd.xlane.f32.xlu0 %v1362
        %v1364 = vpop.xlane.xlu0 %1363
        %v1365 = vadd.f32 %v1329, %v1330
        %1366 = vadd.xlane.f32.xlu0 %v1365
        %v1367 = vpop.xlane.xlu0 %1366
        %v1368 = vadd.f32 %v1331, %v1332
        %1369 = vadd.xlane.f32.xlu0 %v1368
        %v1370 = vpop.xlane.xlu0 %1369
        %v1371 = vadd.f32 %v1333, %v1334
        %1372 = vadd.xlane.f32.xlu0 %v1371
        %v1373 = vpop.xlane.xlu0 %1372
        %v1374 = vadd.f32 %v1335, %v1336
        %1375 = vadd.xlane.f32.xlu0 %v1374
        %v1376 = vpop.xlane.xlu0 %1375
        %v1377 = vadd.f32 %v1337, %v1338
        %1378 = vadd.xlane.f32.xlu0 %v1377
        %v1379 = vpop.xlane.xlu0 %1378
        %v1380 = vadd.f32 %v1339, %v1340
        %1381 = vadd.xlane.f32.xlu0 %v1380
        %v1382 = vpop.xlane.xlu0 %1381
        %v1383 = vadd.f32 %v1341, %v1342
        %1384 = vadd.xlane.f32.xlu0 %v1383
        %v1385 = vpop.xlane.xlu0 %1384
        %v1386 = vadd.f32 %v1343, %v1344
        %1387 = vadd.xlane.f32.xlu0 %v1386
        %v1388 = vpop.xlane.xlu0 %1387
        %v1389 = vadd.f32 %v1345, %v1346
        %1390 = vadd.xlane.f32.xlu0 %v1389
        %v1391 = vpop.xlane.xlu0 %1390
        %v1392 = vadd.f32 %v1347, %v1348
        %1393 = vadd.xlane.f32.xlu0 %v1392
        %v1394 = vpop.xlane.xlu0 %1393
        %v1395 = vadd.f32 %v1349, %v1350
        %1396 = vadd.xlane.f32.xlu0 %v1395
        %v1397 = vpop.xlane.xlu0 %1396
        %v1398 = vadd.f32 %v1351, %v1352
        %1399 = vadd.xlane.f32.xlu0 %v1398
        %v1400 = vpop.xlane.xlu0 %1399
        %v1401 = vmul.f32 %v1355, 0.00390625
        %v1402 = vmul.f32 %v1358, 0.00390625
        %v1403 = vmul.f32 %v1361, 0.00390625
        %v1404 = vmul.f32 %v1364, 0.00390625
        %v1405 = vmul.f32 %v1367, 0.00390625
        %v1406 = vmul.f32 %v1370, 0.00390625
        %v1407 = vmul.f32 %v1373, 0.00390625
        %v1408 = vmul.f32 %v1376, 0.00390625
        %v1409 = vmul.f32 %v1379, 0.00390625
        %v1410 = vmul.f32 %v1382, 0.00390625
        %v1411 = vmul.f32 %v1385, 0.00390625
        %v1412 = vmul.f32 %v1388, 0.00390625
        %v1413 = vmul.f32 %v1391, 0.00390625
        %v1414 = vmul.f32 %v1394, 0.00390625
        %v1415 = vmul.f32 %v1397, 0.00390625
        %v1416 = vmul.f32 %v1400, 0.00390625
        %v1417 = vadd.f32 %v1401, 1e-05
        %v1418 = vadd.f32 %v1402, 1e-05
        %v1419 = vadd.f32 %v1403, 1e-05
        %v1420 = vadd.f32 %v1404, 1e-05
        %v1421 = vadd.f32 %v1405, 1e-05
        %v1422 = vadd.f32 %v1406, 1e-05
        %v1423 = vadd.f32 %v1407, 1e-05
        %v1424 = vadd.f32 %v1408, 1e-05
        %v1425 = vadd.f32 %v1409, 1e-05
        %v1426 = vadd.f32 %v1410, 1e-05
        %v1427 = vadd.f32 %v1411, 1e-05
        %v1428 = vadd.f32 %v1412, 1e-05
        %v1429 = vadd.f32 %v1413, 1e-05
        %v1430 = vadd.f32 %v1414, 1e-05
        %v1431 = vadd.f32 %v1415, 1e-05
        %v1432 = vadd.f32 %v1416, 1e-05
        %v1433 = vrsqrt.pop %v1417
        %v1434 = vrsqrt.pop %v1418
        %v1435 = vrsqrt.pop %v1419
        %v1436 = vrsqrt.pop %v1420
        %v1437 = vrsqrt.pop %v1421
        %v1438 = vrsqrt.pop %v1422
        %v1439 = vrsqrt.pop %v1423
        %v1440 = vrsqrt.pop %v1424
        %v1441 = vrsqrt.pop %v1425
        %v1442 = vrsqrt.pop %v1426
        %v1443 = vrsqrt.pop %v1427
        %v1444 = vrsqrt.pop %v1428
        %v1445 = vrsqrt.pop %v1429
        %v1446 = vrsqrt.pop %v1430
        %v1447 = vrsqrt.pop %v1431
        %v1448 = vrsqrt.pop %v1432
        %v1449 = vmul.f32 %v1289, %v1433
        %v1450 = vmul.f32 %v1290, %v1433
        %v1451 = vmul.f32 %v1291, %v1434
        %v1452 = vmul.f32 %v1292, %v1434
        %v1453 = vmul.f32 %v1293, %v1435
        %v1454 = vmul.f32 %v1294, %v1435
        %v1455 = vmul.f32 %v1295, %v1436
        %v1456 = vmul.f32 %v1296, %v1436
        %v1457 = vmul.f32 %v1297, %v1437
        %v1458 = vmul.f32 %v1298, %v1437
        %v1459 = vmul.f32 %v1299, %v1438
        %v1460 = vmul.f32 %v1300, %v1438
        %v1461 = vmul.f32 %v1301, %v1439
        %v1462 = vmul.f32 %v1302, %v1439
        %v1463 = vmul.f32 %v1303, %v1440
        %v1464 = vmul.f32 %v1304, %v1440
        %v1465 = vmul.f32 %v1305, %v1441
        %v1466 = vmul.f32 %v1306, %v1441
        %v1467 = vmul.f32 %v1307, %v1442
        %v1468 = vmul.f32 %v1308, %v1442
        %v1469 = vmul.f32 %v1309, %v1443
        %v1470 = vmul.f32 %v1310, %v1443
        %v1471 = vmul.f32 %v1311, %v1444
        %v1472 = vmul.f32 %v1312, %v1444
        %v1473 = vmul.f32 %v1313, %v1445
        %v1474 = vmul.f32 %v1314, %v1445
        %v1475 = vmul.f32 %v1315, %v1446
        %v1476 = vmul.f32 %v1316, %v1446
        %v1477 = vmul.f32 %v1317, %v1447
        %v1478 = vmul.f32 %v1318, %v1447
        %v1479 = vmul.f32 %v1319, %v1448
        %v1480 = vmul.f32 %v1320, %v1448
        %v1481 = vlaneseq
        %v1482 = vshrl.u32 %v1481, 7
        %v1483 = vsub.s32 1, %v1482
        %v1484 = vrot.slane %v980, %v1483
        %v1485 = vlaneseq
        %v1486 = vshrl.u32 %v1485, 7
        %v1487 = vsub.s32 5, %v1486
        %v1488 = vrot.slane %v980, %v1487
        %v1491 = vlaneseq
        %v1492 = vshrl.u32 %v1491, 7
        %v1493 = vsub.s32 1, %v1492
        %v1494 = vrot.slane %v1484, %v1493
        %v1495 = vlaneseq
        %v1496 = vshrl.u32 %v1495, 7
        %v1497 = vsub.s32 1, %v1496
        %v1498 = vrot.slane %v1488, %v1497
        %v1499 = vmul.f32 %v1449, %v1494
        %v1500 = vmul.f32 %v1450, %v1498
        %v1501 = vmul.f32 %v1451, %v1494
        %v1502 = vmul.f32 %v1452, %v1498
        %v1503 = vmul.f32 %v1453, %v1494
        %v1504 = vmul.f32 %v1454, %v1498
        %v1505 = vmul.f32 %v1455, %v1494
        %v1506 = vmul.f32 %v1456, %v1498
        %v1507 = vmul.f32 %v1457, %v1494
        %v1508 = vmul.f32 %v1458, %v1498
        %v1509 = vmul.f32 %v1459, %v1494
        %v1510 = vmul.f32 %v1460, %v1498
        %v1511 = vmul.f32 %v1461, %v1494
        %v1512 = vmul.f32 %v1462, %v1498
        %v1513 = vmul.f32 %v1463, %v1494
        %v1514 = vmul.f32 %v1464, %v1498
        %v1515 = vmul.f32 %v1465, %v1494
        %v1516 = vmul.f32 %v1466, %v1498
        %v1517 = vmul.f32 %v1467, %v1494
        %v1518 = vmul.f32 %v1468, %v1498
        %v1519 = vmul.f32 %v1469, %v1494
        %v1520 = vmul.f32 %v1470, %v1498
        %v1521 = vmul.f32 %v1471, %v1494
        %v1522 = vmul.f32 %v1472, %v1498
        %v1523 = vmul.f32 %v1473, %v1494
        %v1524 = vmul.f32 %v1474, %v1498
        %v1525 = vmul.f32 %v1475, %v1494
        %v1526 = vmul.f32 %v1476, %v1498
        %v1527 = vmul.f32 %v1477, %v1494
        %v1528 = vmul.f32 %v1478, %v1498
        %v1529 = vmul.f32 %v1479, %v1494
        %v1530 = vmul.f32 %v1480, %v1498
        %v1531 = vlaneseq
        %v1532 = vshrl.u32 %v1531, 7
        %v1533 = vsub.s32 2, %v1532
        %v1534 = vrot.slane %v980, %v1533
        %v1535 = vlaneseq
        %v1536 = vshrl.u32 %v1535, 7
        %v1537 = vsub.s32 6, %v1536
        %v1538 = vrot.slane %v980, %v1537
        %v1541 = vlaneseq
        %v1542 = vshrl.u32 %v1541, 7
        %v1543 = vsub.s32 2, %v1542
        %v1544 = vrot.slane %v1534, %v1543
        %v1545 = vlaneseq
        %v1546 = vshrl.u32 %v1545, 7
        %v1547 = vsub.s32 2, %v1546
        %v1548 = vrot.slane %v1538, %v1547
        %v1549 = vadd.f32 %v1499, %v1544
        %v1550 = vadd.f32 %v1500, %v1548
        %v1551 = vadd.f32 %v1501, %v1544
        %v1552 = vadd.f32 %v1502, %v1548
        %v1553 = vadd.f32 %v1503, %v1544
        %v1554 = vadd.f32 %v1504, %v1548
        %v1555 = vadd.f32 %v1505, %v1544
        %v1556 = vadd.f32 %v1506, %v1548
        %v1557 = vadd.f32 %v1507, %v1544
        %v1558 = vadd.f32 %v1508, %v1548
        %v1559 = vadd.f32 %v1509, %v1544
        %v1560 = vadd.f32 %v1510, %v1548
        %v1561 = vadd.f32 %v1511, %v1544
        %v1562 = vadd.f32 %v1512, %v1548
        %v1563 = vadd.f32 %v1513, %v1544
        %v1564 = vadd.f32 %v1514, %v1548
        %v1565 = vadd.f32 %v1515, %v1544
        %v1566 = vadd.f32 %v1516, %v1548
        %v1567 = vadd.f32 %v1517, %v1544
        %v1568 = vadd.f32 %v1518, %v1548
        %v1569 = vadd.f32 %v1519, %v1544
        %v1570 = vadd.f32 %v1520, %v1548
        %v1571 = vadd.f32 %v1521, %v1544
        %v1572 = vadd.f32 %v1522, %v1548
        %v1573 = vadd.f32 %v1523, %v1544
        %v1574 = vadd.f32 %v1524, %v1548
        %v1575 = vadd.f32 %v1525, %v1544
        %v1576 = vadd.f32 %v1526, %v1548
        %v1577 = vadd.f32 %v1527, %v1544
        %v1578 = vadd.f32 %v1528, %v1548
        %v1579 = vadd.f32 %v1529, %v1544
        %v1580 = vadd.f32 %v1530, %v1548
        %v1581 = vmax.f32 %v1549, 0.0
        %v1582 = vmax.f32 %v1550, 0.0
        %v1583 = vmax.f32 %v1551, 0.0
        %v1584 = vmax.f32 %v1552, 0.0
        %v1585 = vmax.f32 %v1553, 0.0
        %v1586 = vmax.f32 %v1554, 0.0
        %v1587 = vmax.f32 %v1555, 0.0
        %v1588 = vmax.f32 %v1556, 0.0
        %v1589 = vmax.f32 %v1557, 0.0
        %v1590 = vmax.f32 %v1558, 0.0
        %v1591 = vmax.f32 %v1559, 0.0
        %v1592 = vmax.f32 %v1560, 0.0
        %v1593 = vmax.f32 %v1561, 0.0
        %v1594 = vmax.f32 %v1562, 0.0
        %v1595 = vmax.f32 %v1563, 0.0
        %v1596 = vmax.f32 %v1564, 0.0
        %v1597 = vmax.f32 %v1565, 0.0
        %v1598 = vmax.f32 %v1566, 0.0
        %v1599 = vmax.f32 %v1567, 0.0
        %v1600 = vmax.f32 %v1568, 0.0
        %v1601 = vmax.f32 %v1569, 0.0
        %v1602 = vmax.f32 %v1570, 0.0
        %v1603 = vmax.f32 %v1571, 0.0
        %v1604 = vmax.f32 %v1572, 0.0
        %v1605 = vmax.f32 %v1573, 0.0
        %v1606 = vmax.f32 %v1574, 0.0
        %v1607 = vmax.f32 %v1575, 0.0
        %v1608 = vmax.f32 %v1576, 0.0
        %v1609 = vmax.f32 %v1577, 0.0
        %v1610 = vmax.f32 %v1578, 0.0
        %v1611 = vmax.f32 %v1579, 0.0
        %v1612 = vmax.f32 %v1580, 0.0
        %v1613 = vld [vmem:[%s6] sm:$0x7]
        %v1614 = vld [vmem:[%s5] sm:$0xff]
        %v1615 = vld [vmem:[%s5 + $0x8] sm:$0xff]
        %v1616 = vld [vmem:[%s5 + $0x10] sm:$0xff]
        %v1617 = vld [vmem:[%s5 + $0x18] sm:$0xff]
        %v1618 = vld [vmem:[%s5 + $0x20] sm:$0xff]
        %v1619 = vld [vmem:[%s5 + $0x28] sm:$0xff]
        %v1620 = vld [vmem:[%s5 + $0x30] sm:$0xff]
        %v1621 = vld [vmem:[%s5 + $0x38] sm:$0xff]
        %v1622 = vld [vmem:[%s5 + $0x40] sm:$0xff]
        %v1623 = vld [vmem:[%s5 + $0x48] sm:$0xff]
        %v1624 = vld [vmem:[%s5 + $0x50] sm:$0xff]
        %v1625 = vld [vmem:[%s5 + $0x58] sm:$0xff]
        %v1626 = vld [vmem:[%s5 + $0x60] sm:$0xff]
        %v1627 = vld [vmem:[%s5 + $0x68] sm:$0xff]
        %v1628 = vld [vmem:[%s5 + $0x70] sm:$0xff]
        %v1629 = vld [vmem:[%s5 + $0x78] sm:$0xff]
        %v1630 = vld [vmem:[%s5 + $0x80] sm:$0xff]
        %v1631 = vld [vmem:[%s5 + $0x88] sm:$0xff]
        %v1632 = vld [vmem:[%s5 + $0x90] sm:$0xff]
        %v1633 = vld [vmem:[%s5 + $0x98] sm:$0xff]
        %v1634 = vld [vmem:[%s5 + $0xa0] sm:$0xff]
        %v1635 = vld [vmem:[%s5 + $0xa8] sm:$0xff]
        %v1636 = vld [vmem:[%s5 + $0xb0] sm:$0xff]
        %v1637 = vld [vmem:[%s5 + $0xb8] sm:$0xff]
        %v1638 = vld [vmem:[%s5 + $0xc0] sm:$0xff]
        %v1639 = vld [vmem:[%s5 + $0xc8] sm:$0xff]
        %v1640 = vld [vmem:[%s5 + $0xd0] sm:$0xff]
        %v1641 = vld [vmem:[%s5 + $0xd8] sm:$0xff]
        %v1642 = vld [vmem:[%s5 + $0xe0] sm:$0xff]
        %v1643 = vld [vmem:[%s5 + $0xe8] sm:$0xff]
        %v1644 = vld [vmem:[%s5 + $0xf0] sm:$0xff]
        %v1645 = vld [vmem:[%s5 + $0xf8] sm:$0xff]
        %v1646 = vlaneseq
        %v1647 = vshrl.u32 %v1646, 7
        %v1648 = vsub.s32 0, %v1647
        %v1649 = vrot.slane %v1613, %v1648
        %1650 = vmatprep.subr.mxu0 0.0
        %1651 = vmatpush1.msra.mxu0 %v1614
        %1652 = vmatprep.subr.mxu0 0.0
        %1653 = vmatpush1.msra.mxu0 %v1615
        %1654 = vmatprep.subr.mxu0 0.0
        %1655 = vmatpush1.msra.mxu0 %v1616
        %1656 = vmatprep.subr.mxu0 0.0
        %1657 = vmatpush1.msra.mxu0 %v1617
        %1658 = vmatprep.subr.mxu0 0.0
        %1659 = vmatpush1.msra.mxu0 %v1618
        %1660 = vmatprep.subr.mxu0 0.0
        %1661 = vmatpush1.msra.mxu0 %v1619
        %1662 = vmatprep.subr.mxu0 0.0
        %1663 = vmatpush1.msra.mxu0 %v1620
        %1664 = vmatprep.subr.mxu0 0.0
        %1665 = vmatpush1.msra.mxu0 %v1621
        %1666 = vmatprep.subr.mxu0 0.0
        %1667 = vmatpush1.msra.mxu0 %v1622
        %1668 = vmatprep.subr.mxu0 0.0
        %1669 = vmatpush1.msra.mxu0 %v1623
        %1670 = vmatprep.subr.mxu0 0.0
        %1671 = vmatpush1.msra.mxu0 %v1624
        %1672 = vmatprep.subr.mxu0 0.0
        %1673 = vmatpush1.msra.mxu0 %v1625
        %1674 = vmatprep.subr.mxu0 0.0
        %1675 = vmatpush1.msra.mxu0 %v1626
        %1676 = vmatprep.subr.mxu0 0.0
        %1677 = vmatpush1.msra.mxu0 %v1627
        %1678 = vmatprep.subr.mxu0 0.0
        %1679 = vmatpush1.msra.mxu0 %v1628
        %1680 = vmatprep.subr.mxu0 0.0
        %1681 = vmatpush1.msra.mxu0 %v1629
        %1682 = vmatprep.subr.mxu0 0.0
        %1683 = vmatpush1.msra.mxu0 %v1630
        %1684 = vmatprep.subr.mxu0 0.0
        %1685 = vmatpush1.msra.mxu0 %v1631
        %1686 = vmatprep.subr.mxu0 0.0
        %1687 = vmatpush1.msra.mxu0 %v1632
        %1688 = vmatprep.subr.mxu0 0.0
        %1689 = vmatpush1.msra.mxu0 %v1633
        %1690 = vmatprep.subr.mxu0 0.0
        %1691 = vmatpush1.msra.mxu0 %v1634
        %1692 = vmatprep.subr.mxu0 0.0
        %1693 = vmatpush1.msra.mxu0 %v1635
        %1694 = vmatprep.subr.mxu0 0.0
        %1695 = vmatpush1.msra.mxu0 %v1636
        %1696 = vmatprep.subr.mxu0 0.0
        %1697 = vmatpush1.msra.mxu0 %v1637
        %1698 = vmatprep.subr.mxu0 0.0
        %1699 = vmatpush1.msra.mxu0 %v1638
        %1700 = vmatprep.subr.mxu0 0.0
        %1701 = vmatpush1.msra.mxu0 %v1639
        %1702 = vmatprep.subr.mxu0 0.0
        %1703 = vmatpush1.msra.mxu0 %v1640
        %1704 = vmatprep.subr.mxu0 0.0
        %1705 = vmatpush1.msra.mxu0 %v1641
        %1706 = vmatprep.subr.mxu0 0.0
        %1707 = vmatpush1.msra.mxu0 %v1642
        %1708 = vmatprep.subr.mxu0 0.0
        %1709 = vmatpush1.msra.mxu0 %v1643
        %1710 = vmatprep.subr.mxu0 0.0
        %1711 = vmatpush1.msra.mxu0 %v1644
        %1712 = vmatprep.subr.mxu0 0.0
        %1713 = vmatpush1.msra.mxu0 %v1645
        %1714 = vmatprep.mubr.f32.mxu0 %v1582
        %1715 = vmatmul.mubr.f32.gmra.mrb[0].mxu0 %v1581
        %v1716 = vpop.f32.mrb[0].mxu0
        %v1717 = vadd.f32 %v1649, %v1716
        %v1718 = vpop.f32.mrb[0].mxu0
        %1719 = vmatprep.mubr.f32.mxu0 %v1584
        %1720 = vmatmul.mubr.f32.gmra.mrb[0].mxu0 %v1583
        %v1721 = vpop.f32.mrb[0].mxu0
        %v1722 = vadd.f32 %v1649, %v1721
        %v1723 = vpop.f32.mrb[0].mxu0
        %1724 = vmatprep.mubr.f32.mxu0 %v1586
        %1725 = vmatmul.mubr.f32.gmra.mrb[0].mxu0 %v1585
        %v1726 = vpop.f32.mrb[0].mxu0
        %v1727 = vadd.f32 %v1649, %v1726
        %v1728 = vpop.f32.mrb[0].mxu0
        %1729 = vmatprep.mubr.f32.mxu0 %v1588
        %1730 = vmatmul.mubr.f32.gmra.mrb[0].mxu0 %v1587
        %v1731 = vpop.f32.mrb[0].mxu0
        %v1732 = vadd.f32 %v1649, %v1731
        %v1733 = vpop.f32.mrb[0].mxu0
        %1734 = vmatprep.mubr.f32.mxu0 %v1590
        %1735 = vmatmul.mubr.f32.gmra.mrb[0].mxu0 %v1589
        %v1736 = vpop.f32.mrb[0].mxu0
        %v1737 = vadd.f32 %v1649, %v1736
        %v1738 = vpop.f32.mrb[0].mxu0
        %1739 = vmatprep.mubr.f32.mxu0 %v1592
        %1740 = vmatmul.mubr.f32.gmra.mrb[0].mxu0 %v1591
        %v1741 = vpop.f32.mrb[0].mxu0
        %v1742 = vadd.f32 %v1649, %v1741
        %v1743 = vpop.f32.mrb[0].mxu0
        %1744 = vmatprep.mubr.f32.mxu0 %v1594
        %1745 = vmatmul.mubr.f32.gmra.mrb[0].mxu0 %v1593
        %v1746 = vpop.f32.mrb[0].mxu0
        %v1747 = vadd.f32 %v1649, %v1746
        %v1748 = vpop.f32.mrb[0].mxu0
        %1749 = vmatprep.mubr.f32.mxu0 %v1596
        %1750 = vmatmul.mubr.f32.gmra.mrb[0].mxu0 %v1595
        %v1751 = vpop.f32.mrb[0].mxu0
        %v1752 = vadd.f32 %v1649, %v1751
        %v1753 = vpop.f32.mrb[0].mxu0
        %1754 = vmatprep.mubr.f32.mxu0 %v1598
        %1755 = vmatmul.mubr.f32.gmra.mrb[0].mxu0 %v1597
        %v1756 = vpop.f32.mrb[0].mxu0
        %v1757 = vadd.f32 %v1649, %v1756
        %v1758 = vpop.f32.mrb[0].mxu0
        %1759 = vmatprep.mubr.f32.mxu0 %v1600
        %1760 = vmatmul.mubr.f32.gmra.mrb[0].mxu0 %v1599
        %v1761 = vpop.f32.mrb[0].mxu0
        %v1762 = vadd.f32 %v1649, %v1761
        %v1763 = vpop.f32.mrb[0].mxu0
        %1764 = vmatprep.mubr.f32.mxu0 %v1602
        %1765 = vmatmul.mubr.f32.gmra.mrb[0].mxu0 %v1601
        %v1766 = vpop.f32.mrb[0].mxu0
        %v1767 = vadd.f32 %v1649, %v1766
        %v1768 = vpop.f32.mrb[0].mxu0
        %1769 = vmatprep.mubr.f32.mxu0 %v1604
        %1770 = vmatmul.mubr.f32.gmra.mrb[0].mxu0 %v1603
        %v1771 = vpop.f32.mrb[0].mxu0
        %v1772 = vadd.f32 %v1649, %v1771
        %v1773 = vpop.f32.mrb[0].mxu0
        %1774 = vmatprep.mubr.f32.mxu0 %v1606
        %1775 = vmatmul.mubr.f32.gmra.mrb[0].mxu0 %v1605
        %v1776 = vpop.f32.mrb[0].mxu0
        %v1777 = vadd.f32 %v1649, %v1776
        %v1778 = vpop.f32.mrb[0].mxu0
        %1779 = vmatprep.mubr.f32.mxu0 %v1608
        %1780 = vmatmul.mubr.f32.gmra.mrb[0].mxu0 %v1607
        %v1781 = vpop.f32.mrb[0].mxu0
        %v1782 = vadd.f32 %v1649, %v1781
        %v1783 = vpop.f32.mrb[0].mxu0
        %1784 = vmatprep.mubr.f32.mxu0 %v1610
        %1785 = vmatmul.mubr.f32.gmra.mrb[0].mxu0 %v1609
        %v1786 = vpop.f32.mrb[0].mxu0
        %v1787 = vadd.f32 %v1649, %v1786
        %v1788 = vpop.f32.mrb[0].mxu0
        %1789 = vmatprep.mubr.f32.mxu0 %v1612
        %1790 = vmatmul.mubr.f32.gmra.mrb[0].mxu0 %v1611
        %v1791 = vpop.f32.mrb[0].mxu0
        %v1792 = vadd.f32 %v1649, %v1791
        %v1793 = vpop.f32.mrb[0].mxu0
        %1794 = vdwg.mxu0
        %1795 = vadd.xlane.f32.xlu0 %v1717
        %v1796 = vpop.xlane.xlu0 %1795
        %1797 = vadd.xlane.f32.xlu0 %v1722
        %v1798 = vpop.xlane.xlu0 %1797
        %1799 = vadd.xlane.f32.xlu0 %v1727
        %v1800 = vpop.xlane.xlu0 %1799
        %1801 = vadd.xlane.f32.xlu0 %v1732
        %v1802 = vpop.xlane.xlu0 %1801
        %1803 = vadd.xlane.f32.xlu0 %v1737
        %v1804 = vpop.xlane.xlu0 %1803
        %1805 = vadd.xlane.f32.xlu0 %v1742
        %v1806 = vpop.xlane.xlu0 %1805
        %1807 = vadd.xlane.f32.xlu0 %v1747
        %v1808 = vpop.xlane.xlu0 %1807
        %1809 = vadd.xlane.f32.xlu0 %v1752
        %v1810 = vpop.xlane.xlu0 %1809
        %1811 = vadd.xlane.f32.xlu0 %v1757
        %v1812 = vpop.xlane.xlu0 %1811
        %1813 = vadd.xlane.f32.xlu0 %v1762
        %v1814 = vpop.xlane.xlu0 %1813
        %1815 = vadd.xlane.f32.xlu0 %v1767
        %v1816 = vpop.xlane.xlu0 %1815
        %1817 = vadd.xlane.f32.xlu0 %v1772
        %v1818 = vpop.xlane.xlu0 %1817
        %1819 = vadd.xlane.f32.xlu0 %v1777
        %v1820 = vpop.xlane.xlu0 %1819
        %1821 = vadd.xlane.f32.xlu0 %v1782
        %v1822 = vpop.xlane.xlu0 %1821
        %1823 = vadd.xlane.f32.xlu0 %v1787
        %v1824 = vpop.xlane.xlu0 %1823
        %1825 = vadd.xlane.f32.xlu0 %v1792
        %v1826 = vpop.xlane.xlu0 %1825
        %v1827 = vmul.f32 %v1796, 0.010416667
        %v1828 = vmul.f32 %v1798, 0.010416667
        %v1829 = vmul.f32 %v1800, 0.010416667
        %v1830 = vmul.f32 %v1802, 0.010416667
        %v1831 = vmul.f32 %v1804, 0.010416667
        %v1832 = vmul.f32 %v1806, 0.010416667
        %v1833 = vmul.f32 %v1808, 0.010416667
        %v1834 = vmul.f32 %v1810, 0.010416667
        %v1835 = vmul.f32 %v1812, 0.010416667
        %v1836 = vmul.f32 %v1814, 0.010416667
        %v1837 = vmul.f32 %v1816, 0.010416667
        %v1838 = vmul.f32 %v1818, 0.010416667
        %v1839 = vmul.f32 %v1820, 0.010416667
        %v1840 = vmul.f32 %v1822, 0.010416667
        %v1841 = vmul.f32 %v1824, 0.010416667
        %v1842 = vmul.f32 %v1826, 0.010416667
        %v1843 = vsub.f32 %v1717, %v1827
        %v1844 = vsub.f32 %v1722, %v1828
        %v1845 = vsub.f32 %v1727, %v1829
        %v1846 = vsub.f32 %v1732, %v1830
        %v1847 = vsub.f32 %v1737, %v1831
        %v1848 = vsub.f32 %v1742, %v1832
        %v1849 = vsub.f32 %v1747, %v1833
        %v1850 = vsub.f32 %v1752, %v1834
        %v1851 = vsub.f32 %v1757, %v1835
        %v1852 = vsub.f32 %v1762, %v1836
        %v1853 = vsub.f32 %v1767, %v1837
        %v1854 = vsub.f32 %v1772, %v1838
        %v1855 = vsub.f32 %v1777, %v1839
        %v1856 = vsub.f32 %v1782, %v1840
        %v1857 = vsub.f32 %v1787, %v1841
        %v1858 = vsub.f32 %v1792, %v1842
        %v1859 = vmul.f32 %v1843, %v1843
        %v1860 = vmul.f32 %v1844, %v1844
        %v1861 = vmul.f32 %v1845, %v1845
        %v1862 = vmul.f32 %v1846, %v1846
        %v1863 = vmul.f32 %v1847, %v1847
        %v1864 = vmul.f32 %v1848, %v1848
        %v1865 = vmul.f32 %v1849, %v1849
        %v1866 = vmul.f32 %v1850, %v1850
        %v1867 = vmul.f32 %v1851, %v1851
        %v1868 = vmul.f32 %v1852, %v1852
        %v1869 = vmul.f32 %v1853, %v1853
        %v1870 = vmul.f32 %v1854, %v1854
        %v1871 = vmul.f32 %v1855, %v1855
        %v1872 = vmul.f32 %v1856, %v1856
        %v1873 = vmul.f32 %v1857, %v1857
        %v1874 = vmul.f32 %v1858, %v1858
        %1875 = vadd.xlane.f32.xlu0 %v1859
        %v1876 = vpop.xlane.xlu0 %1875
        %1877 = vadd.xlane.f32.xlu0 %v1860
        %v1878 = vpop.xlane.xlu0 %1877
        %1879 = vadd.xlane.f32.xlu0 %v1861
        %v1880 = vpop.xlane.xlu0 %1879
        %1881 = vadd.xlane.f32.xlu0 %v1862
        %v1882 = vpop.xlane.xlu0 %1881
        %1883 = vadd.xlane.f32.xlu0 %v1863
        %v1884 = vpop.xlane.xlu0 %1883
        %1885 = vadd.xlane.f32.xlu0 %v1864
        %v1886 = vpop.xlane.xlu0 %1885
        %1887 = vadd.xlane.f32.xlu0 %v1865
        %v1888 = vpop.xlane.xlu0 %1887
        %1889 = vadd.xlane.f32.xlu0 %v1866
        %v1890 = vpop.xlane.xlu0 %1889
        %1891 = vadd.xlane.f32.xlu0 %v1867
        %v1892 = vpop.xlane.xlu0 %1891
        %1893 = vadd.xlane.f32.xlu0 %v1868
        %v1894 = vpop.xlane.xlu0 %1893
        %1895 = vadd.xlane.f32.xlu0 %v1869
        %v1896 = vpop.xlane.xlu0 %1895
        %1897 = vadd.xlane.f32.xlu0 %v1870
        %v1898 = vpop.xlane.xlu0 %1897
        %1899 = vadd.xlane.f32.xlu0 %v1871
        %v1900 = vpop.xlane.xlu0 %1899
        %1901 = vadd.xlane.f32.xlu0 %v1872
        %v1902 = vpop.xlane.xlu0 %1901
        %1903 = vadd.xlane.f32.xlu0 %v1873
        %v1904 = vpop.xlane.xlu0 %1903
        %1905 = vadd.xlane.f32.xlu0 %v1874
        %v1906 = vpop.xlane.xlu0 %1905
        %v1907 = vmul.f32 %v1827, %v1827
        %v1908 = vmul.f32 %v1828, %v1828
        %v1909 = vmul.f32 %v1829, %v1829
        %v1910 = vmul.f32 %v1830, %v1830
        %v1911 = vmul.f32 %v1831, %v1831
        %v1912 = vmul.f32 %v1832, %v1832
        %v1913 = vmul.f32 %v1833, %v1833
        %v1914 = vmul.f32 %v1834, %v1834
        %v1915 = vmul.f32 %v1835, %v1835
        %v1916 = vmul.f32 %v1836, %v1836
        %v1917 = vmul.f32 %v1837, %v1837
        %v1918 = vmul.f32 %v1838, %v1838
        %v1919 = vmul.f32 %v1839, %v1839
        %v1920 = vmul.f32 %v1840, %v1840
        %v1921 = vmul.f32 %v1841, %v1841
        %v1922 = vmul.f32 %v1842, %v1842
        %v1923 = vmul.f32 %v1907, 32.0
        %v1924 = vmul.f32 %v1908, 32.0
        %v1925 = vmul.f32 %v1909, 32.0
        %v1926 = vmul.f32 %v1910, 32.0
        %v1927 = vmul.f32 %v1911, 32.0
        %v1928 = vmul.f32 %v1912, 32.0
        %v1929 = vmul.f32 %v1913, 32.0
        %v1930 = vmul.f32 %v1914, 32.0
        %v1931 = vmul.f32 %v1915, 32.0
        %v1932 = vmul.f32 %v1916, 32.0
        %v1933 = vmul.f32 %v1917, 32.0
        %v1934 = vmul.f32 %v1918, 32.0
        %v1935 = vmul.f32 %v1919, 32.0
        %v1936 = vmul.f32 %v1920, 32.0
        %v1937 = vmul.f32 %v1921, 32.0
        %v1938 = vmul.f32 %v1922, 32.0
        %v1939 = vsub.f32 %v1876, %v1923
        %v1940 = vsub.f32 %v1878, %v1924
        %v1941 = vsub.f32 %v1880, %v1925
        %v1942 = vsub.f32 %v1882, %v1926
        %v1943 = vsub.f32 %v1884, %v1927
        %v1944 = vsub.f32 %v1886, %v1928
        %v1945 = vsub.f32 %v1888, %v1929
        %v1946 = vsub.f32 %v1890, %v1930
        %v1947 = vsub.f32 %v1892, %v1931
        %v1948 = vsub.f32 %v1894, %v1932
        %v1949 = vsub.f32 %v1896, %v1933
        %v1950 = vsub.f32 %v1898, %v1934
        %v1951 = vsub.f32 %v1900, %v1935
        %v1952 = vsub.f32 %v1902, %v1936
        %v1953 = vsub.f32 %v1904, %v1937
        %v1954 = vsub.f32 %v1906, %v1938
        %v1955 = vmul.f32 %v1939, 0.010416667
        %v1956 = vmul.f32 %v1940, 0.010416667
        %v1957 = vmul.f32 %v1941, 0.010416667
        %v1958 = vmul.f32 %v1942, 0.010416667
        %v1959 = vmul.f32 %v1943, 0.010416667
        %v1960 = vmul.f32 %v1944, 0.010416667
        %v1961 = vmul.f32 %v1945, 0.010416667
        %v1962 = vmul.f32 %v1946, 0.010416667
        %v1963 = vmul.f32 %v1947, 0.010416667
        %v1964 = vmul.f32 %v1948, 0.010416667
        %v1965 = vmul.f32 %v1949, 0.010416667
        %v1966 = vmul.f32 %v1950, 0.010416667
        %v1967 = vmul.f32 %v1951, 0.010416667
        %v1968 = vmul.f32 %v1952, 0.010416667
        %v1969 = vmul.f32 %v1953, 0.010416667
        %v1970 = vmul.f32 %v1954, 0.010416667
        %v1971 = vadd.f32 %v1955, 1e-05
        %v1972 = vadd.f32 %v1956, 1e-05
        %v1973 = vadd.f32 %v1957, 1e-05
        %v1974 = vadd.f32 %v1958, 1e-05
        %v1975 = vadd.f32 %v1959, 1e-05
        %v1976 = vadd.f32 %v1960, 1e-05
        %v1977 = vadd.f32 %v1961, 1e-05
        %v1978 = vadd.f32 %v1962, 1e-05
        %v1979 = vadd.f32 %v1963, 1e-05
        %v1980 = vadd.f32 %v1964, 1e-05
        %v1981 = vadd.f32 %v1965, 1e-05
        %v1982 = vadd.f32 %v1966, 1e-05
        %v1983 = vadd.f32 %v1967, 1e-05
        %v1984 = vadd.f32 %v1968, 1e-05
        %v1985 = vadd.f32 %v1969, 1e-05
        %v1986 = vadd.f32 %v1970, 1e-05
        %v1987 = vrsqrt.pop %v1971
        %v1988 = vrsqrt.pop %v1972
        %v1989 = vrsqrt.pop %v1973
        %v1990 = vrsqrt.pop %v1974
        %v1991 = vrsqrt.pop %v1975
        %v1992 = vrsqrt.pop %v1976
        %v1993 = vrsqrt.pop %v1977
        %v1994 = vrsqrt.pop %v1978
        %v1995 = vrsqrt.pop %v1979
        %v1996 = vrsqrt.pop %v1980
        %v1997 = vrsqrt.pop %v1981
        %v1998 = vrsqrt.pop %v1982
        %v1999 = vrsqrt.pop %v1983
        %v2000 = vrsqrt.pop %v1984
        %v2001 = vrsqrt.pop %v1985
        %v2002 = vrsqrt.pop %v1986
        %v2003 = vmul.f32 %v1843, %v1987
        %v2004 = vmul.f32 %v1844, %v1988
        %v2005 = vmul.f32 %v1845, %v1989
        %v2006 = vmul.f32 %v1846, %v1990
        %v2007 = vmul.f32 %v1847, %v1991
        %v2008 = vmul.f32 %v1848, %v1992
        %v2009 = vmul.f32 %v1849, %v1993
        %v2010 = vmul.f32 %v1850, %v1994
        %v2011 = vmul.f32 %v1851, %v1995
        %v2012 = vmul.f32 %v1852, %v1996
        %v2013 = vmul.f32 %v1853, %v1997
        %v2014 = vmul.f32 %v1854, %v1998
        %v2015 = vmul.f32 %v1855, %v1999
        %v2016 = vmul.f32 %v1856, %v2000
        %v2017 = vmul.f32 %v1857, %v2001
        %v2018 = vmul.f32 %v1858, %v2002
        %v2019 = vlaneseq
        %v2020 = vshrl.u32 %v2019, 7
        %v2021 = vsub.s32 1, %v2020
        %v2022 = vrot.slane %v1613, %v2021
        %v2023 = vmul.f32 %v2003, %v2022
        %v2024 = vmul.f32 %v2004, %v2022
        %v2025 = vmul.f32 %v2005, %v2022
        %v2026 = vmul.f32 %v2006, %v2022
        %v2027 = vmul.f32 %v2007, %v2022
        %v2028 = vmul.f32 %v2008, %v2022
        %v2029 = vmul.f32 %v2009, %v2022
        %v2030 = vmul.f32 %v2010, %v2022
        %v2031 = vmul.f32 %v2011, %v2022
        %v2032 = vmul.f32 %v2012, %v2022
        %v2033 = vmul.f32 %v2013, %v2022
        %v2034 = vmul.f32 %v2014, %v2022
        %v2035 = vmul.f32 %v2015, %v2022
        %v2036 = vmul.f32 %v2016, %v2022
        %v2037 = vmul.f32 %v2017, %v2022
        %v2038 = vmul.f32 %v2018, %v2022
        %v2039 = vlaneseq
        %v2040 = vshrl.u32 %v2039, 7
        %v2041 = vsub.s32 2, %v2040
        %v2042 = vrot.slane %v1613, %v2041
        %v2043 = vadd.f32 %v2023, %v2042
        %v2044 = vadd.f32 %v2024, %v2042
        %v2045 = vadd.f32 %v2025, %v2042
        %v2046 = vadd.f32 %v2026, %v2042
        %v2047 = vadd.f32 %v2027, %v2042
        %v2048 = vadd.f32 %v2028, %v2042
        %v2049 = vadd.f32 %v2029, %v2042
        %v2050 = vadd.f32 %v2030, %v2042
        %v2051 = vadd.f32 %v2031, %v2042
        %v2052 = vadd.f32 %v2032, %v2042
        %v2053 = vadd.f32 %v2033, %v2042
        %v2054 = vadd.f32 %v2034, %v2042
        %v2055 = vadd.f32 %v2035, %v2042
        %v2056 = vadd.f32 %v2036, %v2042
        %v2057 = vadd.f32 %v2037, %v2042
        %v2058 = vadd.f32 %v2038, %v2042
        %v2059 = vmax.f32 %v2043, 0.0
        %v2060 = vmax.f32 %v2044, 0.0
        %v2061 = vmax.f32 %v2045, 0.0
        %v2062 = vmax.f32 %v2046, 0.0
        %v2063 = vmax.f32 %v2047, 0.0
        %v2064 = vmax.f32 %v2048, 0.0
        %v2065 = vmax.f32 %v2049, 0.0
        %v2066 = vmax.f32 %v2050, 0.0
        %v2067 = vmax.f32 %v2051, 0.0
        %v2068 = vmax.f32 %v2052, 0.0
        %v2069 = vmax.f32 %v2053, 0.0
        %v2070 = vmax.f32 %v2054, 0.0
        %v2071 = vmax.f32 %v2055, 0.0
        %v2072 = vmax.f32 %v2056, 0.0
        %v2073 = vmax.f32 %v2057, 0.0
        %v2074 = vmax.f32 %v2058, 0.0
        %2075 = vst [vmem:[%s314] sm:$0xff] %v2059
        %2076 = vst [vmem:[%s314 + $0x8] sm:$0xff] %v2060
        %2077 = vst [vmem:[%s314 + $0x10] sm:$0xff] %v2061
        %2078 = vst [vmem:[%s314 + $0x18] sm:$0xff] %v2062
        %2079 = vst [vmem:[%s314 + $0x20] sm:$0xff] %v2063
        %2080 = vst [vmem:[%s314 + $0x28] sm:$0xff] %v2064
        %2081 = vst [vmem:[%s314 + $0x30] sm:$0xff] %v2065
        %2082 = vst [vmem:[%s314 + $0x38] sm:$0xff] %v2066
        %2083 = vst [vmem:[%s314 + $0x40] sm:$0xff] %v2067
        %2084 = vst [vmem:[%s314 + $0x48] sm:$0xff] %v2068
        %2085 = vst [vmem:[%s314 + $0x50] sm:$0xff] %v2069
        %2086 = vst [vmem:[%s314 + $0x58] sm:$0xff] %v2070
        %2087 = vst [vmem:[%s314 + $0x60] sm:$0xff] %v2071
        %2088 = vst [vmem:[%s314 + $0x68] sm:$0xff] %v2072
        %2089 = vst [vmem:[%s314 + $0x70] sm:$0xff] %v2073
        %2090 = vst [vmem:[%s314 + $0x78] sm:$0xff] %v2074
        %s2091 = sand.u32 %s183, 1
        %s2092 = scalar_lea.sflag [#allocation4], %s2091
        %s2093 = sand.u32 %s183, 1
        %s2094 = smul.addr %s2093, 128
        %s2095 = scalar_lea.vmem [#allocation7], %s2094
        // Predicated region
        $region57: #{tpu_custom_call.1} parent=47 // pred_check
          %p2096 = pneg %p193
        $region58: #{tpu_custom_call.1} parent=47 // pred_check_branch
          %2098 = sbr.rel (%p2096) target = $region60
        $region59: #{tpu_custom_call.1} parent=47 // pred_region
          %s2099 = smul.u32 16, %s23
          %s2100 = ssub.s32 25, %s2099
          %p2101 = scmp.lt.s32.totalorder %s2100, 16
          %s2102 = scalar_select %p2101, %s2100, 16
          %s2103 = smul.u32 128, %s2102
          %s2105 = ssub.s32 2048, %s2103
          %2106 = vsyncadd %s2092, %s2105
          %p2107 = scmp.ne.s32.totalorder 0, %s2103
          %s2108 = smul.addr %s2099, 128
          %s2109 = scalar_lea.hbm %s7, %s2108
          %s2110 = smul.u32 8, %s2102
          %s2111 = sshll.u32 %s2095, 4
          %s2112 = int_to_ptr.vmem [resolvable:$true] %s2111
          %s2113 = sshll.u32 %s2110, 4
          %2117 = dma.vmem_to_hbm [thread:$0]  (%p2107), %s2112, %s2113, %s2109, %s2092, 128, 128, 8
        $region60: #{tpu_custom_call.1} parent=47 // pred_fallthru
          _
      $region48: #{tpu_custom_call.1} parent=5 // pred_fallthru
        _
      %p2118 = scmp.le.s32.totalorder 2, %s18
      // Predicated region
      $region61: #{tpu_custom_call.1} parent=5 // pred_check
        %p2119 = pneg %p2118
      $region62: #{tpu_custom_call.1} parent=5 // pred_check_branch
        %2121 = sbr.rel (%p2119) target = $region64
      $region63: #{tpu_custom_call.1} parent=5 // pred_region
        %s2122 = ssub.s32 %s18, 2
        // Predicated region
        $region65: #{tpu_custom_call.1} parent=63 // pred_check
          %p2123 = pneg %p199
        $region66: #{tpu_custom_call.1} parent=63 // pred_check_branch
          %2125 = sbr.rel (%p2123) target = $region68
        $region67: #{tpu_custom_call.1} parent=63 // pred_region
          %s2126 = sand.u32 %s184, 1
          %s2127 = scalar_lea.sflag [#allocation4], %s2126
          %s2128 = sand.u32 %s184, 1
          %s2129 = smul.addr %s2128, 128
          %s2130 = scalar_lea.vmem [#allocation7], %s2129
          %2131 = dma.done %s2127, 2048
        $region68: #{tpu_custom_call.1} parent=63 // pred_fallthru
          _
      $region64: #{tpu_custom_call.1} parent=5 // pred_fallthru
        _
    $region6: #{tpu_custom_call.1} parent=1 // loop_footer
      %s22 = sadd.s32 1, %s18
    $region7: #{tpu_custom_call.1} parent=1 // loop_footer_branch
      %17 = sbr.rel target = $region3
    $region8: #{tpu_custom_call.1} parent=1 // loop_exit
      _
    %2132 = vsyncpa [#allocation3], 1
    %s2133 = scalar_lea.sflag [#allocation3], 1
    %2134 = vsyncpa %s2133, 1
    %2135 = vsyncpa [#allocation6], 1
    %2136 = vsyncpa [#allocation4], 1
    %s2137 = scalar_lea.sflag [#allocation4], 1
    %2138 = vsyncpa %s2137, 1

</llo_original>
